<compile_context>
chip_gen: v5e
topology: v5e:2x2
jax: 0.10.0
libtpu: 0.0.40
codegen_flags: <defaults>
</compile_context>

<pallas_src>
import math

import jax
import jax.numpy as jnp
from jax.experimental import pallas as pl
from jax.experimental.pallas import tpu as pltpu


# ----------------------------------------------------------------------------
# Helpers
# ----------------------------------------------------------------------------
_GATHER_ROWS = 64        # embedding rows per grid step
_GATHER_INFLIGHT = 16    # concurrent row DMAs (semaphores reused round-robin)
_VMEM_LIMIT = None


def _round_up(x, m):
    return ((x + m - 1) // m) * m


def _pick_aligned_tile(dim, target):
    """dim is a multiple of 128; largest multiple of 128 <= target dividing dim."""
    t = min(target, dim)
    t -= t % 128
    while t > 128 and dim % t:
        t -= 128
    return t


def _vmem_limit_bytes():
    """3/4 of physical VMEM (<=96 MiB).  ~48 MiB on v7x, 96 MiB on v5e/v6e."""
    global _VMEM_LIMIT
    if _VMEM_LIMIT is None:
        try:
            cap = int(pltpu.get_tpu_info().vmem_capacity_bytes)
            _VMEM_LIMIT = max(32 * 1024 * 1024, min(96 * 1024 * 1024, (cap * 3) // 4))
        except Exception:
            _VMEM_LIMIT = 64 * 1024 * 1024
    return _VMEM_LIMIT


def _sigmoid(x):
    # Exact sigmoid via tanh: goes to the EUP slot instead of a VALU divide.
    return 0.5 * (jnp.tanh(0.5 * x) + 1.0)


# ----------------------------------------------------------------------------
# Kernels
# ----------------------------------------------------------------------------
def embed_gather_kernel(ids_ref, table_ref, out_ref, sems):
    # ids_ref:   SMEM (N_pad,) int32 (scalar prefetch)
    # table_ref: HBM  (V, E_pad)     (memory_space=pl.ANY)
    # out_ref:   VMEM (g, E_pad)     -- rows DMA'd directly here (no scratch copy)
    g = out_ref.shape[0]
    n_sems = min(_GATHER_INFLIGHT, g)
    base = pl.program_id(0) * g
    copies = []
    for r in range(g):
        cp = pltpu.make_async_copy(
            table_ref.at[ids_ref[base + r]], out_ref.at[r], sems.at[r % n_sems])
        if r >= n_sems:                 # keep at most n_sems DMAs in flight
            copies[r - n_sems].wait()
        cp.start()
        copies.append(cp)
    for cp in copies[-n_sems:]:
        cp.wait()


def _linear_resident_kernel(x_ref, w_ref, b_ref, o_ref, acc_ref):
    # Activation (all rows) resident; grid = (N/tn, K/tk), K innermost.
    # Weight tiles are streamed from HBM exactly once.
    @pl.when(pl.program_id(1) == 0)
    def _():
        acc_ref[...] = jnp.zeros_like(acc_ref)

    acc_ref[...] += jnp.dot(x_ref[...], w_ref[...],
                            preferred_element_type=jnp.float32)

    @pl.when(pl.program_id(1) == pl.num_programs(1) - 1)
    def _():
        o_ref[...] = (acc_ref[...] + b_ref[...]).astype(o_ref.dtype)


def _linear_tiled_kernel(x_ref, w_ref, b_ref, o_ref, acc_ref):
    # Fallback for large row counts; grid = (M/tm, N/tn, K/tk), K innermost.
    @pl.when(pl.program_id(2) == 0)
    def _():
        acc_ref[...] = jnp.zeros_like(acc_ref)

    acc_ref[...] += jnp.dot(x_ref[...], w_ref[...],
                            preferred_element_type=jnp.float32)

    @pl.when(pl.program_id(2) == pl.num_programs(2) - 1)
    def _():
        o_ref[...] = (acc_ref[...] + b_ref[...]).astype(o_ref.dtype)


def lstm_recurrence_kernel(xproj_ref, whh_ref, out_ref, h_ref, c_ref):
    # grid = (batch_chunks ["parallel"], time_chunks ["arbitrary"])
    # xproj_ref: (t_chunk, b_chunk, 4*H_pad) carry dtype (x@W_ih^T + biases)
    # whh_ref:   (H_pad, 4*H_pad) compute dtype (loop-invariant)
    # out_ref:   (t_chunk, b_chunk, H_pad) carry dtype
    # h_ref: carry-dtype state, c_ref: f32 state; persist across time chunks.
    @pl.when(pl.program_id(1) == 0)
    def _():
        h_ref[...] = jnp.zeros_like(h_ref)
        c_ref[...] = jnp.zeros_like(c_ref)

    t_chunk = xproj_ref.shape[0]
    hidden = whh_ref.shape[0]
    whh = whh_ref[...]                       # hoisted, loop-invariant
    # TODO(synk): pipeline_mode=pl.Buffered(1) on the whh BlockSpec would drop
    #             its second (never-used) pipeline buffer if supported.

    def step(s, carry):
        h_prev = h_ref[...]
        c_prev = c_ref[...]
        gates = xproj_ref[s] + jnp.dot(       # promotes to f32
            h_prev, whh, preferred_element_type=jnp.float32)
        i_g = _sigmoid(gates[:, 0 * hidden:1 * hidden])
        f_g = _sigmoid(gates[:, 1 * hidden:2 * hidden])
        g_g = jnp.tanh(gates[:, 2 * hidden:3 * hidden])
        o_g = _sigmoid(gates[:, 3 * hidden:4 * hidden])
        c_new = f_g * c_prev + i_g * g_g
        h_new = o_g * jnp.tanh(c_new)
        c_ref[...] = c_new
        h_ref[...] = h_new.astype(h_ref.dtype)
        out_ref[s] = h_new.astype(out_ref.dtype)
        return carry

    jax.lax.fori_loop(0, t_chunk, step, 0, unroll=True)


# ----------------------------------------------------------------------------
# Wrappers
# ----------------------------------------------------------------------------
def embedding_gather(ids_flat, table):
    """ids_flat: (N,) int32 -> (N, E_pad) rows gathered from HBM table."""
    n = ids_flat.shape[0]
    _, e_pad = table.shape
    g = _GATHER_ROWS if n >= _GATHER_ROWS else _round_up(n, 8)
    n_pad = _round_up(n, g)
    ids_p = ids_flat.astype(jnp.int32)
    if n_pad != n:
        ids_p = jnp.pad(ids_p, (0, n_pad - n))

    out = pl.pallas_call(
        embed_gather_kernel,
        out_shape=jax.ShapeDtypeStruct((n_pad, e_pad), table.dtype),
        grid_spec=pltpu.PrefetchScalarGridSpec(
            num_scalar_prefetch=1,
            grid=(n_pad // g,),
            in_specs=[pl.BlockSpec(memory_space=pl.ANY)],   # table stays in HBM
            out_specs=pl.BlockSpec((g, e_pad), lambda i, ids: (i, 0)),
            scratch_shapes=[pltpu.SemaphoreType.DMA((min(_GATHER_INFLIGHT, g),))],
        ),
        compiler_params=pltpu.CompilerParams(
            dimension_semantics=("parallel",),
            vmem_limit_bytes=_vmem_limit_bytes(),
        ),
    )(ids_p, table)
    return out[:n]


def tiled_linear(x, w, bias, *, out_dtype, tn_target=512, tk_target=512,
                 tm_target=256, resident_rows=1024):
    """x: (M, K), w: (K, N) pre-padded/pre-cast, bias: (N,) f32 -> (M, N)."""
    m, k = x.shape
    kw, n = w.shape
    assert kw == k and k % 128 == 0 and n % 128 == 0
    b2 = bias.reshape(1, n)
    tn = _pick_aligned_tile(n, tn_target)
    tk = _pick_aligned_tile(k, tk_target)
    vmem = _vmem_limit_bytes()

    m_pad = _round_up(m, 8)
    if m_pad <= resident_rows:
        # Activation fully resident; weights streamed from HBM exactly once.
        if m_pad != m:
            x = jnp.pad(x, ((0, m_pad - m), (0, 0)))
        out = pl.pallas_call(
            _linear_resident_kernel,
            out_shape=jax.ShapeDtypeStruct((m_pad, n), out_dtype),
            grid_spec=pltpu.PrefetchScalarGridSpec(
                num_scalar_prefetch=0,
                grid=(n // tn, k // tk),
                in_specs=[
                    pl.BlockSpec((m_pad, tk), lambda j, kk: (0, kk)),
                    pl.BlockSpec((tk, tn), lambda j, kk: (kk, j)),
                    pl.BlockSpec((1, tn), lambda j, kk: (0, j)),
                ],
                out_specs=pl.BlockSpec((m_pad, tn), lambda j, kk: (0, j)),
                scratch_shapes=[pltpu.VMEM((m_pad, tn), jnp.float32)],
            ),
            compiler_params=pltpu.CompilerParams(
                dimension_semantics=("parallel", "arbitrary"),
                vmem_limit_bytes=vmem,
            ),
        )(x, w, b2)
        return out[:m]

    # Fallback: tile the row dimension too.
    tm = tm_target
    m_pad = _round_up(m, tm)
    if m_pad != m:
        x = jnp.pad(x, ((0, m_pad - m), (0, 0)))
    out = pl.pallas_call(
        _linear_tiled_kernel,
        out_shape=jax.ShapeDtypeStruct((m_pad, n), out_dtype),
        grid_spec=pltpu.PrefetchScalarGridSpec(
            num_scalar_prefetch=0,
            grid=(m_pad // tm, n // tn, k // tk),
            in_specs=[
                pl.BlockSpec((tm, tk), lambda i, j, kk: (i, kk)),
                pl.BlockSpec((tk, tn), lambda i, j, kk: (kk, j)),
                pl.BlockSpec((1, tn), lambda i, j, kk: (0, j)),
            ],
            out_specs=pl.BlockSpec((tm, tn), lambda i, j, kk: (i, j)),
            scratch_shapes=[pltpu.VMEM((tm, tn), jnp.float32)],
        ),
        compiler_params=pltpu.CompilerParams(
            dimension_semantics=("parallel", "parallel", "arbitrary"),
            vmem_limit_bytes=vmem,
        ),
    )(x, w, b2)
    return out[:m]


def lstm_recurrence(xproj_tbg, w_hh_t, *, t_chunk, out_dtype, b_chunks=1):
    """xproj_tbg: (T_pad, B_pad, 4*H_pad) carry dtype; w_hh_t: (H_pad, 4*H_pad)."""
    t_pad, b_pad, g4 = xproj_tbg.shape
    h_pad = w_hh_t.shape[0]
    assert g4 == 4 * h_pad and t_pad % t_chunk == 0 and b_pad % b_chunks == 0
    b_chunk = b_pad // b_chunks

    return pl.pallas_call(
        lstm_recurrence_kernel,
        out_shape=jax.ShapeDtypeStruct((t_pad, b_pad, h_pad), out_dtype),
        grid_spec=pltpu.PrefetchScalarGridSpec(
            num_scalar_prefetch=0,
            grid=(b_chunks, t_pad // t_chunk),
            in_specs=[
                pl.BlockSpec((t_chunk, b_chunk, g4), lambda bb, cc: (cc, bb, 0)),
                pl.BlockSpec((h_pad, g4), lambda bb, cc: (0, 0)),
            ],
            out_specs=pl.BlockSpec((t_chunk, b_chunk, h_pad),
                                   lambda bb, cc: (cc, bb, 0)),
            scratch_shapes=[
                pltpu.VMEM((b_chunk, h_pad), out_dtype),     # h state (carry dtype)
                pltpu.VMEM((b_chunk, h_pad), jnp.float32),   # c state (f32)
            ],
        ),
        compiler_params=pltpu.CompilerParams(
            dimension_semantics=("parallel", "arbitrary"),   # batch // time(seq.)
            vmem_limit_bytes=_vmem_limit_bytes(),
        ),
    )(xproj_tbg, w_hh_t)


# ----------------------------------------------------------------------------
# One-time parameter preparation: pad to 128-aligned dims, pre-cast to compute
# dtype, per-gate restack so gate slices stay lane-aligned, pre-add LSTM biases.
# ----------------------------------------------------------------------------
def prepare_params(params, compute_dtype=jnp.bfloat16):
    v, e = params["embedding"].shape
    h = params["lstm"][0]["w_hh"].shape[1]
    e_pad, h_pad, v_pad = _round_up(e, 128), _round_up(h, 128), _round_up(v, 128)

    def pad_gate_mat(w, in_dim, in_pad):
        # (4H, in_dim) -> (in_pad, 4*H_pad), each gate padded independently.
        w4 = jnp.pad(w.reshape(4, h, in_dim),
                     ((0, 0), (0, h_pad - h), (0, in_pad - in_dim)))
        return w4.reshape(4 * h_pad, in_pad).T.astype(compute_dtype)

    def pad_gate_vec(b):
        b4 = jnp.pad(b.reshape(4, h), ((0, 0), (0, h_pad - h)))
        return b4.reshape(4 * h_pad).astype(jnp.float32)

    layers = []
    for li, layer in enumerate(params["lstm"]):
        in_dim = e if li == 0 else h
        in_pad = e_pad if li == 0 else h_pad
        layers.append({
            "w_ih_t": pad_gate_mat(layer["w_ih"], in_dim, in_pad),
            "w_hh_t": pad_gate_mat(layer["w_hh"], h, h_pad),
            "bias": pad_gate_vec(layer["b_ih"] + layer["b_hh"]),
        })
    return {
        "table": jnp.pad(params["embedding"],
                         ((0, 0), (0, e_pad - e))).astype(compute_dtype),
        "layers": layers,
        "w_out_t": jnp.pad(params["w_out"].T,
                           ((0, h_pad - h), (0, v_pad - v))).astype(compute_dtype),
        "b_out": jnp.pad(params["b_out"], (0, v_pad - v)).astype(jnp.float32),
        "dims": (v, e, h, e_pad, h_pad, v_pad),
    }


def lstm_model_forward(ids, prep, *, t_chunk_target=16):
    """ids: (B, T) int32 -> logits (B, T, V)  (eval-mode: dropout = identity)."""
    b, t = ids.shape
    v, _, _, _, h_pad, _ = prep["dims"]
    carry_dtype = prep["table"].dtype

    b_pad = _round_up(b, 8)                      # sublane fill for the (B,H) state
    t_chunk = t_chunk_target if t >= t_chunk_target else t
    t_pad = _round_up(t, t_chunk)                # never degenerate to 1 step/chunk
    b_chunks = 2 if b_pad % 16 == 0 else 1       # v7x: split recurrence across TCs

    ids_p = ids.astype(jnp.int32)
    if (b_pad, t_pad) != (b, t):
        ids_p = jnp.pad(ids_p, ((0, b_pad - b), (0, t_pad - t)))
    # Time-major token order so the recurrence consumes (T, B, ...) blocks with
    # no per-layer activation transposes.
    ids_tm = jnp.transpose(ids_p, (1, 0)).reshape(-1)        # (T_pad*B_pad,)

    act = embedding_gather(ids_tm, prep["table"])            # (N, E_pad) carry dt
    # TODO(synk): embedding dropout not implemented (eval-mode identity).

    h_all = None
    for layer in prep["layers"]:
        # Hoisted input projection for all time steps (one GEMM, biases pre-added).
        xproj = tiled_linear(act, layer["w_ih_t"], layer["bias"],
                             out_dtype=carry_dtype)          # (N, 4*H_pad)
        h_all = lstm_recurrence(
            xproj.reshape(t_pad, b_pad, 4 * h_pad), layer["w_hh_t"],
            t_chunk=t_chunk, out_dtype=carry_dtype, b_chunks=b_chunks)
        act = h_all.reshape(t_pad * b_pad, h_pad)
        # TODO(synk): inter-layer LSTM dropout not implemented (eval-mode).

    # Single small transpose, in the carry dtype (bf16 on the perf path).
    h_bt = jnp.transpose(h_all[:t, :b], (1, 0, 2)).reshape(b * t, h_pad)
    logits = tiled_linear(h_bt, prep["w_out_t"], prep["b_out"],
                          out_dtype=jnp.float32)             # (B*T, V_pad)
    return logits[:, :v].reshape(b, t, v)


# ----------------------------------------------------------------------------
# Deterministic parameter init (mirrors PyTorch default init schemes)
# ----------------------------------------------------------------------------
def init_params(key, vocab_size, dim_embed, dim_hidden, num_blocks):
    keys = jax.random.split(key, 3 + 4 * num_blocks)
    ki = iter(keys)
    params = {"embedding": jax.random.normal(
        next(ki), (vocab_size, dim_embed), dtype=jnp.float32)}

    bound = 1.0 / math.sqrt(dim_hidden)
    layers = []
    for layer_idx in range(num_blocks):
        in_dim = dim_embed if layer_idx == 0 else dim_hidden
        layers.append({
            "w_ih": jax.random.uniform(
                next(ki), (4 * dim_hidden, in_dim), jnp.float32, -bound, bound),
            "w_hh": jax.random.uniform(
                next(ki), (4 * dim_hidden, dim_hidden), jnp.float32, -bound, bound),
            "b_ih": jax.random.uniform(
                next(ki), (4 * dim_hidden,), jnp.float32, -bound, bound),
            "b_hh": jax.random.uniform(
                next(ki), (4 * dim_hidden,), jnp.float32, -bound, bound),
        })
    params["lstm"] = layers
    params["w_out"] = jax.random.uniform(
        next(ki), (vocab_size, dim_hidden), jnp.float32, -bound, bound)
    params["b_out"] = jax.random.uniform(
        next(ki), (vocab_size,), jnp.float32, -bound, bound)
    return params


# ----------------------------------------------------------------------------
# Pure-JAX reference (PyTorch LSTM semantics, f32) for correctness check
# ----------------------------------------------------------------------------
def reference_forward(ids, params):
    x = params["embedding"][ids]                                # (B, T, E)
    b, t, _ = x.shape
    for layer in params["lstm"]:
        hd = layer["w_hh"].shape[1]

        def step(carry, x_t, w_ih=layer["w_ih"], w_hh=layer["w_hh"],
                 b_ih=layer["b_ih"], b_hh=layer["b_hh"], hd=hd):
            h, c = carry
            gates = x_t @ w_ih.T + b_ih + h @ w_hh.T + b_hh
            i = jax.nn.sigmoid(gates[:, 0 * hd:1 * hd])
            f = jax.nn.sigmoid(gates[:, 1 * hd:2 * hd])
            g = jnp.tanh(gates[:, 2 * hd:3 * hd])
            o = jax.nn.sigmoid(gates[:, 3 * hd:4 * hd])
            c_new = f * c + i * g
            h_new = o * jnp.tanh(c_new)
            return (h_new, c_new), h_new

        h0 = jnp.zeros((b, hd), jnp.float32)
        c0 = jnp.zeros((b, hd), jnp.float32)
        _, ys = jax.lax.scan(step, (h0, c0), jnp.transpose(x, (1, 0, 2)))
        x = jnp.transpose(ys, (1, 0, 2))
    return x @ params["w_out"].T + params["b_out"]


# ----------------------------------------------------------------------------
if __name__ == "__main__":
    VOCAB, EMBED, HIDDEN, LAYERS = 64, 32, 32, 2
    B, T = 2, 8

    key = jax.random.PRNGKey(0)
    k_param, k_ids = jax.random.split(key)
    params = init_params(k_param, VOCAB, EMBED, HIDDEN, LAYERS)
    ids = jax.random.randint(k_ids, (B, T), 0, VOCAB, dtype=jnp.int32)

    ref = reference_forward(ids, params)

    # Full-precision path: tight check of LSTM semantics (padding must be exact).
    prep_f32 = prepare_params(params, compute_dtype=jnp.float32)
    logits_f32 = jax.block_until_ready(lstm_model_forward(ids, prep_f32))
    assert logits_f32.shape == (B, T, VOCAB), logits_f32.shape
    err_f32 = float(jnp.max(jnp.abs(logits_f32 - ref)))
    assert err_f32 < 1e-3, f"f32 path max abs err {err_f32}"

    # bf16 MXU path (performance configuration): loose sanity check only —
    # bf16-carried activations/h accumulate error with T/H (documented).
    prep_bf16 = prepare_params(params, compute_dtype=jnp.bfloat16)
    logits_bf16 = jax.block_until_ready(lstm_model_forward(ids, prep_bf16))
    assert logits_bf16.shape == (B, T, VOCAB), logits_bf16.shape
    err_bf16 = float(jnp.max(jnp.abs(logits_bf16 - ref)))
    assert err_bf16 < 3e-1, f"bf16 path max abs err {err_bf16}"

    print("KERNEL_OK")
</pallas_src>

<mosaic_0001>
module attributes {stable_mosaic.version = 11 : i64} {
  func.func @embed_gather_kernel(%arg0: i32, %arg1: memref<64xi32, #tpu.memory_space<smem>>, %arg2: memref<64x128xf32, #tpu.memory_space<any>>, %arg3: memref<64x128xf32, #tpu.memory_space<vmem>>, %arg4: memref<16x!tpu.dma_semaphore, #tpu.memory_space<semaphore_mem>>) attributes {dimension_semantics = [#tpu.dimension_semantics<parallel>], iteration_bounds = array<i64: 1>, scalar_prefetch = 1 : i64, scratch_operands = 1 : i64, tpu.core_type = #tpu.core_type<tc>, window_params = [{}, {transform_indices = @transform_1, window_bounds = array<i64: 64, 128>}]} {
    %c64_i32 = arith.constant 64 : i32
    %0 = arith.muli %arg0, %c64_i32 : i32
    %c0_i32 = arith.constant 0 : i32
    %1 = arith.addi %0, %c0_i32 : i32
    %2 = arith.index_cast %1 : i32 to index
    %3 = memref.load %arg1[%2] : memref<64xi32, #tpu.memory_space<smem>>
    %c0_i32_0 = arith.constant 0 : i32
    %c0_i32_1 = arith.constant 0 : i32
    %c0_i32_2 = arith.constant 0 : i32
    %4 = tpu.memref_slice %arg2[%3, %c0_i32_2] : memref<64x128xf32, #tpu.memory_space<any>> -> memref<1x128xf32, #tpu.memory_space<any>>
    %5 = tpu.memref_squeeze %4 : memref<1x128xf32, #tpu.memory_space<any>> -> memref<128xf32, #tpu.memory_space<any>>
    %c0_i32_3 = arith.constant 0 : i32
    %6 = tpu.memref_slice %arg3[%c0_i32_0, %c0_i32_3] : memref<64x128xf32, #tpu.memory_space<vmem>> -> memref<1x128xf32, #tpu.memory_space<vmem>>
    %7 = tpu.memref_squeeze %6 : memref<1x128xf32, #tpu.memory_space<vmem>> -> memref<128xf32, #tpu.memory_space<vmem>>
    %8 = tpu.memref_slice %arg4[%c0_i32_1] : memref<16x!tpu.dma_semaphore, #tpu.memory_space<semaphore_mem>> -> memref<1x!tpu.dma_semaphore, #tpu.memory_space<semaphore_mem>>
    %9 = tpu.memref_squeeze %8 : memref<1x!tpu.dma_semaphore, #tpu.memory_space<semaphore_mem>> -> memref<!tpu.dma_semaphore, #tpu.memory_space<semaphore_mem>>
    tpu.enqueue_dma source(%5 : memref<128xf32, #tpu.memory_space<any>>) target(%7 : memref<128xf32, #tpu.memory_space<vmem>>) target_semaphore(%9 : memref<!tpu.dma_semaphore, #tpu.memory_space<semaphore_mem>>)
    %c1_i32 = arith.constant 1 : i32
    %10 = arith.addi %0, %c1_i32 : i32
    %11 = arith.index_cast %10 : i32 to index
    %12 = memref.load %arg1[%11] : memref<64xi32, #tpu.memory_space<smem>>
    %c1_i32_4 = arith.constant 1 : i32
    %c1_i32_5 = arith.constant 1 : i32
    %c0_i32_6 = arith.constant 0 : i32
    %13 = tpu.memref_slice %arg2[%12, %c0_i32_6] : memref<64x128xf32, #tpu.memory_space<any>> -> memref<1x128xf32, #tpu.memory_space<any>>
    %14 = tpu.memref_squeeze %13 : memref<1x128xf32, #tpu.memory_space<any>> -> memref<128xf32, #tpu.memory_space<any>>
    %c0_i32_7 = arith.constant 0 : i32
    %15 = tpu.memref_slice %arg3[%c1_i32_4, %c0_i32_7] : memref<64x128xf32, #tpu.memory_space<vmem>> -> memref<1x128xf32, #tpu.memory_space<vmem>>
    %16 = tpu.memref_squeeze %15 : memref<1x128xf32, #tpu.memory_space<vmem>> -> memref<128xf32, #tpu.memory_space<vmem>>
    %17 = tpu.memref_slice %arg4[%c1_i32_5] : memref<16x!tpu.dma_semaphore, #tpu.memory_space<semaphore_mem>> -> memref<1x!tpu.dma_semaphore, #tpu.memory_space<semaphore_mem>>
    %18 = tpu.memref_squeeze %17 : memref<1x!tpu.dma_semaphore, #tpu.memory_space<semaphore_mem>> -> memref<!tpu.dma_semaphore, #tpu.memory_space<semaphore_mem>>
    tpu.enqueue_dma source(%14 : memref<128xf32, #tpu.memory_space<any>>) target(%16 : memref<128xf32, #tpu.memory_space<vmem>>) target_semaphore(%18 : memref<!tpu.dma_semaphore, #tpu.memory_space<semaphore_mem>>)
    %c2_i32 = arith.constant 2 : i32
    %19 = arith.addi %0, %c2_i32 : i32
    %20 = arith.index_cast %19 : i32 to index
    %21 = memref.load %arg1[%20] : memref<64xi32, #tpu.memory_space<smem>>
    %c2_i32_8 = arith.constant 2 : i32
    %c2_i32_9 = arith.constant 2 : i32
    %c0_i32_10 = arith.constant 0 : i32
    %22 = tpu.memref_slice %arg2[%21, %c0_i32_10] : memref<64x128xf32, #tpu.memory_space<any>> -> memref<1x128xf32, #tpu.memory_space<any>>
    %23 = tpu.memref_squeeze %22 : memref<1x128xf32, #tpu.memory_space<any>> -> memref<128xf32, #tpu.memory_space<any>>
    %c0_i32_11 = arith.constant 0 : i32
    %24 = tpu.memref_slice %arg3[%c2_i32_8, %c0_i32_11] : memref<64x128xf32, #tpu.memory_space<vmem>> -> memref<1x128xf32, #tpu.memory_space<vmem>>
    %25 = tpu.memref_squeeze %24 : memref<1x128xf32, #tpu.memory_space<vmem>> -> memref<128xf32, #tpu.memory_space<vmem>>
    %26 = tpu.memref_slice %arg4[%c2_i32_9] : memref<16x!tpu.dma_semaphore, #tpu.memory_space<semaphore_mem>> -> memref<1x!tpu.dma_semaphore, #tpu.memory_space<semaphore_mem>>
    %27 = tpu.memref_squeeze %26 : memref<1x!tpu.dma_semaphore, #tpu.memory_space<semaphore_mem>> -> memref<!tpu.dma_semaphore, #tpu.memory_space<semaphore_mem>>
    tpu.enqueue_dma source(%23 : memref<128xf32, #tpu.memory_space<any>>) target(%25 : memref<128xf32, #tpu.memory_space<vmem>>) target_semaphore(%27 : memref<!tpu.dma_semaphore, #tpu.memory_space<semaphore_mem>>)
    %c3_i32 = arith.constant 3 : i32
    %28 = arith.addi %0, %c3_i32 : i32
    %29 = arith.index_cast %28 : i32 to index
    %30 = memref.load %arg1[%29] : memref<64xi32, #tpu.memory_space<smem>>
    %c3_i32_12 = arith.constant 3 : i32
    %c3_i32_13 = arith.constant 3 : i32
    %c0_i32_14 = arith.constant 0 : i32
    %31 = tpu.memref_slice %arg2[%30, %c0_i32_14] : memref<64x128xf32, #tpu.memory_space<any>> -> memref<1x128xf32, #tpu.memory_space<any>>
    %32 = tpu.memref_squeeze %31 : memref<1x128xf32, #tpu.memory_space<any>> -> memref<128xf32, #tpu.memory_space<any>>
    %c0_i32_15 = arith.constant 0 : i32
    %33 = tpu.memref_slice %arg3[%c3_i32_12, %c0_i32_15] : memref<64x128xf32, #tpu.memory_space<vmem>> -> memref<1x128xf32, #tpu.memory_space<vmem>>
    %34 = tpu.memref_squeeze %33 : memref<1x128xf32, #tpu.memory_space<vmem>> -> memref<128xf32, #tpu.memory_space<vmem>>
    %35 = tpu.memref_slice %arg4[%c3_i32_13] : memref<16x!tpu.dma_semaphore, #tpu.memory_space<semaphore_mem>> -> memref<1x!tpu.dma_semaphore, #tpu.memory_space<semaphore_mem>>
    %36 = tpu.memref_squeeze %35 : memref<1x!tpu.dma_semaphore, #tpu.memory_space<semaphore_mem>> -> memref<!tpu.dma_semaphore, #tpu.memory_space<semaphore_mem>>
    tpu.enqueue_dma source(%32 : memref<128xf32, #tpu.memory_space<any>>) target(%34 : memref<128xf32, #tpu.memory_space<vmem>>) target_semaphore(%36 : memref<!tpu.dma_semaphore, #tpu.memory_space<semaphore_mem>>)
    %c4_i32 = arith.constant 4 : i32
    %37 = arith.addi %0, %c4_i32 : i32
    %38 = arith.index_cast %37 : i32 to index
    %39 = memref.load %arg1[%38] : memref<64xi32, #tpu.memory_space<smem>>
    %c4_i32_16 = arith.constant 4 : i32
    %c4_i32_17 = arith.constant 4 : i32
    %c0_i32_18 = arith.constant 0 : i32
    %40 = tpu.memref_slice %arg2[%39, %c0_i32_18] : memref<64x128xf32, #tpu.memory_space<any>> -> memref<1x128xf32, #tpu.memory_space<any>>
    %41 = tpu.memref_squeeze %40 : memref<1x128xf32, #tpu.memory_space<any>> -> memref<128xf32, #tpu.memory_space<any>>
    %c0_i32_19 = arith.constant 0 : i32
    %42 = tpu.memref_slice %arg3[%c4_i32_16, %c0_i32_19] : memref<64x128xf32, #tpu.memory_space<vmem>> -> memref<1x128xf32, #tpu.memory_space<vmem>>
    %43 = tpu.memref_squeeze %42 : memref<1x128xf32, #tpu.memory_space<vmem>> -> memref<128xf32, #tpu.memory_space<vmem>>
    %44 = tpu.memref_slice %arg4[%c4_i32_17] : memref<16x!tpu.dma_semaphore, #tpu.memory_space<semaphore_mem>> -> memref<1x!tpu.dma_semaphore, #tpu.memory_space<semaphore_mem>>
    %45 = tpu.memref_squeeze %44 : memref<1x!tpu.dma_semaphore, #tpu.memory_space<semaphore_mem>> -> memref<!tpu.dma_semaphore, #tpu.memory_space<semaphore_mem>>
    tpu.enqueue_dma source(%41 : memref<128xf32, #tpu.memory_space<any>>) target(%43 : memref<128xf32, #tpu.memory_space<vmem>>) target_semaphore(%45 : memref<!tpu.dma_semaphore, #tpu.memory_space<semaphore_mem>>)
    %c5_i32 = arith.constant 5 : i32
    %46 = arith.addi %0, %c5_i32 : i32
    %47 = arith.index_cast %46 : i32 to index
    %48 = memref.load %arg1[%47] : memref<64xi32, #tpu.memory_space<smem>>
    %c5_i32_20 = arith.constant 5 : i32
    %c5_i32_21 = arith.constant 5 : i32
    %c0_i32_22 = arith.constant 0 : i32
    %49 = tpu.memref_slice %arg2[%48, %c0_i32_22] : memref<64x128xf32, #tpu.memory_space<any>> -> memref<1x128xf32, #tpu.memory_space<any>>
    %50 = tpu.memref_squeeze %49 : memref<1x128xf32, #tpu.memory_space<any>> -> memref<128xf32, #tpu.memory_space<any>>
    %c0_i32_23 = arith.constant 0 : i32
    %51 = tpu.memref_slice %arg3[%c5_i32_20, %c0_i32_23] : memref<64x128xf32, #tpu.memory_space<vmem>> -> memref<1x128xf32, #tpu.memory_space<vmem>>
    %52 = tpu.memref_squeeze %51 : memref<1x128xf32, #tpu.memory_space<vmem>> -> memref<128xf32, #tpu.memory_space<vmem>>
    %53 = tpu.memref_slice %arg4[%c5_i32_21] : memref<16x!tpu.dma_semaphore, #tpu.memory_space<semaphore_mem>> -> memref<1x!tpu.dma_semaphore, #tpu.memory_space<semaphore_mem>>
    %54 = tpu.memref_squeeze %53 : memref<1x!tpu.dma_semaphore, #tpu.memory_space<semaphore_mem>> -> memref<!tpu.dma_semaphore, #tpu.memory_space<semaphore_mem>>
    tpu.enqueue_dma source(%50 : memref<128xf32, #tpu.memory_space<any>>) target(%52 : memref<128xf32, #tpu.memory_space<vmem>>) target_semaphore(%54 : memref<!tpu.dma_semaphore, #tpu.memory_space<semaphore_mem>>)
    %c6_i32 = arith.constant 6 : i32
    %55 = arith.addi %0, %c6_i32 : i32
    %56 = arith.index_cast %55 : i32 to index
    %57 = memref.load %arg1[%56] : memref<64xi32, #tpu.memory_space<smem>>
    %c6_i32_24 = arith.constant 6 : i32
    %c6_i32_25 = arith.constant 6 : i32
    %c0_i32_26 = arith.constant 0 : i32
    %58 = tpu.memref_slice %arg2[%57, %c0_i32_26] : memref<64x128xf32, #tpu.memory_space<any>> -> memref<1x128xf32, #tpu.memory_space<any>>
    %59 = tpu.memref_squeeze %58 : memref<1x128xf32, #tpu.memory_space<any>> -> memref<128xf32, #tpu.memory_space<any>>
    %c0_i32_27 = arith.constant 0 : i32
    %60 = tpu.memref_slice %arg3[%c6_i32_24, %c0_i32_27] : memref<64x128xf32, #tpu.memory_space<vmem>> -> memref<1x128xf32, #tpu.memory_space<vmem>>
    %61 = tpu.memref_squeeze %60 : memref<1x128xf32, #tpu.memory_space<vmem>> -> memref<128xf32, #tpu.memory_space<vmem>>
    %62 = tpu.memref_slice %arg4[%c6_i32_25] : memref<16x!tpu.dma_semaphore, #tpu.memory_space<semaphore_mem>> -> memref<1x!tpu.dma_semaphore, #tpu.memory_space<semaphore_mem>>
    %63 = tpu.memref_squeeze %62 : memref<1x!tpu.dma_semaphore, #tpu.memory_space<semaphore_mem>> -> memref<!tpu.dma_semaphore, #tpu.memory_space<semaphore_mem>>
    tpu.enqueue_dma source(%59 : memref<128xf32, #tpu.memory_space<any>>) target(%61 : memref<128xf32, #tpu.memory_space<vmem>>) target_semaphore(%63 : memref<!tpu.dma_semaphore, #tpu.memory_space<semaphore_mem>>)
    %c7_i32 = arith.constant 7 : i32
    %64 = arith.addi %0, %c7_i32 : i32
    %65 = arith.index_cast %64 : i32 to index
    %66 = memref.load %arg1[%65] : memref<64xi32, #tpu.memory_space<smem>>
    %c7_i32_28 = arith.constant 7 : i32
    %c7_i32_29 = arith.constant 7 : i32
    %c0_i32_30 = arith.constant 0 : i32
    %67 = tpu.memref_slice %arg2[%66, %c0_i32_30] : memref<64x128xf32, #tpu.memory_space<any>> -> memref<1x128xf32, #tpu.memory_space<any>>
    %68 = tpu.memref_squeeze %67 : memref<1x128xf32, #tpu.memory_space<any>> -> memref<128xf32, #tpu.memory_space<any>>
    %c0_i32_31 = arith.constant 0 : i32
    %69 = tpu.memref_slice %arg3[%c7_i32_28, %c0_i32_31] : memref<64x128xf32, #tpu.memory_space<vmem>> -> memref<1x128xf32, #tpu.memory_space<vmem>>
    %70 = tpu.memref_squeeze %69 : memref<1x128xf32, #tpu.memory_space<vmem>> -> memref<128xf32, #tpu.memory_space<vmem>>
    %71 = tpu.memref_slice %arg4[%c7_i32_29] : memref<16x!tpu.dma_semaphore, #tpu.memory_space<semaphore_mem>> -> memref<1x!tpu.dma_semaphore, #tpu.memory_space<semaphore_mem>>
    %72 = tpu.memref_squeeze %71 : memref<1x!tpu.dma_semaphore, #tpu.memory_space<semaphore_mem>> -> memref<!tpu.dma_semaphore, #tpu.memory_space<semaphore_mem>>
    tpu.enqueue_dma source(%68 : memref<128xf32, #tpu.memory_space<any>>) target(%70 : memref<128xf32, #tpu.memory_space<vmem>>) target_semaphore(%72 : memref<!tpu.dma_semaphore, #tpu.memory_space<semaphore_mem>>)
    %c8_i32 = arith.constant 8 : i32
    %73 = arith.addi %0, %c8_i32 : i32
    %74 = arith.index_cast %73 : i32 to index
    %75 = memref.load %arg1[%74] : memref<64xi32, #tpu.memory_space<smem>>
    %c8_i32_32 = arith.constant 8 : i32
    %c8_i32_33 = arith.constant 8 : i32
    %c0_i32_34 = arith.constant 0 : i32
    %76 = tpu.memref_slice %arg2[%75, %c0_i32_34] : memref<64x128xf32, #tpu.memory_space<any>> -> memref<1x128xf32, #tpu.memory_space<any>>
    %77 = tpu.memref_squeeze %76 : memref<1x128xf32, #tpu.memory_space<any>> -> memref<128xf32, #tpu.memory_space<any>>
    %c0_i32_35 = arith.constant 0 : i32
    %78 = tpu.memref_slice %arg3[%c8_i32_32, %c0_i32_35] : memref<64x128xf32, #tpu.memory_space<vmem>> -> memref<1x128xf32, #tpu.memory_space<vmem>>
    %79 = tpu.memref_squeeze %78 : memref<1x128xf32, #tpu.memory_space<vmem>> -> memref<128xf32, #tpu.memory_space<vmem>>
    %80 = tpu.memref_slice %arg4[%c8_i32_33] : memref<16x!tpu.dma_semaphore, #tpu.memory_space<semaphore_mem>> -> memref<1x!tpu.dma_semaphore, #tpu.memory_space<semaphore_mem>>
    %81 = tpu.memref_squeeze %80 : memref<1x!tpu.dma_semaphore, #tpu.memory_space<semaphore_mem>> -> memref<!tpu.dma_semaphore, #tpu.memory_space<semaphore_mem>>
    tpu.enqueue_dma source(%77 : memref<128xf32, #tpu.memory_space<any>>) target(%79 : memref<128xf32, #tpu.memory_space<vmem>>) target_semaphore(%81 : memref<!tpu.dma_semaphore, #tpu.memory_space<semaphore_mem>>)
    %c9_i32 = arith.constant 9 : i32
    %82 = arith.addi %0, %c9_i32 : i32
    %83 = arith.index_cast %82 : i32 to index
    %84 = memref.load %arg1[%83] : memref<64xi32, #tpu.memory_space<smem>>
    %c9_i32_36 = arith.constant 9 : i32
    %c9_i32_37 = arith.constant 9 : i32
    %c0_i32_38 = arith.constant 0 : i32
    %85 = tpu.memref_slice %arg2[%84, %c0_i32_38] : memref<64x128xf32, #tpu.memory_space<any>> -> memref<1x128xf32, #tpu.memory_space<any>>
    %86 = tpu.memref_squeeze %85 : memref<1x128xf32, #tpu.memory_space<any>> -> memref<128xf32, #tpu.memory_space<any>>
    %c0_i32_39 = arith.constant 0 : i32
    %87 = tpu.memref_slice %arg3[%c9_i32_36, %c0_i32_39] : memref<64x128xf32, #tpu.memory_space<vmem>> -> memref<1x128xf32, #tpu.memory_space<vmem>>
    %88 = tpu.memref_squeeze %87 : memref<1x128xf32, #tpu.memory_space<vmem>> -> memref<128xf32, #tpu.memory_space<vmem>>
    %89 = tpu.memref_slice %arg4[%c9_i32_37] : memref<16x!tpu.dma_semaphore, #tpu.memory_space<semaphore_mem>> -> memref<1x!tpu.dma_semaphore, #tpu.memory_space<semaphore_mem>>
    %90 = tpu.memref_squeeze %89 : memref<1x!tpu.dma_semaphore, #tpu.memory_space<semaphore_mem>> -> memref<!tpu.dma_semaphore, #tpu.memory_space<semaphore_mem>>
    tpu.enqueue_dma source(%86 : memref<128xf32, #tpu.memory_space<any>>) target(%88 : memref<128xf32, #tpu.memory_space<vmem>>) target_semaphore(%90 : memref<!tpu.dma_semaphore, #tpu.memory_space<semaphore_mem>>)
    %c10_i32 = arith.constant 10 : i32
    %91 = arith.addi %0, %c10_i32 : i32
    %92 = arith.index_cast %91 : i32 to index
    %93 = memref.load %arg1[%92] : memref<64xi32, #tpu.memory_space<smem>>
    %c10_i32_40 = arith.constant 10 : i32
    %c10_i32_41 = arith.constant 10 : i32
    %c0_i32_42 = arith.constant 0 : i32
    %94 = tpu.memref_slice %arg2[%93, %c0_i32_42] : memref<64x128xf32, #tpu.memory_space<any>> -> memref<1x128xf32, #tpu.memory_space<any>>
    %95 = tpu.memref_squeeze %94 : memref<1x128xf32, #tpu.memory_space<any>> -> memref<128xf32, #tpu.memory_space<any>>
    %c0_i32_43 = arith.constant 0 : i32
    %96 = tpu.memref_slice %arg3[%c10_i32_40, %c0_i32_43] : memref<64x128xf32, #tpu.memory_space<vmem>> -> memref<1x128xf32, #tpu.memory_space<vmem>>
    %97 = tpu.memref_squeeze %96 : memref<1x128xf32, #tpu.memory_space<vmem>> -> memref<128xf32, #tpu.memory_space<vmem>>
    %98 = tpu.memref_slice %arg4[%c10_i32_41] : memref<16x!tpu.dma_semaphore, #tpu.memory_space<semaphore_mem>> -> memref<1x!tpu.dma_semaphore, #tpu.memory_space<semaphore_mem>>
    %99 = tpu.memref_squeeze %98 : memref<1x!tpu.dma_semaphore, #tpu.memory_space<semaphore_mem>> -> memref<!tpu.dma_semaphore, #tpu.memory_space<semaphore_mem>>
    tpu.enqueue_dma source(%95 : memref<128xf32, #tpu.memory_space<any>>) target(%97 : memref<128xf32, #tpu.memory_space<vmem>>) target_semaphore(%99 : memref<!tpu.dma_semaphore, #tpu.memory_space<semaphore_mem>>)
    %c11_i32 = arith.constant 11 : i32
    %100 = arith.addi %0, %c11_i32 : i32
    %101 = arith.index_cast %100 : i32 to index
    %102 = memref.load %arg1[%101] : memref<64xi32, #tpu.memory_space<smem>>
    %c11_i32_44 = arith.constant 11 : i32
    %c11_i32_45 = arith.constant 11 : i32
    %c0_i32_46 = arith.constant 0 : i32
    %103 = tpu.memref_slice %arg2[%102, %c0_i32_46] : memref<64x128xf32, #tpu.memory_space<any>> -> memref<1x128xf32, #tpu.memory_space<any>>
    %104 = tpu.memref_squeeze %103 : memref<1x128xf32, #tpu.memory_space<any>> -> memref<128xf32, #tpu.memory_space<any>>
    %c0_i32_47 = arith.constant 0 : i32
    %105 = tpu.memref_slice %arg3[%c11_i32_44, %c0_i32_47] : memref<64x128xf32, #tpu.memory_space<vmem>> -> memref<1x128xf32, #tpu.memory_space<vmem>>
    %106 = tpu.memref_squeeze %105 : memref<1x128xf32, #tpu.memory_space<vmem>> -> memref<128xf32, #tpu.memory_space<vmem>>
    %107 = tpu.memref_slice %arg4[%c11_i32_45] : memref<16x!tpu.dma_semaphore, #tpu.memory_space<semaphore_mem>> -> memref<1x!tpu.dma_semaphore, #tpu.memory_space<semaphore_mem>>
    %108 = tpu.memref_squeeze %107 : memref<1x!tpu.dma_semaphore, #tpu.memory_space<semaphore_mem>> -> memref<!tpu.dma_semaphore, #tpu.memory_space<semaphore_mem>>
    tpu.enqueue_dma source(%104 : memref<128xf32, #tpu.memory_space<any>>) target(%106 : memref<128xf32, #tpu.memory_space<vmem>>) target_semaphore(%108 : memref<!tpu.dma_semaphore, #tpu.memory_space<semaphore_mem>>)
    %c12_i32 = arith.constant 12 : i32
    %109 = arith.addi %0, %c12_i32 : i32
    %110 = arith.index_cast %109 : i32 to index
    %111 = memref.load %arg1[%110] : memref<64xi32, #tpu.memory_space<smem>>
    %c12_i32_48 = arith.constant 12 : i32
    %c12_i32_49 = arith.constant 12 : i32
    %c0_i32_50 = arith.constant 0 : i32
    %112 = tpu.memref_slice %arg2[%111, %c0_i32_50] : memref<64x128xf32, #tpu.memory_space<any>> -> memref<1x128xf32, #tpu.memory_space<any>>
    %113 = tpu.memref_squeeze %112 : memref<1x128xf32, #tpu.memory_space<any>> -> memref<128xf32, #tpu.memory_space<any>>
    %c0_i32_51 = arith.constant 0 : i32
    %114 = tpu.memref_slice %arg3[%c12_i32_48, %c0_i32_51] : memref<64x128xf32, #tpu.memory_space<vmem>> -> memref<1x128xf32, #tpu.memory_space<vmem>>
    %115 = tpu.memref_squeeze %114 : memref<1x128xf32, #tpu.memory_space<vmem>> -> memref<128xf32, #tpu.memory_space<vmem>>
    %116 = tpu.memref_slice %arg4[%c12_i32_49] : memref<16x!tpu.dma_semaphore, #tpu.memory_space<semaphore_mem>> -> memref<1x!tpu.dma_semaphore, #tpu.memory_space<semaphore_mem>>
    %117 = tpu.memref_squeeze %116 : memref<1x!tpu.dma_semaphore, #tpu.memory_space<semaphore_mem>> -> memref<!tpu.dma_semaphore, #tpu.memory_space<semaphore_mem>>
    tpu.enqueue_dma source(%113 : memref<128xf32, #tpu.memory_space<any>>) target(%115 : memref<128xf32, #tpu.memory_space<vmem>>) target_semaphore(%117 : memref<!tpu.dma_semaphore, #tpu.memory_space<semaphore_mem>>)
    %c13_i32 = arith.constant 13 : i32
    %118 = arith.addi %0, %c13_i32 : i32
    %119 = arith.index_cast %118 : i32 to index
    %120 = memref.load %arg1[%119] : memref<64xi32, #tpu.memory_space<smem>>
    %c13_i32_52 = arith.constant 13 : i32
    %c13_i32_53 = arith.constant 13 : i32
    %c0_i32_54 = arith.constant 0 : i32
    %121 = tpu.memref_slice %arg2[%120, %c0_i32_54] : memref<64x128xf32, #tpu.memory_space<any>> -> memref<1x128xf32, #tpu.memory_space<any>>
    %122 = tpu.memref_squeeze %121 : memref<1x128xf32, #tpu.memory_space<any>> -> memref<128xf32, #tpu.memory_space<any>>
    %c0_i32_55 = arith.constant 0 : i32
    %123 = tpu.memref_slice %arg3[%c13_i32_52, %c0_i32_55] : memref<64x128xf32, #tpu.memory_space<vmem>> -> memref<1x128xf32, #tpu.memory_space<vmem>>
    %124 = tpu.memref_squeeze %123 : memref<1x128xf32, #tpu.memory_space<vmem>> -> memref<128xf32, #tpu.memory_space<vmem>>
    %125 = tpu.memref_slice %arg4[%c13_i32_53] : memref<16x!tpu.dma_semaphore, #tpu.memory_space<semaphore_mem>> -> memref<1x!tpu.dma_semaphore, #tpu.memory_space<semaphore_mem>>
    %126 = tpu.memref_squeeze %125 : memref<1x!tpu.dma_semaphore, #tpu.memory_space<semaphore_mem>> -> memref<!tpu.dma_semaphore, #tpu.memory_space<semaphore_mem>>
    tpu.enqueue_dma source(%122 : memref<128xf32, #tpu.memory_space<any>>) target(%124 : memref<128xf32, #tpu.memory_space<vmem>>) target_semaphore(%126 : memref<!tpu.dma_semaphore, #tpu.memory_space<semaphore_mem>>)
    %c14_i32 = arith.constant 14 : i32
    %127 = arith.addi %0, %c14_i32 : i32
    %128 = arith.index_cast %127 : i32 to index
    %129 = memref.load %arg1[%128] : memref<64xi32, #tpu.memory_space<smem>>
    %c14_i32_56 = arith.constant 14 : i32
    %c14_i32_57 = arith.constant 14 : i32
    %c0_i32_58 = arith.constant 0 : i32
    %130 = tpu.memref_slice %arg2[%129, %c0_i32_58] : memref<64x128xf32, #tpu.memory_space<any>> -> memref<1x128xf32, #tpu.memory_space<any>>
    %131 = tpu.memref_squeeze %130 : memref<1x128xf32, #tpu.memory_space<any>> -> memref<128xf32, #tpu.memory_space<any>>
    %c0_i32_59 = arith.constant 0 : i32
    %132 = tpu.memref_slice %arg3[%c14_i32_56, %c0_i32_59] : memref<64x128xf32, #tpu.memory_space<vmem>> -> memref<1x128xf32, #tpu.memory_space<vmem>>
    %133 = tpu.memref_squeeze %132 : memref<1x128xf32, #tpu.memory_space<vmem>> -> memref<128xf32, #tpu.memory_space<vmem>>
    %134 = tpu.memref_slice %arg4[%c14_i32_57] : memref<16x!tpu.dma_semaphore, #tpu.memory_space<semaphore_mem>> -> memref<1x!tpu.dma_semaphore, #tpu.memory_space<semaphore_mem>>
    %135 = tpu.memref_squeeze %134 : memref<1x!tpu.dma_semaphore, #tpu.memory_space<semaphore_mem>> -> memref<!tpu.dma_semaphore, #tpu.memory_space<semaphore_mem>>
    tpu.enqueue_dma source(%131 : memref<128xf32, #tpu.memory_space<any>>) target(%133 : memref<128xf32, #tpu.memory_space<vmem>>) target_semaphore(%135 : memref<!tpu.dma_semaphore, #tpu.memory_space<semaphore_mem>>)
    %c15_i32 = arith.constant 15 : i32
    %136 = arith.addi %0, %c15_i32 : i32
    %137 = arith.index_cast %136 : i32 to index
    %138 = memref.load %arg1[%137] : memref<64xi32, #tpu.memory_space<smem>>
    %c15_i32_60 = arith.constant 15 : i32
    %c15_i32_61 = arith.constant 15 : i32
    %c0_i32_62 = arith.constant 0 : i32
    %139 = tpu.memref_slice %arg2[%138, %c0_i32_62] : memref<64x128xf32, #tpu.memory_space<any>> -> memref<1x128xf32, #tpu.memory_space<any>>
    %140 = tpu.memref_squeeze %139 : memref<1x128xf32, #tpu.memory_space<any>> -> memref<128xf32, #tpu.memory_space<any>>
    %c0_i32_63 = arith.constant 0 : i32
    %141 = tpu.memref_slice %arg3[%c15_i32_60, %c0_i32_63] : memref<64x128xf32, #tpu.memory_space<vmem>> -> memref<1x128xf32, #tpu.memory_space<vmem>>
    %142 = tpu.memref_squeeze %141 : memref<1x128xf32, #tpu.memory_space<vmem>> -> memref<128xf32, #tpu.memory_space<vmem>>
    %143 = tpu.memref_slice %arg4[%c15_i32_61] : memref<16x!tpu.dma_semaphore, #tpu.memory_space<semaphore_mem>> -> memref<1x!tpu.dma_semaphore, #tpu.memory_space<semaphore_mem>>
    %144 = tpu.memref_squeeze %143 : memref<1x!tpu.dma_semaphore, #tpu.memory_space<semaphore_mem>> -> memref<!tpu.dma_semaphore, #tpu.memory_space<semaphore_mem>>
    tpu.enqueue_dma source(%140 : memref<128xf32, #tpu.memory_space<any>>) target(%142 : memref<128xf32, #tpu.memory_space<vmem>>) target_semaphore(%144 : memref<!tpu.dma_semaphore, #tpu.memory_space<semaphore_mem>>)
    %c16_i32 = arith.constant 16 : i32
    %145 = arith.addi %0, %c16_i32 : i32
    %146 = arith.index_cast %145 : i32 to index
    %147 = memref.load %arg1[%146] : memref<64xi32, #tpu.memory_space<smem>>
    %c0_i32_64 = arith.constant 0 : i32
    %c0_i32_65 = arith.constant 0 : i32
    %c0_i32_66 = arith.constant 0 : i32
    %148 = tpu.memref_slice %arg2[%3, %c0_i32_66] : memref<64x128xf32, #tpu.memory_space<any>> -> memref<1x128xf32, #tpu.memory_space<any>>
    %149 = tpu.memref_squeeze %148 : memref<1x128xf32, #tpu.memory_space<any>> -> memref<128xf32, #tpu.memory_space<any>>
    %c0_i32_67 = arith.constant 0 : i32
    %150 = tpu.memref_slice %arg3[%c0_i32_64, %c0_i32_67] : memref<64x128xf32, #tpu.memory_space<vmem>> -> memref<1x128xf32, #tpu.memory_space<vmem>>
    %151 = tpu.memref_squeeze %150 : memref<1x128xf32, #tpu.memory_space<vmem>> -> memref<128xf32, #tpu.memory_space<vmem>>
    %152 = tpu.memref_slice %arg4[%c0_i32_65] : memref<16x!tpu.dma_semaphore, #tpu.memory_space<semaphore_mem>> -> memref<1x!tpu.dma_semaphore, #tpu.memory_space<semaphore_mem>>
    %153 = tpu.memref_squeeze %152 : memref<1x!tpu.dma_semaphore, #tpu.memory_space<semaphore_mem>> -> memref<!tpu.dma_semaphore, #tpu.memory_space<semaphore_mem>>
    tpu.wait_dma2 semaphore(%153 : memref<!tpu.dma_semaphore, #tpu.memory_space<semaphore_mem>>) src(%149 : memref<128xf32, #tpu.memory_space<any>>) dst(%151 : memref<128xf32, #tpu.memory_space<vmem>>)
    %c16_i32_68 = arith.constant 16 : i32
    %c0_i32_69 = arith.constant 0 : i32
    %c0_i32_70 = arith.constant 0 : i32
    %154 = tpu.memref_slice %arg2[%147, %c0_i32_70] : memref<64x128xf32, #tpu.memory_space<any>> -> memref<1x128xf32, #tpu.memory_space<any>>
    %155 = tpu.memref_squeeze %154 : memref<1x128xf32, #tpu.memory_space<any>> -> memref<128xf32, #tpu.memory_space<any>>
    %c0_i32_71 = arith.constant 0 : i32
    %156 = tpu.memref_slice %arg3[%c16_i32_68, %c0_i32_71] : memref<64x128xf32, #tpu.memory_space<vmem>> -> memref<1x128xf32, #tpu.memory_space<vmem>>
    %157 = tpu.memref_squeeze %156 : memref<1x128xf32, #tpu.memory_space<vmem>> -> memref<128xf32, #tpu.memory_space<vmem>>
    %158 = tpu.memref_slice %arg4[%c0_i32_69] : memref<16x!tpu.dma_semaphore, #tpu.memory_space<semaphore_mem>> -> memref<1x!tpu.dma_semaphore, #tpu.memory_space<semaphore_mem>>
    %159 = tpu.memref_squeeze %158 : memref<1x!tpu.dma_semaphore, #tpu.memory_space<semaphore_mem>> -> memref<!tpu.dma_semaphore, #tpu.memory_space<semaphore_mem>>
    tpu.enqueue_dma source(%155 : memref<128xf32, #tpu.memory_space<any>>) target(%157 : memref<128xf32, #tpu.memory_space<vmem>>) target_semaphore(%159 : memref<!tpu.dma_semaphore, #tpu.memory_space<semaphore_mem>>)
    %c17_i32 = arith.constant 17 : i32
    %160 = arith.addi %0, %c17_i32 : i32
    %161 = arith.index_cast %160 : i32 to index
    %162 = memref.load %arg1[%161] : memref<64xi32, #tpu.memory_space<smem>>
    %c1_i32_72 = arith.constant 1 : i32
    %c1_i32_73 = arith.constant 1 : i32
    %c0_i32_74 = arith.constant 0 : i32
    %163 = tpu.memref_slice %arg2[%12, %c0_i32_74] : memref<64x128xf32, #tpu.memory_space<any>> -> memref<1x128xf32, #tpu.memory_space<any>>
    %164 = tpu.memref_squeeze %163 : memref<1x128xf32, #tpu.memory_space<any>> -> memref<128xf32, #tpu.memory_space<any>>
    %c0_i32_75 = arith.constant 0 : i32
    %165 = tpu.memref_slice %arg3[%c1_i32_72, %c0_i32_75] : memref<64x128xf32, #tpu.memory_space<vmem>> -> memref<1x128xf32, #tpu.memory_space<vmem>>
    %166 = tpu.memref_squeeze %165 : memref<1x128xf32, #tpu.memory_space<vmem>> -> memref<128xf32, #tpu.memory_space<vmem>>
    %167 = tpu.memref_slice %arg4[%c1_i32_73] : memref<16x!tpu.dma_semaphore, #tpu.memory_space<semaphore_mem>> -> memref<1x!tpu.dma_semaphore, #tpu.memory_space<semaphore_mem>>
    %168 = tpu.memref_squeeze %167 : memref<1x!tpu.dma_semaphore, #tpu.memory_space<semaphore_mem>> -> memref<!tpu.dma_semaphore, #tpu.memory_space<semaphore_mem>>
    tpu.wait_dma2 semaphore(%168 : memref<!tpu.dma_semaphore, #tpu.memory_space<semaphore_mem>>) src(%164 : memref<128xf32, #tpu.memory_space<any>>) dst(%166 : memref<128xf32, #tpu.memory_space<vmem>>)
    %c17_i32_76 = arith.constant 17 : i32
    %c1_i32_77 = arith.constant 1 : i32
    %c0_i32_78 = arith.constant 0 : i32
    %169 = tpu.memref_slice %arg2[%162, %c0_i32_78] : memref<64x128xf32, #tpu.memory_space<any>> -> memref<1x128xf32, #tpu.memory_space<any>>
    %170 = tpu.memref_squeeze %169 : memref<1x128xf32, #tpu.memory_space<any>> -> memref<128xf32, #tpu.memory_space<any>>
    %c0_i32_79 = arith.constant 0 : i32
    %171 = tpu.memref_slice %arg3[%c17_i32_76, %c0_i32_79] : memref<64x128xf32, #tpu.memory_space<vmem>> -> memref<1x128xf32, #tpu.memory_space<vmem>>
    %172 = tpu.memref_squeeze %171 : memref<1x128xf32, #tpu.memory_space<vmem>> -> memref<128xf32, #tpu.memory_space<vmem>>
    %173 = tpu.memref_slice %arg4[%c1_i32_77] : memref<16x!tpu.dma_semaphore, #tpu.memory_space<semaphore_mem>> -> memref<1x!tpu.dma_semaphore, #tpu.memory_space<semaphore_mem>>
    %174 = tpu.memref_squeeze %173 : memref<1x!tpu.dma_semaphore, #tpu.memory_space<semaphore_mem>> -> memref<!tpu.dma_semaphore, #tpu.memory_space<semaphore_mem>>
    tpu.enqueue_dma source(%170 : memref<128xf32, #tpu.memory_space<any>>) target(%172 : memref<128xf32, #tpu.memory_space<vmem>>) target_semaphore(%174 : memref<!tpu.dma_semaphore, #tpu.memory_space<semaphore_mem>>)
    %c18_i32 = arith.constant 18 : i32
    %175 = arith.addi %0, %c18_i32 : i32
    %176 = arith.index_cast %175 : i32 to index
    %177 = memref.load %arg1[%176] : memref<64xi32, #tpu.memory_space<smem>>
    %c2_i32_80 = arith.constant 2 : i32
    %c2_i32_81 = arith.constant 2 : i32
    %c0_i32_82 = arith.constant 0 : i32
    %178 = tpu.memref_slice %arg2[%21, %c0_i32_82] : memref<64x128xf32, #tpu.memory_space<any>> -> memref<1x128xf32, #tpu.memory_space<any>>
    %179 = tpu.memref_squeeze %178 : memref<1x128xf32, #tpu.memory_space<any>> -> memref<128xf32, #tpu.memory_space<any>>
    %c0_i32_83 = arith.constant 0 : i32
    %180 = tpu.memref_slice %arg3[%c2_i32_80, %c0_i32_83] : memref<64x128xf32, #tpu.memory_space<vmem>> -> memref<1x128xf32, #tpu.memory_space<vmem>>
    %181 = tpu.memref_squeeze %180 : memref<1x128xf32, #tpu.memory_space<vmem>> -> memref<128xf32, #tpu.memory_space<vmem>>
    %182 = tpu.memref_slice %arg4[%c2_i32_81] : memref<16x!tpu.dma_semaphore, #tpu.memory_space<semaphore_mem>> -> memref<1x!tpu.dma_semaphore, #tpu.memory_space<semaphore_mem>>
    %183 = tpu.memref_squeeze %182 : memref<1x!tpu.dma_semaphore, #tpu.memory_space<semaphore_mem>> -> memref<!tpu.dma_semaphore, #tpu.memory_space<semaphore_mem>>
    tpu.wait_dma2 semaphore(%183 : memref<!tpu.dma_semaphore, #tpu.memory_space<semaphore_mem>>) src(%179 : memref<128xf32, #tpu.memory_space<any>>) dst(%181 : memref<128xf32, #tpu.memory_space<vmem>>)
    %c18_i32_84 = arith.constant 18 : i32
    %c2_i32_85 = arith.constant 2 : i32
    %c0_i32_86 = arith.constant 0 : i32
    %184 = tpu.memref_slice %arg2[%177, %c0_i32_86] : memref<64x128xf32, #tpu.memory_space<any>> -> memref<1x128xf32, #tpu.memory_space<any>>
    %185 = tpu.memref_squeeze %184 : memref<1x128xf32, #tpu.memory_space<any>> -> memref<128xf32, #tpu.memory_space<any>>
    %c0_i32_87 = arith.constant 0 : i32
    %186 = tpu.memref_slice %arg3[%c18_i32_84, %c0_i32_87] : memref<64x128xf32, #tpu.memory_space<vmem>> -> memref<1x128xf32, #tpu.memory_space<vmem>>
    %187 = tpu.memref_squeeze %186 : memref<1x128xf32, #tpu.memory_space<vmem>> -> memref<128xf32, #tpu.memory_space<vmem>>
    %188 = tpu.memref_slice %arg4[%c2_i32_85] : memref<16x!tpu.dma_semaphore, #tpu.memory_space<semaphore_mem>> -> memref<1x!tpu.dma_semaphore, #tpu.memory_space<semaphore_mem>>
    %189 = tpu.memref_squeeze %188 : memref<1x!tpu.dma_semaphore, #tpu.memory_space<semaphore_mem>> -> memref<!tpu.dma_semaphore, #tpu.memory_space<semaphore_mem>>
    tpu.enqueue_dma source(%185 : memref<128xf32, #tpu.memory_space<any>>) target(%187 : memref<128xf32, #tpu.memory_space<vmem>>) target_semaphore(%189 : memref<!tpu.dma_semaphore, #tpu.memory_space<semaphore_mem>>)
    %c19_i32 = arith.constant 19 : i32
    %190 = arith.addi %0, %c19_i32 : i32
    %191 = arith.index_cast %190 : i32 to index
    %192 = memref.load %arg1[%191] : memref<64xi32, #tpu.memory_space<smem>>
    %c3_i32_88 = arith.constant 3 : i32
    %c3_i32_89 = arith.constant 3 : i32
    %c0_i32_90 = arith.constant 0 : i32
    %193 = tpu.memref_slice %arg2[%30, %c0_i32_90] : memref<64x128xf32, #tpu.memory_space<any>> -> memref<1x128xf32, #tpu.memory_space<any>>
    %194 = tpu.memref_squeeze %193 : memref<1x128xf32, #tpu.memory_space<any>> -> memref<128xf32, #tpu.memory_space<any>>
    %c0_i32_91 = arith.constant 0 : i32
    %195 = tpu.memref_slice %arg3[%c3_i32_88, %c0_i32_91] : memref<64x128xf32, #tpu.memory_space<vmem>> -> memref<1x128xf32, #tpu.memory_space<vmem>>
    %196 = tpu.memref_squeeze %195 : memref<1x128xf32, #tpu.memory_space<vmem>> -> memref<128xf32, #tpu.memory_space<vmem>>
    %197 = tpu.memref_slice %arg4[%c3_i32_89] : memref<16x!tpu.dma_semaphore, #tpu.memory_space<semaphore_mem>> -> memref<1x!tpu.dma_semaphore, #tpu.memory_space<semaphore_mem>>
    %198 = tpu.memref_squeeze %197 : memref<1x!tpu.dma_semaphore, #tpu.memory_space<semaphore_mem>> -> memref<!tpu.dma_semaphore, #tpu.memory_space<semaphore_mem>>
    tpu.wait_dma2 semaphore(%198 : memref<!tpu.dma_semaphore, #tpu.memory_space<semaphore_mem>>) src(%194 : memref<128xf32, #tpu.memory_space<any>>) dst(%196 : memref<128xf32, #tpu.memory_space<vmem>>)
    %c19_i32_92 = arith.constant 19 : i32
    %c3_i32_93 = arith.constant 3 : i32
    %c0_i32_94 = arith.constant 0 : i32
    %199 = tpu.memref_slice %arg2[%192, %c0_i32_94] : memref<64x128xf32, #tpu.memory_space<any>> -> memref<1x128xf32, #tpu.memory_space<any>>
    %200 = tpu.memref_squeeze %199 : memref<1x128xf32, #tpu.memory_space<any>> -> memref<128xf32, #tpu.memory_space<any>>
    %c0_i32_95 = arith.constant 0 : i32
    %201 = tpu.memref_slice %arg3[%c19_i32_92, %c0_i32_95] : memref<64x128xf32, #tpu.memory_space<vmem>> -> memref<1x128xf32, #tpu.memory_space<vmem>>
    %202 = tpu.memref_squeeze %201 : memref<1x128xf32, #tpu.memory_space<vmem>> -> memref<128xf32, #tpu.memory_space<vmem>>
    %203 = tpu.memref_slice %arg4[%c3_i32_93] : memref<16x!tpu.dma_semaphore, #tpu.memory_space<semaphore_mem>> -> memref<1x!tpu.dma_semaphore, #tpu.memory_space<semaphore_mem>>
    %204 = tpu.memref_squeeze %203 : memref<1x!tpu.dma_semaphore, #tpu.memory_space<semaphore_mem>> -> memref<!tpu.dma_semaphore, #tpu.memory_space<semaphore_mem>>
    tpu.enqueue_dma source(%200 : memref<128xf32, #tpu.memory_space<any>>) target(%202 : memref<128xf32, #tpu.memory_space<vmem>>) target_semaphore(%204 : memref<!tpu.dma_semaphore, #tpu.memory_space<semaphore_mem>>)
    %c20_i32 = arith.constant 20 : i32
    %205 = arith.addi %0, %c20_i32 : i32
    %206 = arith.index_cast %205 : i32 to index
    %207 = memref.load %arg1[%206] : memref<64xi32, #tpu.memory_space<smem>>
    %c4_i32_96 = arith.constant 4 : i32
    %c4_i32_97 = arith.constant 4 : i32
    %c0_i32_98 = arith.constant 0 : i32
    %208 = tpu.memref_slice %arg2[%39, %c0_i32_98] : memref<64x128xf32, #tpu.memory_space<any>> -> memref<1x128xf32, #tpu.memory_space<any>>
    %209 = tpu.memref_squeeze %208 : memref<1x128xf32, #tpu.memory_space<any>> -> memref<128xf32, #tpu.memory_space<any>>
    %c0_i32_99 = arith.constant 0 : i32
    %210 = tpu.memref_slice %arg3[%c4_i32_96, %c0_i32_99] : memref<64x128xf32, #tpu.memory_space<vmem>> -> memref<1x128xf32, #tpu.memory_space<vmem>>
    %211 = tpu.memref_squeeze %210 : memref<1x128xf32, #tpu.memory_space<vmem>> -> memref<128xf32, #tpu.memory_space<vmem>>
    %212 = tpu.memref_slice %arg4[%c4_i32_97] : memref<16x!tpu.dma_semaphore, #tpu.memory_space<semaphore_mem>> -> memref<1x!tpu.dma_semaphore, #tpu.memory_space<semaphore_mem>>
    %213 = tpu.memref_squeeze %212 : memref<1x!tpu.dma_semaphore, #tpu.memory_space<semaphore_mem>> -> memref<!tpu.dma_semaphore, #tpu.memory_space<semaphore_mem>>
    tpu.wait_dma2 semaphore(%213 : memref<!tpu.dma_semaphore, #tpu.memory_space<semaphore_mem>>) src(%209 : memref<128xf32, #tpu.memory_space<any>>) dst(%211 : memref<128xf32, #tpu.memory_space<vmem>>)
    %c20_i32_100 = arith.constant 20 : i32
    %c4_i32_101 = arith.constant 4 : i32
    %c0_i32_102 = arith.constant 0 : i32
    %214 = tpu.memref_slice %arg2[%207, %c0_i32_102] : memref<64x128xf32, #tpu.memory_space<any>> -> memref<1x128xf32, #tpu.memory_space<any>>
    %215 = tpu.memref_squeeze %214 : memref<1x128xf32, #tpu.memory_space<any>> -> memref<128xf32, #tpu.memory_space<any>>
    %c0_i32_103 = arith.constant 0 : i32
    %216 = tpu.memref_slice %arg3[%c20_i32_100, %c0_i32_103] : memref<64x128xf32, #tpu.memory_space<vmem>> -> memref<1x128xf32, #tpu.memory_space<vmem>>
    %217 = tpu.memref_squeeze %216 : memref<1x128xf32, #tpu.memory_space<vmem>> -> memref<128xf32, #tpu.memory_space<vmem>>
    %218 = tpu.memref_slice %arg4[%c4_i32_101] : memref<16x!tpu.dma_semaphore, #tpu.memory_space<semaphore_mem>> -> memref<1x!tpu.dma_semaphore, #tpu.memory_space<semaphore_mem>>
    %219 = tpu.memref_squeeze %218 : memref<1x!tpu.dma_semaphore, #tpu.memory_space<semaphore_mem>> -> memref<!tpu.dma_semaphore, #tpu.memory_space<semaphore_mem>>
    tpu.enqueue_dma source(%215 : memref<128xf32, #tpu.memory_space<any>>) target(%217 : memref<128xf32, #tpu.memory_space<vmem>>) target_semaphore(%219 : memref<!tpu.dma_semaphore, #tpu.memory_space<semaphore_mem>>)
    %c21_i32 = arith.constant 21 : i32
    %220 = arith.addi %0, %c21_i32 : i32
    %221 = arith.index_cast %220 : i32 to index
    %222 = memref.load %arg1[%221] : memref<64xi32, #tpu.memory_space<smem>>
    %c5_i32_104 = arith.constant 5 : i32
    %c5_i32_105 = arith.constant 5 : i32
    %c0_i32_106 = arith.constant 0 : i32
    %223 = tpu.memref_slice %arg2[%48, %c0_i32_106] : memref<64x128xf32, #tpu.memory_space<any>> -> memref<1x128xf32, #tpu.memory_space<any>>
    %224 = tpu.memref_squeeze %223 : memref<1x128xf32, #tpu.memory_space<any>> -> memref<128xf32, #tpu.memory_space<any>>
    %c0_i32_107 = arith.constant 0 : i32
    %225 = tpu.memref_slice %arg3[%c5_i32_104, %c0_i32_107] : memref<64x128xf32, #tpu.memory_space<vmem>> -> memref<1x128xf32, #tpu.memory_space<vmem>>
    %226 = tpu.memref_squeeze %225 : memref<1x128xf32, #tpu.memory_space<vmem>> -> memref<128xf32, #tpu.memory_space<vmem>>
    %227 = tpu.memref_slice %arg4[%c5_i32_105] : memref<16x!tpu.dma_semaphore, #tpu.memory_space<semaphore_mem>> -> memref<1x!tpu.dma_semaphore, #tpu.memory_space<semaphore_mem>>
    %228 = tpu.memref_squeeze %227 : memref<1x!tpu.dma_semaphore, #tpu.memory_space<semaphore_mem>> -> memref<!tpu.dma_semaphore, #tpu.memory_space<semaphore_mem>>
    tpu.wait_dma2 semaphore(%228 : memref<!tpu.dma_semaphore, #tpu.memory_space<semaphore_mem>>) src(%224 : memref<128xf32, #tpu.memory_space<any>>) dst(%226 : memref<128xf32, #tpu.memory_space<vmem>>)
    %c21_i32_108 = arith.constant 21 : i32
    %c5_i32_109 = arith.constant 5 : i32
    %c0_i32_110 = arith.constant 0 : i32
    %229 = tpu.memref_slice %arg2[%222, %c0_i32_110] : memref<64x128xf32, #tpu.memory_space<any>> -> memref<1x128xf32, #tpu.memory_space<any>>
    %230 = tpu.memref_squeeze %229 : memref<1x128xf32, #tpu.memory_space<any>> -> memref<128xf32, #tpu.memory_space<any>>
    %c0_i32_111 = arith.constant 0 : i32
    %231 = tpu.memref_slice %arg3[%c21_i32_108, %c0_i32_111] : memref<64x128xf32, #tpu.memory_space<vmem>> -> memref<1x128xf32, #tpu.memory_space<vmem>>
    %232 = tpu.memref_squeeze %231 : memref<1x128xf32, #tpu.memory_space<vmem>> -> memref<128xf32, #tpu.memory_space<vmem>>
    %233 = tpu.memref_slice %arg4[%c5_i32_109] : memref<16x!tpu.dma_semaphore, #tpu.memory_space<semaphore_mem>> -> memref<1x!tpu.dma_semaphore, #tpu.memory_space<semaphore_mem>>
    %234 = tpu.memref_squeeze %233 : memref<1x!tpu.dma_semaphore, #tpu.memory_space<semaphore_mem>> -> memref<!tpu.dma_semaphore, #tpu.memory_space<semaphore_mem>>
    tpu.enqueue_dma source(%230 : memref<128xf32, #tpu.memory_space<any>>) target(%232 : memref<128xf32, #tpu.memory_space<vmem>>) target_semaphore(%234 : memref<!tpu.dma_semaphore, #tpu.memory_space<semaphore_mem>>)
    %c22_i32 = arith.constant 22 : i32
    %235 = arith.addi %0, %c22_i32 : i32
    %236 = arith.index_cast %235 : i32 to index
    %237 = memref.load %arg1[%236] : memref<64xi32, #tpu.memory_space<smem>>
    %c6_i32_112 = arith.constant 6 : i32
    %c6_i32_113 = arith.constant 6 : i32
    %c0_i32_114 = arith.constant 0 : i32
    %238 = tpu.memref_slice %arg2[%57, %c0_i32_114] : memref<64x128xf32, #tpu.memory_space<any>> -> memref<1x128xf32, #tpu.memory_space<any>>
    %239 = tpu.memref_squeeze %238 : memref<1x128xf32, #tpu.memory_space<any>> -> memref<128xf32, #tpu.memory_space<any>>
    %c0_i32_115 = arith.constant 0 : i32
    %240 = tpu.memref_slice %arg3[%c6_i32_112, %c0_i32_115] : memref<64x128xf32, #tpu.memory_space<vmem>> -> memref<1x128xf32, #tpu.memory_space<vmem>>
    %241 = tpu.memref_squeeze %240 : memref<1x128xf32, #tpu.memory_space<vmem>> -> memref<128xf32, #tpu.memory_space<vmem>>
    %242 = tpu.memref_slice %arg4[%c6_i32_113] : memref<16x!tpu.dma_semaphore, #tpu.memory_space<semaphore_mem>> -> memref<1x!tpu.dma_semaphore, #tpu.memory_space<semaphore_mem>>
    %243 = tpu.memref_squeeze %242 : memref<1x!tpu.dma_semaphore, #tpu.memory_space<semaphore_mem>> -> memref<!tpu.dma_semaphore, #tpu.memory_space<semaphore_mem>>
    tpu.wait_dma2 semaphore(%243 : memref<!tpu.dma_semaphore, #tpu.memory_space<semaphore_mem>>) src(%239 : memref<128xf32, #tpu.memory_space<any>>) dst(%241 : memref<128xf32, #tpu.memory_space<vmem>>)
    %c22_i32_116 = arith.constant 22 : i32
    %c6_i32_117 = arith.constant 6 : i32
    %c0_i32_118 = arith.constant 0 : i32
    %244 = tpu.memref_slice %arg2[%237, %c0_i32_118] : memref<64x128xf32, #tpu.memory_space<any>> -> memref<1x128xf32, #tpu.memory_space<any>>
    %245 = tpu.memref_squeeze %244 : memref<1x128xf32, #tpu.memory_space<any>> -> memref<128xf32, #tpu.memory_space<any>>
    %c0_i32_119 = arith.constant 0 : i32
    %246 = tpu.memref_slice %arg3[%c22_i32_116, %c0_i32_119] : memref<64x128xf32, #tpu.memory_space<vmem>> -> memref<1x128xf32, #tpu.memory_space<vmem>>
    %247 = tpu.memref_squeeze %246 : memref<1x128xf32, #tpu.memory_space<vmem>> -> memref<128xf32, #tpu.memory_space<vmem>>
    %248 = tpu.memref_slice %arg4[%c6_i32_117] : memref<16x!tpu.dma_semaphore, #tpu.memory_space<semaphore_mem>> -> memref<1x!tpu.dma_semaphore, #tpu.memory_space<semaphore_mem>>
    %249 = tpu.memref_squeeze %248 : memref<1x!tpu.dma_semaphore, #tpu.memory_space<semaphore_mem>> -> memref<!tpu.dma_semaphore, #tpu.memory_space<semaphore_mem>>
    tpu.enqueue_dma source(%245 : memref<128xf32, #tpu.memory_space<any>>) target(%247 : memref<128xf32, #tpu.memory_space<vmem>>) target_semaphore(%249 : memref<!tpu.dma_semaphore, #tpu.memory_space<semaphore_mem>>)
    %c23_i32 = arith.constant 23 : i32
    %250 = arith.addi %0, %c23_i32 : i32
    %251 = arith.index_cast %250 : i32 to index
    %252 = memref.load %arg1[%251] : memref<64xi32, #tpu.memory_space<smem>>
    %c7_i32_120 = arith.constant 7 : i32
    %c7_i32_121 = arith.constant 7 : i32
    %c0_i32_122 = arith.constant 0 : i32
    %253 = tpu.memref_slice %arg2[%66, %c0_i32_122] : memref<64x128xf32, #tpu.memory_space<any>> -> memref<1x128xf32, #tpu.memory_space<any>>
    %254 = tpu.memref_squeeze %253 : memref<1x128xf32, #tpu.memory_space<any>> -> memref<128xf32, #tpu.memory_space<any>>
    %c0_i32_123 = arith.constant 0 : i32
    %255 = tpu.memref_slice %arg3[%c7_i32_120, %c0_i32_123] : memref<64x128xf32, #tpu.memory_space<vmem>> -> memref<1x128xf32, #tpu.memory_space<vmem>>
    %256 = tpu.memref_squeeze %255 : memref<1x128xf32, #tpu.memory_space<vmem>> -> memref<128xf32, #tpu.memory_space<vmem>>
    %257 = tpu.memref_slice %arg4[%c7_i32_121] : memref<16x!tpu.dma_semaphore, #tpu.memory_space<semaphore_mem>> -> memref<1x!tpu.dma_semaphore, #tpu.memory_space<semaphore_mem>>
    %258 = tpu.memref_squeeze %257 : memref<1x!tpu.dma_semaphore, #tpu.memory_space<semaphore_mem>> -> memref<!tpu.dma_semaphore, #tpu.memory_space<semaphore_mem>>
    tpu.wait_dma2 semaphore(%258 : memref<!tpu.dma_semaphore, #tpu.memory_space<semaphore_mem>>) src(%254 : memref<128xf32, #tpu.memory_space<any>>) dst(%256 : memref<128xf32, #tpu.memory_space<vmem>>)
    %c23_i32_124 = arith.constant 23 : i32
    %c7_i32_125 = arith.constant 7 : i32
    %c0_i32_126 = arith.constant 0 : i32
    %259 = tpu.memref_slice %arg2[%252, %c0_i32_126] : memref<64x128xf32, #tpu.memory_space<any>> -> memref<1x128xf32, #tpu.memory_space<any>>
    %260 = tpu.memref_squeeze %259 : memref<1x128xf32, #tpu.memory_space<any>> -> memref<128xf32, #tpu.memory_space<any>>
    %c0_i32_127 = arith.constant 0 : i32
    %261 = tpu.memref_slice %arg3[%c23_i32_124, %c0_i32_127] : memref<64x128xf32, #tpu.memory_space<vmem>> -> memref<1x128xf32, #tpu.memory_space<vmem>>
    %262 = tpu.memref_squeeze %261 : memref<1x128xf32, #tpu.memory_space<vmem>> -> memref<128xf32, #tpu.memory_space<vmem>>
    %263 = tpu.memref_slice %arg4[%c7_i32_125] : memref<16x!tpu.dma_semaphore, #tpu.memory_space<semaphore_mem>> -> memref<1x!tpu.dma_semaphore, #tpu.memory_space<semaphore_mem>>
    %264 = tpu.memref_squeeze %263 : memref<1x!tpu.dma_semaphore, #tpu.memory_space<semaphore_mem>> -> memref<!tpu.dma_semaphore, #tpu.memory_space<semaphore_mem>>
    tpu.enqueue_dma source(%260 : memref<128xf32, #tpu.memory_space<any>>) target(%262 : memref<128xf32, #tpu.memory_space<vmem>>) target_semaphore(%264 : memref<!tpu.dma_semaphore, #tpu.memory_space<semaphore_mem>>)
    %c24_i32 = arith.constant 24 : i32
    %265 = arith.addi %0, %c24_i32 : i32
    %266 = arith.index_cast %265 : i32 to index
    %267 = memref.load %arg1[%266] : memref<64xi32, #tpu.memory_space<smem>>
    %c8_i32_128 = arith.constant 8 : i32
    %c8_i32_129 = arith.constant 8 : i32
    %c0_i32_130 = arith.constant 0 : i32
    %268 = tpu.memref_slice %arg2[%75, %c0_i32_130] : memref<64x128xf32, #tpu.memory_space<any>> -> memref<1x128xf32, #tpu.memory_space<any>>
    %269 = tpu.memref_squeeze %268 : memref<1x128xf32, #tpu.memory_space<any>> -> memref<128xf32, #tpu.memory_space<any>>
    %c0_i32_131 = arith.constant 0 : i32
    %270 = tpu.memref_slice %arg3[%c8_i32_128, %c0_i32_131] : memref<64x128xf32, #tpu.memory_space<vmem>> -> memref<1x128xf32, #tpu.memory_space<vmem>>
    %271 = tpu.memref_squeeze %270 : memref<1x128xf32, #tpu.memory_space<vmem>> -> memref<128xf32, #tpu.memory_space<vmem>>
    %272 = tpu.memref_slice %arg4[%c8_i32_129] : memref<16x!tpu.dma_semaphore, #tpu.memory_space<semaphore_mem>> -> memref<1x!tpu.dma_semaphore, #tpu.memory_space<semaphore_mem>>
    %273 = tpu.memref_squeeze %272 : memref<1x!tpu.dma_semaphore, #tpu.memory_space<semaphore_mem>> -> memref<!tpu.dma_semaphore, #tpu.memory_space<semaphore_mem>>
    tpu.wait_dma2 semaphore(%273 : memref<!tpu.dma_semaphore, #tpu.memory_space<semaphore_mem>>) src(%269 : memref<128xf32, #tpu.memory_space<any>>) dst(%271 : memref<128xf32, #tpu.memory_space<vmem>>)
    %c24_i32_132 = arith.constant 24 : i32
    %c8_i32_133 = arith.constant 8 : i32
    %c0_i32_134 = arith.constant 0 : i32
    %274 = tpu.memref_slice %arg2[%267, %c0_i32_134] : memref<64x128xf32, #tpu.memory_space<any>> -> memref<1x128xf32, #tpu.memory_space<any>>
    %275 = tpu.memref_squeeze %274 : memref<1x128xf32, #tpu.memory_space<any>> -> memref<128xf32, #tpu.memory_space<any>>
    %c0_i32_135 = arith.constant 0 : i32
    %276 = tpu.memref_slice %arg3[%c24_i32_132, %c0_i32_135] : memref<64x128xf32, #tpu.memory_space<vmem>> -> memref<1x128xf32, #tpu.memory_space<vmem>>
    %277 = tpu.memref_squeeze %276 : memref<1x128xf32, #tpu.memory_space<vmem>> -> memref<128xf32, #tpu.memory_space<vmem>>
    %278 = tpu.memref_slice %arg4[%c8_i32_133] : memref<16x!tpu.dma_semaphore, #tpu.memory_space<semaphore_mem>> -> memref<1x!tpu.dma_semaphore, #tpu.memory_space<semaphore_mem>>
    %279 = tpu.memref_squeeze %278 : memref<1x!tpu.dma_semaphore, #tpu.memory_space<semaphore_mem>> -> memref<!tpu.dma_semaphore, #tpu.memory_space<semaphore_mem>>
    tpu.enqueue_dma source(%275 : memref<128xf32, #tpu.memory_space<any>>) target(%277 : memref<128xf32, #tpu.memory_space<vmem>>) target_semaphore(%279 : memref<!tpu.dma_semaphore, #tpu.memory_space<semaphore_mem>>)
    %c25_i32 = arith.constant 25 : i32
    %280 = arith.addi %0, %c25_i32 : i32
    %281 = arith.index_cast %280 : i32 to index
    %282 = memref.load %arg1[%281] : memref<64xi32, #tpu.memory_space<smem>>
    %c9_i32_136 = arith.constant 9 : i32
    %c9_i32_137 = arith.constant 9 : i32
    %c0_i32_138 = arith.constant 0 : i32
    %283 = tpu.memref_slice %arg2[%84, %c0_i32_138] : memref<64x128xf32, #tpu.memory_space<any>> -> memref<1x128xf32, #tpu.memory_space<any>>
    %284 = tpu.memref_squeeze %283 : memref<1x128xf32, #tpu.memory_space<any>> -> memref<128xf32, #tpu.memory_space<any>>
    %c0_i32_139 = arith.constant 0 : i32
    %285 = tpu.memref_slice %arg3[%c9_i32_136, %c0_i32_139] : memref<64x128xf32, #tpu.memory_space<vmem>> -> memref<1x128xf32, #tpu.memory_space<vmem>>
    %286 = tpu.memref_squeeze %285 : memref<1x128xf32, #tpu.memory_space<vmem>> -> memref<128xf32, #tpu.memory_space<vmem>>
    %287 = tpu.memref_slice %arg4[%c9_i32_137] : memref<16x!tpu.dma_semaphore, #tpu.memory_space<semaphore_mem>> -> memref<1x!tpu.dma_semaphore, #tpu.memory_space<semaphore_mem>>
    %288 = tpu.memref_squeeze %287 : memref<1x!tpu.dma_semaphore, #tpu.memory_space<semaphore_mem>> -> memref<!tpu.dma_semaphore, #tpu.memory_space<semaphore_mem>>
    tpu.wait_dma2 semaphore(%288 : memref<!tpu.dma_semaphore, #tpu.memory_space<semaphore_mem>>) src(%284 : memref<128xf32, #tpu.memory_space<any>>) dst(%286 : memref<128xf32, #tpu.memory_space<vmem>>)
    %c25_i32_140 = arith.constant 25 : i32
    %c9_i32_141 = arith.constant 9 : i32
    %c0_i32_142 = arith.constant 0 : i32
    %289 = tpu.memref_slice %arg2[%282, %c0_i32_142] : memref<64x128xf32, #tpu.memory_space<any>> -> memref<1x128xf32, #tpu.memory_space<any>>
    %290 = tpu.memref_squeeze %289 : memref<1x128xf32, #tpu.memory_space<any>> -> memref<128xf32, #tpu.memory_space<any>>
    %c0_i32_143 = arith.constant 0 : i32
    %291 = tpu.memref_slice %arg3[%c25_i32_140, %c0_i32_143] : memref<64x128xf32, #tpu.memory_space<vmem>> -> memref<1x128xf32, #tpu.memory_space<vmem>>
    %292 = tpu.memref_squeeze %291 : memref<1x128xf32, #tpu.memory_space<vmem>> -> memref<128xf32, #tpu.memory_space<vmem>>
    %293 = tpu.memref_slice %arg4[%c9_i32_141] : memref<16x!tpu.dma_semaphore, #tpu.memory_space<semaphore_mem>> -> memref<1x!tpu.dma_semaphore, #tpu.memory_space<semaphore_mem>>
    %294 = tpu.memref_squeeze %293 : memref<1x!tpu.dma_semaphore, #tpu.memory_space<semaphore_mem>> -> memref<!tpu.dma_semaphore, #tpu.memory_space<semaphore_mem>>
    tpu.enqueue_dma source(%290 : memref<128xf32, #tpu.memory_space<any>>) target(%292 : memref<128xf32, #tpu.memory_space<vmem>>) target_semaphore(%294 : memref<!tpu.dma_semaphore, #tpu.memory_space<semaphore_mem>>)
    %c26_i32 = arith.constant 26 : i32
    %295 = arith.addi %0, %c26_i32 : i32
    %296 = arith.index_cast %295 : i32 to index
    %297 = memref.load %arg1[%296] : memref<64xi32, #tpu.memory_space<smem>>
    %c10_i32_144 = arith.constant 10 : i32
    %c10_i32_145 = arith.constant 10 : i32
    %c0_i32_146 = arith.constant 0 : i32
    %298 = tpu.memref_slice %arg2[%93, %c0_i32_146] : memref<64x128xf32, #tpu.memory_space<any>> -> memref<1x128xf32, #tpu.memory_space<any>>
    %299 = tpu.memref_squeeze %298 : memref<1x128xf32, #tpu.memory_space<any>> -> memref<128xf32, #tpu.memory_space<any>>
    %c0_i32_147 = arith.constant 0 : i32
    %300 = tpu.memref_slice %arg3[%c10_i32_144, %c0_i32_147] : memref<64x128xf32, #tpu.memory_space<vmem>> -> memref<1x128xf32, #tpu.memory_space<vmem>>
    %301 = tpu.memref_squeeze %300 : memref<1x128xf32, #tpu.memory_space<vmem>> -> memref<128xf32, #tpu.memory_space<vmem>>
    %302 = tpu.memref_slice %arg4[%c10_i32_145] : memref<16x!tpu.dma_semaphore, #tpu.memory_space<semaphore_mem>> -> memref<1x!tpu.dma_semaphore, #tpu.memory_space<semaphore_mem>>
    %303 = tpu.memref_squeeze %302 : memref<1x!tpu.dma_semaphore, #tpu.memory_space<semaphore_mem>> -> memref<!tpu.dma_semaphore, #tpu.memory_space<semaphore_mem>>
    tpu.wait_dma2 semaphore(%303 : memref<!tpu.dma_semaphore, #tpu.memory_space<semaphore_mem>>) src(%299 : memref<128xf32, #tpu.memory_space<any>>) dst(%301 : memref<128xf32, #tpu.memory_space<vmem>>)
    %c26_i32_148 = arith.constant 26 : i32
    %c10_i32_149 = arith.constant 10 : i32
    %c0_i32_150 = arith.constant 0 : i32
    %304 = tpu.memref_slice %arg2[%297, %c0_i32_150] : memref<64x128xf32, #tpu.memory_space<any>> -> memref<1x128xf32, #tpu.memory_space<any>>
    %305 = tpu.memref_squeeze %304 : memref<1x128xf32, #tpu.memory_space<any>> -> memref<128xf32, #tpu.memory_space<any>>
    %c0_i32_151 = arith.constant 0 : i32
    %306 = tpu.memref_slice %arg3[%c26_i32_148, %c0_i32_151] : memref<64x128xf32, #tpu.memory_space<vmem>> -> memref<1x128xf32, #tpu.memory_space<vmem>>
    %307 = tpu.memref_squeeze %306 : memref<1x128xf32, #tpu.memory_space<vmem>> -> memref<128xf32, #tpu.memory_space<vmem>>
    %308 = tpu.memref_slice %arg4[%c10_i32_149] : memref<16x!tpu.dma_semaphore, #tpu.memory_space<semaphore_mem>> -> memref<1x!tpu.dma_semaphore, #tpu.memory_space<semaphore_mem>>
    %309 = tpu.memref_squeeze %308 : memref<1x!tpu.dma_semaphore, #tpu.memory_space<semaphore_mem>> -> memref<!tpu.dma_semaphore, #tpu.memory_space<semaphore_mem>>
    tpu.enqueue_dma source(%305 : memref<128xf32, #tpu.memory_space<any>>) target(%307 : memref<128xf32, #tpu.memory_space<vmem>>) target_semaphore(%309 : memref<!tpu.dma_semaphore, #tpu.memory_space<semaphore_mem>>)
    %c27_i32 = arith.constant 27 : i32
    %310 = arith.addi %0, %c27_i32 : i32
    %311 = arith.index_cast %310 : i32 to index
    %312 = memref.load %arg1[%311] : memref<64xi32, #tpu.memory_space<smem>>
    %c11_i32_152 = arith.constant 11 : i32
    %c11_i32_153 = arith.constant 11 : i32
    %c0_i32_154 = arith.constant 0 : i32
    %313 = tpu.memref_slice %arg2[%102, %c0_i32_154] : memref<64x128xf32, #tpu.memory_space<any>> -> memref<1x128xf32, #tpu.memory_space<any>>
    %314 = tpu.memref_squeeze %313 : memref<1x128xf32, #tpu.memory_space<any>> -> memref<128xf32, #tpu.memory_space<any>>
    %c0_i32_155 = arith.constant 0 : i32
    %315 = tpu.memref_slice %arg3[%c11_i32_152, %c0_i32_155] : memref<64x128xf32, #tpu.memory_space<vmem>> -> memref<1x128xf32, #tpu.memory_space<vmem>>
    %316 = tpu.memref_squeeze %315 : memref<1x128xf32, #tpu.memory_space<vmem>> -> memref<128xf32, #tpu.memory_space<vmem>>
    %317 = tpu.memref_slice %arg4[%c11_i32_153] : memref<16x!tpu.dma_semaphore, #tpu.memory_space<semaphore_mem>> -> memref<1x!tpu.dma_semaphore, #tpu.memory_space<semaphore_mem>>
    %318 = tpu.memref_squeeze %317 : memref<1x!tpu.dma_semaphore, #tpu.memory_space<semaphore_mem>> -> memref<!tpu.dma_semaphore, #tpu.memory_space<semaphore_mem>>
    tpu.wait_dma2 semaphore(%318 : memref<!tpu.dma_semaphore, #tpu.memory_space<semaphore_mem>>) src(%314 : memref<128xf32, #tpu.memory_space<any>>) dst(%316 : memref<128xf32, #tpu.memory_space<vmem>>)
    %c27_i32_156 = arith.constant 27 : i32
    %c11_i32_157 = arith.constant 11 : i32
    %c0_i32_158 = arith.constant 0 : i32
    %319 = tpu.memref_slice %arg2[%312, %c0_i32_158] : memref<64x128xf32, #tpu.memory_space<any>> -> memref<1x128xf32, #tpu.memory_space<any>>
    %320 = tpu.memref_squeeze %319 : memref<1x128xf32, #tpu.memory_space<any>> -> memref<128xf32, #tpu.memory_space<any>>
    %c0_i32_159 = arith.constant 0 : i32
    %321 = tpu.memref_slice %arg3[%c27_i32_156, %c0_i32_159] : memref<64x128xf32, #tpu.memory_space<vmem>> -> memref<1x128xf32, #tpu.memory_space<vmem>>
    %322 = tpu.memref_squeeze %321 : memref<1x128xf32, #tpu.memory_space<vmem>> -> memref<128xf32, #tpu.memory_space<vmem>>
    %323 = tpu.memref_slice %arg4[%c11_i32_157] : memref<16x!tpu.dma_semaphore, #tpu.memory_space<semaphore_mem>> -> memref<1x!tpu.dma_semaphore, #tpu.memory_space<semaphore_mem>>
    %324 = tpu.memref_squeeze %323 : memref<1x!tpu.dma_semaphore, #tpu.memory_space<semaphore_mem>> -> memref<!tpu.dma_semaphore, #tpu.memory_space<semaphore_mem>>
    tpu.enqueue_dma source(%320 : memref<128xf32, #tpu.memory_space<any>>) target(%322 : memref<128xf32, #tpu.memory_space<vmem>>) target_semaphore(%324 : memref<!tpu.dma_semaphore, #tpu.memory_space<semaphore_mem>>)
    %c28_i32 = arith.constant 28 : i32
    %325 = arith.addi %0, %c28_i32 : i32
    %326 = arith.index_cast %325 : i32 to index
    %327 = memref.load %arg1[%326] : memref<64xi32, #tpu.memory_space<smem>>
    %c12_i32_160 = arith.constant 12 : i32
    %c12_i32_161 = arith.constant 12 : i32
    %c0_i32_162 = arith.constant 0 : i32
    %328 = tpu.memref_slice %arg2[%111, %c0_i32_162] : memref<64x128xf32, #tpu.memory_space<any>> -> memref<1x128xf32, #tpu.memory_space<any>>
    %329 = tpu.memref_squeeze %328 : memref<1x128xf32, #tpu.memory_space<any>> -> memref<128xf32, #tpu.memory_space<any>>
    %c0_i32_163 = arith.constant 0 : i32
    %330 = tpu.memref_slice %arg3[%c12_i32_160, %c0_i32_163] : memref<64x128xf32, #tpu.memory_space<vmem>> -> memref<1x128xf32, #tpu.memory_space<vmem>>
    %331 = tpu.memref_squeeze %330 : memref<1x128xf32, #tpu.memory_space<vmem>> -> memref<128xf32, #tpu.memory_space<vmem>>
    %332 = tpu.memref_slice %arg4[%c12_i32_161] : memref<16x!tpu.dma_semaphore, #tpu.memory_space<semaphore_mem>> -> memref<1x!tpu.dma_semaphore, #tpu.memory_space<semaphore_mem>>
    %333 = tpu.memref_squeeze %332 : memref<1x!tpu.dma_semaphore, #tpu.memory_space<semaphore_mem>> -> memref<!tpu.dma_semaphore, #tpu.memory_space<semaphore_mem>>
    tpu.wait_dma2 semaphore(%333 : memref<!tpu.dma_semaphore, #tpu.memory_space<semaphore_mem>>) src(%329 : memref<128xf32, #tpu.memory_space<any>>) dst(%331 : memref<128xf32, #tpu.memory_space<vmem>>)
    %c28_i32_164 = arith.constant 28 : i32
    %c12_i32_165 = arith.constant 12 : i32
    %c0_i32_166 = arith.constant 0 : i32
    %334 = tpu.memref_slice %arg2[%327, %c0_i32_166] : memref<64x128xf32, #tpu.memory_space<any>> -> memref<1x128xf32, #tpu.memory_space<any>>
    %335 = tpu.memref_squeeze %334 : memref<1x128xf32, #tpu.memory_space<any>> -> memref<128xf32, #tpu.memory_space<any>>
    %c0_i32_167 = arith.constant 0 : i32
    %336 = tpu.memref_slice %arg3[%c28_i32_164, %c0_i32_167] : memref<64x128xf32, #tpu.memory_space<vmem>> -> memref<1x128xf32, #tpu.memory_space<vmem>>
    %337 = tpu.memref_squeeze %336 : memref<1x128xf32, #tpu.memory_space<vmem>> -> memref<128xf32, #tpu.memory_space<vmem>>
    %338 = tpu.memref_slice %arg4[%c12_i32_165] : memref<16x!tpu.dma_semaphore, #tpu.memory_space<semaphore_mem>> -> memref<1x!tpu.dma_semaphore, #tpu.memory_space<semaphore_mem>>
    %339 = tpu.memref_squeeze %338 : memref<1x!tpu.dma_semaphore, #tpu.memory_space<semaphore_mem>> -> memref<!tpu.dma_semaphore, #tpu.memory_space<semaphore_mem>>
    tpu.enqueue_dma source(%335 : memref<128xf32, #tpu.memory_space<any>>) target(%337 : memref<128xf32, #tpu.memory_space<vmem>>) target_semaphore(%339 : memref<!tpu.dma_semaphore, #tpu.memory_space<semaphore_mem>>)
    %c29_i32 = arith.constant 29 : i32
    %340 = arith.addi %0, %c29_i32 : i32
    %341 = arith.index_cast %340 : i32 to index
    %342 = memref.load %arg1[%341] : memref<64xi32, #tpu.memory_space<smem>>
    %c13_i32_168 = arith.constant 13 : i32
    %c13_i32_169 = arith.constant 13 : i32
    %c0_i32_170 = arith.constant 0 : i32
    %343 = tpu.memref_slice %arg2[%120, %c0_i32_170] : memref<64x128xf32, #tpu.memory_space<any>> -> memref<1x128xf32, #tpu.memory_space<any>>
    %344 = tpu.memref_squeeze %343 : memref<1x128xf32, #tpu.memory_space<any>> -> memref<128xf32, #tpu.memory_space<any>>
    %c0_i32_171 = arith.constant 0 : i32
    %345 = tpu.memref_slice %arg3[%c13_i32_168, %c0_i32_171] : memref<64x128xf32, #tpu.memory_space<vmem>> -> memref<1x128xf32, #tpu.memory_space<vmem>>
    %346 = tpu.memref_squeeze %345 : memref<1x128xf32, #tpu.memory_space<vmem>> -> memref<128xf32, #tpu.memory_space<vmem>>
    %347 = tpu.memref_slice %arg4[%c13_i32_169] : memref<16x!tpu.dma_semaphore, #tpu.memory_space<semaphore_mem>> -> memref<1x!tpu.dma_semaphore, #tpu.memory_space<semaphore_mem>>
    %348 = tpu.memref_squeeze %347 : memref<1x!tpu.dma_semaphore, #tpu.memory_space<semaphore_mem>> -> memref<!tpu.dma_semaphore, #tpu.memory_space<semaphore_mem>>
    tpu.wait_dma2 semaphore(%348 : memref<!tpu.dma_semaphore, #tpu.memory_space<semaphore_mem>>) src(%344 : memref<128xf32, #tpu.memory_space<any>>) dst(%346 : memref<128xf32, #tpu.memory_space<vmem>>)
    %c29_i32_172 = arith.constant 29 : i32
    %c13_i32_173 = arith.constant 13 : i32
    %c0_i32_174 = arith.constant 0 : i32
    %349 = tpu.memref_slice %arg2[%342, %c0_i32_174] : memref<64x128xf32, #tpu.memory_space<any>> -> memref<1x128xf32, #tpu.memory_space<any>>
    %350 = tpu.memref_squeeze %349 : memref<1x128xf32, #tpu.memory_space<any>> -> memref<128xf32, #tpu.memory_space<any>>
    %c0_i32_175 = arith.constant 0 : i32
    %351 = tpu.memref_slice %arg3[%c29_i32_172, %c0_i32_175] : memref<64x128xf32, #tpu.memory_space<vmem>> -> memref<1x128xf32, #tpu.memory_space<vmem>>
    %352 = tpu.memref_squeeze %351 : memref<1x128xf32, #tpu.memory_space<vmem>> -> memref<128xf32, #tpu.memory_space<vmem>>
    %353 = tpu.memref_slice %arg4[%c13_i32_173] : memref<16x!tpu.dma_semaphore, #tpu.memory_space<semaphore_mem>> -> memref<1x!tpu.dma_semaphore, #tpu.memory_space<semaphore_mem>>
    %354 = tpu.memref_squeeze %353 : memref<1x!tpu.dma_semaphore, #tpu.memory_space<semaphore_mem>> -> memref<!tpu.dma_semaphore, #tpu.memory_space<semaphore_mem>>
    tpu.enqueue_dma source(%350 : memref<128xf32, #tpu.memory_space<any>>) target(%352 : memref<128xf32, #tpu.memory_space<vmem>>) target_semaphore(%354 : memref<!tpu.dma_semaphore, #tpu.memory_space<semaphore_mem>>)
    %c30_i32 = arith.constant 30 : i32
    %355 = arith.addi %0, %c30_i32 : i32
    %356 = arith.index_cast %355 : i32 to index
    %357 = memref.load %arg1[%356] : memref<64xi32, #tpu.memory_space<smem>>
    %c14_i32_176 = arith.constant 14 : i32
    %c14_i32_177 = arith.constant 14 : i32
    %c0_i32_178 = arith.constant 0 : i32
    %358 = tpu.memref_slice %arg2[%129, %c0_i32_178] : memref<64x128xf32, #tpu.memory_space<any>> -> memref<1x128xf32, #tpu.memory_space<any>>
    %359 = tpu.memref_squeeze %358 : memref<1x128xf32, #tpu.memory_space<any>> -> memref<128xf32, #tpu.memory_space<any>>
    %c0_i32_179 = arith.constant 0 : i32
    %360 = tpu.memref_slice %arg3[%c14_i32_176, %c0_i32_179] : memref<64x128xf32, #tpu.memory_space<vmem>> -> memref<1x128xf32, #tpu.memory_space<vmem>>
    %361 = tpu.memref_squeeze %360 : memref<1x128xf32, #tpu.memory_space<vmem>> -> memref<128xf32, #tpu.memory_space<vmem>>
    %362 = tpu.memref_slice %arg4[%c14_i32_177] : memref<16x!tpu.dma_semaphore, #tpu.memory_space<semaphore_mem>> -> memref<1x!tpu.dma_semaphore, #tpu.memory_space<semaphore_mem>>
    %363 = tpu.memref_squeeze %362 : memref<1x!tpu.dma_semaphore, #tpu.memory_space<semaphore_mem>> -> memref<!tpu.dma_semaphore, #tpu.memory_space<semaphore_mem>>
    tpu.wait_dma2 semaphore(%363 : memref<!tpu.dma_semaphore, #tpu.memory_space<semaphore_mem>>) src(%359 : memref<128xf32, #tpu.memory_space<any>>) dst(%361 : memref<128xf32, #tpu.memory_space<vmem>>)
    %c30_i32_180 = arith.constant 30 : i32
    %c14_i32_181 = arith.constant 14 : i32
    %c0_i32_182 = arith.constant 0 : i32
    %364 = tpu.memref_slice %arg2[%357, %c0_i32_182] : memref<64x128xf32, #tpu.memory_space<any>> -> memref<1x128xf32, #tpu.memory_space<any>>
    %365 = tpu.memref_squeeze %364 : memref<1x128xf32, #tpu.memory_space<any>> -> memref<128xf32, #tpu.memory_space<any>>
    %c0_i32_183 = arith.constant 0 : i32
    %366 = tpu.memref_slice %arg3[%c30_i32_180, %c0_i32_183] : memref<64x128xf32, #tpu.memory_space<vmem>> -> memref<1x128xf32, #tpu.memory_space<vmem>>
    %367 = tpu.memref_squeeze %366 : memref<1x128xf32, #tpu.memory_space<vmem>> -> memref<128xf32, #tpu.memory_space<vmem>>
    %368 = tpu.memref_slice %arg4[%c14_i32_181] : memref<16x!tpu.dma_semaphore, #tpu.memory_space<semaphore_mem>> -> memref<1x!tpu.dma_semaphore, #tpu.memory_space<semaphore_mem>>
    %369 = tpu.memref_squeeze %368 : memref<1x!tpu.dma_semaphore, #tpu.memory_space<semaphore_mem>> -> memref<!tpu.dma_semaphore, #tpu.memory_space<semaphore_mem>>
    tpu.enqueue_dma source(%365 : memref<128xf32, #tpu.memory_space<any>>) target(%367 : memref<128xf32, #tpu.memory_space<vmem>>) target_semaphore(%369 : memref<!tpu.dma_semaphore, #tpu.memory_space<semaphore_mem>>)
    %c31_i32 = arith.constant 31 : i32
    %370 = arith.addi %0, %c31_i32 : i32
    %371 = arith.index_cast %370 : i32 to index
    %372 = memref.load %arg1[%371] : memref<64xi32, #tpu.memory_space<smem>>
    %c15_i32_184 = arith.constant 15 : i32
    %c15_i32_185 = arith.constant 15 : i32
    %c0_i32_186 = arith.constant 0 : i32
    %373 = tpu.memref_slice %arg2[%138, %c0_i32_186] : memref<64x128xf32, #tpu.memory_space<any>> -> memref<1x128xf32, #tpu.memory_space<any>>
    %374 = tpu.memref_squeeze %373 : memref<1x128xf32, #tpu.memory_space<any>> -> memref<128xf32, #tpu.memory_space<any>>
    %c0_i32_187 = arith.constant 0 : i32
    %375 = tpu.memref_slice %arg3[%c15_i32_184, %c0_i32_187] : memref<64x128xf32, #tpu.memory_space<vmem>> -> memref<1x128xf32, #tpu.memory_space<vmem>>
    %376 = tpu.memref_squeeze %375 : memref<1x128xf32, #tpu.memory_space<vmem>> -> memref<128xf32, #tpu.memory_space<vmem>>
    %377 = tpu.memref_slice %arg4[%c15_i32_185] : memref<16x!tpu.dma_semaphore, #tpu.memory_space<semaphore_mem>> -> memref<1x!tpu.dma_semaphore, #tpu.memory_space<semaphore_mem>>
    %378 = tpu.memref_squeeze %377 : memref<1x!tpu.dma_semaphore, #tpu.memory_space<semaphore_mem>> -> memref<!tpu.dma_semaphore, #tpu.memory_space<semaphore_mem>>
    tpu.wait_dma2 semaphore(%378 : memref<!tpu.dma_semaphore, #tpu.memory_space<semaphore_mem>>) src(%374 : memref<128xf32, #tpu.memory_space<any>>) dst(%376 : memref<128xf32, #tpu.memory_space<vmem>>)
    %c31_i32_188 = arith.constant 31 : i32
    %c15_i32_189 = arith.constant 15 : i32
    %c0_i32_190 = arith.constant 0 : i32
    %379 = tpu.memref_slice %arg2[%372, %c0_i32_190] : memref<64x128xf32, #tpu.memory_space<any>> -> memref<1x128xf32, #tpu.memory_space<any>>
    %380 = tpu.memref_squeeze %379 : memref<1x128xf32, #tpu.memory_space<any>> -> memref<128xf32, #tpu.memory_space<any>>
    %c0_i32_191 = arith.constant 0 : i32
    %381 = tpu.memref_slice %arg3[%c31_i32_188, %c0_i32_191] : memref<64x128xf32, #tpu.memory_space<vmem>> -> memref<1x128xf32, #tpu.memory_space<vmem>>
    %382 = tpu.memref_squeeze %381 : memref<1x128xf32, #tpu.memory_space<vmem>> -> memref<128xf32, #tpu.memory_space<vmem>>
    %383 = tpu.memref_slice %arg4[%c15_i32_189] : memref<16x!tpu.dma_semaphore, #tpu.memory_space<semaphore_mem>> -> memref<1x!tpu.dma_semaphore, #tpu.memory_space<semaphore_mem>>
    %384 = tpu.memref_squeeze %383 : memref<1x!tpu.dma_semaphore, #tpu.memory_space<semaphore_mem>> -> memref<!tpu.dma_semaphore, #tpu.memory_space<semaphore_mem>>
    tpu.enqueue_dma source(%380 : memref<128xf32, #tpu.memory_space<any>>) target(%382 : memref<128xf32, #tpu.memory_space<vmem>>) target_semaphore(%384 : memref<!tpu.dma_semaphore, #tpu.memory_space<semaphore_mem>>)
    %c32_i32 = arith.constant 32 : i32
    %385 = arith.addi %0, %c32_i32 : i32
    %386 = arith.index_cast %385 : i32 to index
    %387 = memref.load %arg1[%386] : memref<64xi32, #tpu.memory_space<smem>>
    %c16_i32_192 = arith.constant 16 : i32
    %c0_i32_193 = arith.constant 0 : i32
    %c0_i32_194 = arith.constant 0 : i32
    %388 = tpu.memref_slice %arg2[%147, %c0_i32_194] : memref<64x128xf32, #tpu.memory_space<any>> -> memref<1x128xf32, #tpu.memory_space<any>>
    %389 = tpu.memref_squeeze %388 : memref<1x128xf32, #tpu.memory_space<any>> -> memref<128xf32, #tpu.memory_space<any>>
    %c0_i32_195 = arith.constant 0 : i32
    %390 = tpu.memref_slice %arg3[%c16_i32_192, %c0_i32_195] : memref<64x128xf32, #tpu.memory_space<vmem>> -> memref<1x128xf32, #tpu.memory_space<vmem>>
    %391 = tpu.memref_squeeze %390 : memref<1x128xf32, #tpu.memory_space<vmem>> -> memref<128xf32, #tpu.memory_space<vmem>>
    %392 = tpu.memref_slice %arg4[%c0_i32_193] : memref<16x!tpu.dma_semaphore, #tpu.memory_space<semaphore_mem>> -> memref<1x!tpu.dma_semaphore, #tpu.memory_space<semaphore_mem>>
    %393 = tpu.memref_squeeze %392 : memref<1x!tpu.dma_semaphore, #tpu.memory_space<semaphore_mem>> -> memref<!tpu.dma_semaphore, #tpu.memory_space<semaphore_mem>>
    tpu.wait_dma2 semaphore(%393 : memref<!tpu.dma_semaphore, #tpu.memory_space<semaphore_mem>>) src(%389 : memref<128xf32, #tpu.memory_space<any>>) dst(%391 : memref<128xf32, #tpu.memory_space<vmem>>)
    %c32_i32_196 = arith.constant 32 : i32
    %c0_i32_197 = arith.constant 0 : i32
    %c0_i32_198 = arith.constant 0 : i32
    %394 = tpu.memref_slice %arg2[%387, %c0_i32_198] : memref<64x128xf32, #tpu.memory_space<any>> -> memref<1x128xf32, #tpu.memory_space<any>>
    %395 = tpu.memref_squeeze %394 : memref<1x128xf32, #tpu.memory_space<any>> -> memref<128xf32, #tpu.memory_space<any>>
    %c0_i32_199 = arith.constant 0 : i32
    %396 = tpu.memref_slice %arg3[%c32_i32_196, %c0_i32_199] : memref<64x128xf32, #tpu.memory_space<vmem>> -> memref<1x128xf32, #tpu.memory_space<vmem>>
    %397 = tpu.memref_squeeze %396 : memref<1x128xf32, #tpu.memory_space<vmem>> -> memref<128xf32, #tpu.memory_space<vmem>>
    %398 = tpu.memref_slice %arg4[%c0_i32_197] : memref<16x!tpu.dma_semaphore, #tpu.memory_space<semaphore_mem>> -> memref<1x!tpu.dma_semaphore, #tpu.memory_space<semaphore_mem>>
    %399 = tpu.memref_squeeze %398 : memref<1x!tpu.dma_semaphore, #tpu.memory_space<semaphore_mem>> -> memref<!tpu.dma_semaphore, #tpu.memory_space<semaphore_mem>>
    tpu.enqueue_dma source(%395 : memref<128xf32, #tpu.memory_space<any>>) target(%397 : memref<128xf32, #tpu.memory_space<vmem>>) target_semaphore(%399 : memref<!tpu.dma_semaphore, #tpu.memory_space<semaphore_mem>>)
    %c33_i32 = arith.constant 33 : i32
    %400 = arith.addi %0, %c33_i32 : i32
    %401 = arith.index_cast %400 : i32 to index
    %402 = memref.load %arg1[%401] : memref<64xi32, #tpu.memory_space<smem>>
    %c17_i32_200 = arith.constant 17 : i32
    %c1_i32_201 = arith.constant 1 : i32
    %c0_i32_202 = arith.constant 0 : i32
    %403 = tpu.memref_slice %arg2[%162, %c0_i32_202] : memref<64x128xf32, #tpu.memory_space<any>> -> memref<1x128xf32, #tpu.memory_space<any>>
    %404 = tpu.memref_squeeze %403 : memref<1x128xf32, #tpu.memory_space<any>> -> memref<128xf32, #tpu.memory_space<any>>
    %c0_i32_203 = arith.constant 0 : i32
    %405 = tpu.memref_slice %arg3[%c17_i32_200, %c0_i32_203] : memref<64x128xf32, #tpu.memory_space<vmem>> -> memref<1x128xf32, #tpu.memory_space<vmem>>
    %406 = tpu.memref_squeeze %405 : memref<1x128xf32, #tpu.memory_space<vmem>> -> memref<128xf32, #tpu.memory_space<vmem>>
    %407 = tpu.memref_slice %arg4[%c1_i32_201] : memref<16x!tpu.dma_semaphore, #tpu.memory_space<semaphore_mem>> -> memref<1x!tpu.dma_semaphore, #tpu.memory_space<semaphore_mem>>
    %408 = tpu.memref_squeeze %407 : memref<1x!tpu.dma_semaphore, #tpu.memory_space<semaphore_mem>> -> memref<!tpu.dma_semaphore, #tpu.memory_space<semaphore_mem>>
    tpu.wait_dma2 semaphore(%408 : memref<!tpu.dma_semaphore, #tpu.memory_space<semaphore_mem>>) src(%404 : memref<128xf32, #tpu.memory_space<any>>) dst(%406 : memref<128xf32, #tpu.memory_space<vmem>>)
    %c33_i32_204 = arith.constant 33 : i32
    %c1_i32_205 = arith.constant 1 : i32
    %c0_i32_206 = arith.constant 0 : i32
    %409 = tpu.memref_slice %arg2[%402, %c0_i32_206] : memref<64x128xf32, #tpu.memory_space<any>> -> memref<1x128xf32, #tpu.memory_space<any>>
    %410 = tpu.memref_squeeze %409 : memref<1x128xf32, #tpu.memory_space<any>> -> memref<128xf32, #tpu.memory_space<any>>
    %c0_i32_207 = arith.constant 0 : i32
    %411 = tpu.memref_slice %arg3[%c33_i32_204, %c0_i32_207] : memref<64x128xf32, #tpu.memory_space<vmem>> -> memref<1x128xf32, #tpu.memory_space<vmem>>
    %412 = tpu.memref_squeeze %411 : memref<1x128xf32, #tpu.memory_space<vmem>> -> memref<128xf32, #tpu.memory_space<vmem>>
    %413 = tpu.memref_slice %arg4[%c1_i32_205] : memref<16x!tpu.dma_semaphore, #tpu.memory_space<semaphore_mem>> -> memref<1x!tpu.dma_semaphore, #tpu.memory_space<semaphore_mem>>
    %414 = tpu.memref_squeeze %413 : memref<1x!tpu.dma_semaphore, #tpu.memory_space<semaphore_mem>> -> memref<!tpu.dma_semaphore, #tpu.memory_space<semaphore_mem>>
    tpu.enqueue_dma source(%410 : memref<128xf32, #tpu.memory_space<any>>) target(%412 : memref<128xf32, #tpu.memory_space<vmem>>) target_semaphore(%414 : memref<!tpu.dma_semaphore, #tpu.memory_space<semaphore_mem>>)
    %c34_i32 = arith.constant 34 : i32
    %415 = arith.addi %0, %c34_i32 : i32
    %416 = arith.index_cast %415 : i32 to index
    %417 = memref.load %arg1[%416] : memref<64xi32, #tpu.memory_space<smem>>
    %c18_i32_208 = arith.constant 18 : i32
    %c2_i32_209 = arith.constant 2 : i32
    %c0_i32_210 = arith.constant 0 : i32
    %418 = tpu.memref_slice %arg2[%177, %c0_i32_210] : memref<64x128xf32, #tpu.memory_space<any>> -> memref<1x128xf32, #tpu.memory_space<any>>
    %419 = tpu.memref_squeeze %418 : memref<1x128xf32, #tpu.memory_space<any>> -> memref<128xf32, #tpu.memory_space<any>>
    %c0_i32_211 = arith.constant 0 : i32
    %420 = tpu.memref_slice %arg3[%c18_i32_208, %c0_i32_211] : memref<64x128xf32, #tpu.memory_space<vmem>> -> memref<1x128xf32, #tpu.memory_space<vmem>>
    %421 = tpu.memref_squeeze %420 : memref<1x128xf32, #tpu.memory_space<vmem>> -> memref<128xf32, #tpu.memory_space<vmem>>
    %422 = tpu.memref_slice %arg4[%c2_i32_209] : memref<16x!tpu.dma_semaphore, #tpu.memory_space<semaphore_mem>> -> memref<1x!tpu.dma_semaphore, #tpu.memory_space<semaphore_mem>>
    %423 = tpu.memref_squeeze %422 : memref<1x!tpu.dma_semaphore, #tpu.memory_space<semaphore_mem>> -> memref<!tpu.dma_semaphore, #tpu.memory_space<semaphore_mem>>
    tpu.wait_dma2 semaphore(%423 : memref<!tpu.dma_semaphore, #tpu.memory_space<semaphore_mem>>) src(%419 : memref<128xf32, #tpu.memory_space<any>>) dst(%421 : memref<128xf32, #tpu.memory_space<vmem>>)
    %c34_i32_212 = arith.constant 34 : i32
    %c2_i32_213 = arith.constant 2 : i32
    %c0_i32_214 = arith.constant 0 : i32
    %424 = tpu.memref_slice %arg2[%417, %c0_i32_214] : memref<64x128xf32, #tpu.memory_space<any>> -> memref<1x128xf32, #tpu.memory_space<any>>
    %425 = tpu.memref_squeeze %424 : memref<1x128xf32, #tpu.memory_space<any>> -> memref<128xf32, #tpu.memory_space<any>>
    %c0_i32_215 = arith.constant 0 : i32
    %426 = tpu.memref_slice %arg3[%c34_i32_212, %c0_i32_215] : memref<64x128xf32, #tpu.memory_space<vmem>> -> memref<1x128xf32, #tpu.memory_space<vmem>>
    %427 = tpu.memref_squeeze %426 : memref<1x128xf32, #tpu.memory_space<vmem>> -> memref<128xf32, #tpu.memory_space<vmem>>
    %428 = tpu.memref_slice %arg4[%c2_i32_213] : memref<16x!tpu.dma_semaphore, #tpu.memory_space<semaphore_mem>> -> memref<1x!tpu.dma_semaphore, #tpu.memory_space<semaphore_mem>>
    %429 = tpu.memref_squeeze %428 : memref<1x!tpu.dma_semaphore, #tpu.memory_space<semaphore_mem>> -> memref<!tpu.dma_semaphore, #tpu.memory_space<semaphore_mem>>
    tpu.enqueue_dma source(%425 : memref<128xf32, #tpu.memory_space<any>>) target(%427 : memref<128xf32, #tpu.memory_space<vmem>>) target_semaphore(%429 : memref<!tpu.dma_semaphore, #tpu.memory_space<semaphore_mem>>)
    %c35_i32 = arith.constant 35 : i32
    %430 = arith.addi %0, %c35_i32 : i32
    %431 = arith.index_cast %430 : i32 to index
    %432 = memref.load %arg1[%431] : memref<64xi32, #tpu.memory_space<smem>>
    %c19_i32_216 = arith.constant 19 : i32
    %c3_i32_217 = arith.constant 3 : i32
    %c0_i32_218 = arith.constant 0 : i32
    %433 = tpu.memref_slice %arg2[%192, %c0_i32_218] : memref<64x128xf32, #tpu.memory_space<any>> -> memref<1x128xf32, #tpu.memory_space<any>>
    %434 = tpu.memref_squeeze %433 : memref<1x128xf32, #tpu.memory_space<any>> -> memref<128xf32, #tpu.memory_space<any>>
    %c0_i32_219 = arith.constant 0 : i32
    %435 = tpu.memref_slice %arg3[%c19_i32_216, %c0_i32_219] : memref<64x128xf32, #tpu.memory_space<vmem>> -> memref<1x128xf32, #tpu.memory_space<vmem>>
    %436 = tpu.memref_squeeze %435 : memref<1x128xf32, #tpu.memory_space<vmem>> -> memref<128xf32, #tpu.memory_space<vmem>>
    %437 = tpu.memref_slice %arg4[%c3_i32_217] : memref<16x!tpu.dma_semaphore, #tpu.memory_space<semaphore_mem>> -> memref<1x!tpu.dma_semaphore, #tpu.memory_space<semaphore_mem>>
    %438 = tpu.memref_squeeze %437 : memref<1x!tpu.dma_semaphore, #tpu.memory_space<semaphore_mem>> -> memref<!tpu.dma_semaphore, #tpu.memory_space<semaphore_mem>>
    tpu.wait_dma2 semaphore(%438 : memref<!tpu.dma_semaphore, #tpu.memory_space<semaphore_mem>>) src(%434 : memref<128xf32, #tpu.memory_space<any>>) dst(%436 : memref<128xf32, #tpu.memory_space<vmem>>)
    %c35_i32_220 = arith.constant 35 : i32
    %c3_i32_221 = arith.constant 3 : i32
    %c0_i32_222 = arith.constant 0 : i32
    %439 = tpu.memref_slice %arg2[%432, %c0_i32_222] : memref<64x128xf32, #tpu.memory_space<any>> -> memref<1x128xf32, #tpu.memory_space<any>>
    %440 = tpu.memref_squeeze %439 : memref<1x128xf32, #tpu.memory_space<any>> -> memref<128xf32, #tpu.memory_space<any>>
    %c0_i32_223 = arith.constant 0 : i32
    %441 = tpu.memref_slice %arg3[%c35_i32_220, %c0_i32_223] : memref<64x128xf32, #tpu.memory_space<vmem>> -> memref<1x128xf32, #tpu.memory_space<vmem>>
    %442 = tpu.memref_squeeze %441 : memref<1x128xf32, #tpu.memory_space<vmem>> -> memref<128xf32, #tpu.memory_space<vmem>>
    %443 = tpu.memref_slice %arg4[%c3_i32_221] : memref<16x!tpu.dma_semaphore, #tpu.memory_space<semaphore_mem>> -> memref<1x!tpu.dma_semaphore, #tpu.memory_space<semaphore_mem>>
    %444 = tpu.memref_squeeze %443 : memref<1x!tpu.dma_semaphore, #tpu.memory_space<semaphore_mem>> -> memref<!tpu.dma_semaphore, #tpu.memory_space<semaphore_mem>>
    tpu.enqueue_dma source(%440 : memref<128xf32, #tpu.memory_space<any>>) target(%442 : memref<128xf32, #tpu.memory_space<vmem>>) target_semaphore(%444 : memref<!tpu.dma_semaphore, #tpu.memory_space<semaphore_mem>>)
    %c36_i32 = arith.constant 36 : i32
    %445 = arith.addi %0, %c36_i32 : i32
    %446 = arith.index_cast %445 : i32 to index
    %447 = memref.load %arg1[%446] : memref<64xi32, #tpu.memory_space<smem>>
    %c20_i32_224 = arith.constant 20 : i32
    %c4_i32_225 = arith.constant 4 : i32
    %c0_i32_226 = arith.constant 0 : i32
    %448 = tpu.memref_slice %arg2[%207, %c0_i32_226] : memref<64x128xf32, #tpu.memory_space<any>> -> memref<1x128xf32, #tpu.memory_space<any>>
    %449 = tpu.memref_squeeze %448 : memref<1x128xf32, #tpu.memory_space<any>> -> memref<128xf32, #tpu.memory_space<any>>
    %c0_i32_227 = arith.constant 0 : i32
    %450 = tpu.memref_slice %arg3[%c20_i32_224, %c0_i32_227] : memref<64x128xf32, #tpu.memory_space<vmem>> -> memref<1x128xf32, #tpu.memory_space<vmem>>
    %451 = tpu.memref_squeeze %450 : memref<1x128xf32, #tpu.memory_space<vmem>> -> memref<128xf32, #tpu.memory_space<vmem>>
    %452 = tpu.memref_slice %arg4[%c4_i32_225] : memref<16x!tpu.dma_semaphore, #tpu.memory_space<semaphore_mem>> -> memref<1x!tpu.dma_semaphore, #tpu.memory_space<semaphore_mem>>
    %453 = tpu.memref_squeeze %452 : memref<1x!tpu.dma_semaphore, #tpu.memory_space<semaphore_mem>> -> memref<!tpu.dma_semaphore, #tpu.memory_space<semaphore_mem>>
    tpu.wait_dma2 semaphore(%453 : memref<!tpu.dma_semaphore, #tpu.memory_space<semaphore_mem>>) src(%449 : memref<128xf32, #tpu.memory_space<any>>) dst(%451 : memref<128xf32, #tpu.memory_space<vmem>>)
    %c36_i32_228 = arith.constant 36 : i32
    %c4_i32_229 = arith.constant 4 : i32
    %c0_i32_230 = arith.constant 0 : i32
    %454 = tpu.memref_slice %arg2[%447, %c0_i32_230] : memref<64x128xf32, #tpu.memory_space<any>> -> memref<1x128xf32, #tpu.memory_space<any>>
    %455 = tpu.memref_squeeze %454 : memref<1x128xf32, #tpu.memory_space<any>> -> memref<128xf32, #tpu.memory_space<any>>
    %c0_i32_231 = arith.constant 0 : i32
    %456 = tpu.memref_slice %arg3[%c36_i32_228, %c0_i32_231] : memref<64x128xf32, #tpu.memory_space<vmem>> -> memref<1x128xf32, #tpu.memory_space<vmem>>
    %457 = tpu.memref_squeeze %456 : memref<1x128xf32, #tpu.memory_space<vmem>> -> memref<128xf32, #tpu.memory_space<vmem>>
    %458 = tpu.memref_slice %arg4[%c4_i32_229] : memref<16x!tpu.dma_semaphore, #tpu.memory_space<semaphore_mem>> -> memref<1x!tpu.dma_semaphore, #tpu.memory_space<semaphore_mem>>
    %459 = tpu.memref_squeeze %458 : memref<1x!tpu.dma_semaphore, #tpu.memory_space<semaphore_mem>> -> memref<!tpu.dma_semaphore, #tpu.memory_space<semaphore_mem>>
    tpu.enqueue_dma source(%455 : memref<128xf32, #tpu.memory_space<any>>) target(%457 : memref<128xf32, #tpu.memory_space<vmem>>) target_semaphore(%459 : memref<!tpu.dma_semaphore, #tpu.memory_space<semaphore_mem>>)
    %c37_i32 = arith.constant 37 : i32
    %460 = arith.addi %0, %c37_i32 : i32
    %461 = arith.index_cast %460 : i32 to index
    %462 = memref.load %arg1[%461] : memref<64xi32, #tpu.memory_space<smem>>
    %c21_i32_232 = arith.constant 21 : i32
    %c5_i32_233 = arith.constant 5 : i32
    %c0_i32_234 = arith.constant 0 : i32
    %463 = tpu.memref_slice %arg2[%222, %c0_i32_234] : memref<64x128xf32, #tpu.memory_space<any>> -> memref<1x128xf32, #tpu.memory_space<any>>
    %464 = tpu.memref_squeeze %463 : memref<1x128xf32, #tpu.memory_space<any>> -> memref<128xf32, #tpu.memory_space<any>>
    %c0_i32_235 = arith.constant 0 : i32
    %465 = tpu.memref_slice %arg3[%c21_i32_232, %c0_i32_235] : memref<64x128xf32, #tpu.memory_space<vmem>> -> memref<1x128xf32, #tpu.memory_space<vmem>>
    %466 = tpu.memref_squeeze %465 : memref<1x128xf32, #tpu.memory_space<vmem>> -> memref<128xf32, #tpu.memory_space<vmem>>
    %467 = tpu.memref_slice %arg4[%c5_i32_233] : memref<16x!tpu.dma_semaphore, #tpu.memory_space<semaphore_mem>> -> memref<1x!tpu.dma_semaphore, #tpu.memory_space<semaphore_mem>>
    %468 = tpu.memref_squeeze %467 : memref<1x!tpu.dma_semaphore, #tpu.memory_space<semaphore_mem>> -> memref<!tpu.dma_semaphore, #tpu.memory_space<semaphore_mem>>
    tpu.wait_dma2 semaphore(%468 : memref<!tpu.dma_semaphore, #tpu.memory_space<semaphore_mem>>) src(%464 : memref<128xf32, #tpu.memory_space<any>>) dst(%466 : memref<128xf32, #tpu.memory_space<vmem>>)
    %c37_i32_236 = arith.constant 37 : i32
    %c5_i32_237 = arith.constant 5 : i32
    %c0_i32_238 = arith.constant 0 : i32
    %469 = tpu.memref_slice %arg2[%462, %c0_i32_238] : memref<64x128xf32, #tpu.memory_space<any>> -> memref<1x128xf32, #tpu.memory_space<any>>
    %470 = tpu.memref_squeeze %469 : memref<1x128xf32, #tpu.memory_space<any>> -> memref<128xf32, #tpu.memory_space<any>>
    %c0_i32_239 = arith.constant 0 : i32
    %471 = tpu.memref_slice %arg3[%c37_i32_236, %c0_i32_239] : memref<64x128xf32, #tpu.memory_space<vmem>> -> memref<1x128xf32, #tpu.memory_space<vmem>>
    %472 = tpu.memref_squeeze %471 : memref<1x128xf32, #tpu.memory_space<vmem>> -> memref<128xf32, #tpu.memory_space<vmem>>
    %473 = tpu.memref_slice %arg4[%c5_i32_237] : memref<16x!tpu.dma_semaphore, #tpu.memory_space<semaphore_mem>> -> memref<1x!tpu.dma_semaphore, #tpu.memory_space<semaphore_mem>>
    %474 = tpu.memref_squeeze %473 : memref<1x!tpu.dma_semaphore, #tpu.memory_space<semaphore_mem>> -> memref<!tpu.dma_semaphore, #tpu.memory_space<semaphore_mem>>
    tpu.enqueue_dma source(%470 : memref<128xf32, #tpu.memory_space<any>>) target(%472 : memref<128xf32, #tpu.memory_space<vmem>>) target_semaphore(%474 : memref<!tpu.dma_semaphore, #tpu.memory_space<semaphore_mem>>)
    %c38_i32 = arith.constant 38 : i32
    %475 = arith.addi %0, %c38_i32 : i32
    %476 = arith.index_cast %475 : i32 to index
    %477 = memref.load %arg1[%476] : memref<64xi32, #tpu.memory_space<smem>>
    %c22_i32_240 = arith.constant 22 : i32
    %c6_i32_241 = arith.constant 6 : i32
    %c0_i32_242 = arith.constant 0 : i32
    %478 = tpu.memref_slice %arg2[%237, %c0_i32_242] : memref<64x128xf32, #tpu.memory_space<any>> -> memref<1x128xf32, #tpu.memory_space<any>>
    %479 = tpu.memref_squeeze %478 : memref<1x128xf32, #tpu.memory_space<any>> -> memref<128xf32, #tpu.memory_space<any>>
    %c0_i32_243 = arith.constant 0 : i32
    %480 = tpu.memref_slice %arg3[%c22_i32_240, %c0_i32_243] : memref<64x128xf32, #tpu.memory_space<vmem>> -> memref<1x128xf32, #tpu.memory_space<vmem>>
    %481 = tpu.memref_squeeze %480 : memref<1x128xf32, #tpu.memory_space<vmem>> -> memref<128xf32, #tpu.memory_space<vmem>>
    %482 = tpu.memref_slice %arg4[%c6_i32_241] : memref<16x!tpu.dma_semaphore, #tpu.memory_space<semaphore_mem>> -> memref<1x!tpu.dma_semaphore, #tpu.memory_space<semaphore_mem>>
    %483 = tpu.memref_squeeze %482 : memref<1x!tpu.dma_semaphore, #tpu.memory_space<semaphore_mem>> -> memref<!tpu.dma_semaphore, #tpu.memory_space<semaphore_mem>>
    tpu.wait_dma2 semaphore(%483 : memref<!tpu.dma_semaphore, #tpu.memory_space<semaphore_mem>>) src(%479 : memref<128xf32, #tpu.memory_space<any>>) dst(%481 : memref<128xf32, #tpu.memory_space<vmem>>)
    %c38_i32_244 = arith.constant 38 : i32
    %c6_i32_245 = arith.constant 6 : i32
    %c0_i32_246 = arith.constant 0 : i32
    %484 = tpu.memref_slice %arg2[%477, %c0_i32_246] : memref<64x128xf32, #tpu.memory_space<any>> -> memref<1x128xf32, #tpu.memory_space<any>>
    %485 = tpu.memref_squeeze %484 : memref<1x128xf32, #tpu.memory_space<any>> -> memref<128xf32, #tpu.memory_space<any>>
    %c0_i32_247 = arith.constant 0 : i32
    %486 = tpu.memref_slice %arg3[%c38_i32_244, %c0_i32_247] : memref<64x128xf32, #tpu.memory_space<vmem>> -> memref<1x128xf32, #tpu.memory_space<vmem>>
    %487 = tpu.memref_squeeze %486 : memref<1x128xf32, #tpu.memory_space<vmem>> -> memref<128xf32, #tpu.memory_space<vmem>>
    %488 = tpu.memref_slice %arg4[%c6_i32_245] : memref<16x!tpu.dma_semaphore, #tpu.memory_space<semaphore_mem>> -> memref<1x!tpu.dma_semaphore, #tpu.memory_space<semaphore_mem>>
    %489 = tpu.memref_squeeze %488 : memref<1x!tpu.dma_semaphore, #tpu.memory_space<semaphore_mem>> -> memref<!tpu.dma_semaphore, #tpu.memory_space<semaphore_mem>>
    tpu.enqueue_dma source(%485 : memref<128xf32, #tpu.memory_space<any>>) target(%487 : memref<128xf32, #tpu.memory_space<vmem>>) target_semaphore(%489 : memref<!tpu.dma_semaphore, #tpu.memory_space<semaphore_mem>>)
    %c39_i32 = arith.constant 39 : i32
    %490 = arith.addi %0, %c39_i32 : i32
    %491 = arith.index_cast %490 : i32 to index
    %492 = memref.load %arg1[%491] : memref<64xi32, #tpu.memory_space<smem>>
    %c23_i32_248 = arith.constant 23 : i32
    %c7_i32_249 = arith.constant 7 : i32
    %c0_i32_250 = arith.constant 0 : i32
    %493 = tpu.memref_slice %arg2[%252, %c0_i32_250] : memref<64x128xf32, #tpu.memory_space<any>> -> memref<1x128xf32, #tpu.memory_space<any>>
    %494 = tpu.memref_squeeze %493 : memref<1x128xf32, #tpu.memory_space<any>> -> memref<128xf32, #tpu.memory_space<any>>
    %c0_i32_251 = arith.constant 0 : i32
    %495 = tpu.memref_slice %arg3[%c23_i32_248, %c0_i32_251] : memref<64x128xf32, #tpu.memory_space<vmem>> -> memref<1x128xf32, #tpu.memory_space<vmem>>
    %496 = tpu.memref_squeeze %495 : memref<1x128xf32, #tpu.memory_space<vmem>> -> memref<128xf32, #tpu.memory_space<vmem>>
    %497 = tpu.memref_slice %arg4[%c7_i32_249] : memref<16x!tpu.dma_semaphore, #tpu.memory_space<semaphore_mem>> -> memref<1x!tpu.dma_semaphore, #tpu.memory_space<semaphore_mem>>
    %498 = tpu.memref_squeeze %497 : memref<1x!tpu.dma_semaphore, #tpu.memory_space<semaphore_mem>> -> memref<!tpu.dma_semaphore, #tpu.memory_space<semaphore_mem>>
    tpu.wait_dma2 semaphore(%498 : memref<!tpu.dma_semaphore, #tpu.memory_space<semaphore_mem>>) src(%494 : memref<128xf32, #tpu.memory_space<any>>) dst(%496 : memref<128xf32, #tpu.memory_space<vmem>>)
    %c39_i32_252 = arith.constant 39 : i32
    %c7_i32_253 = arith.constant 7 : i32
    %c0_i32_254 = arith.constant 0 : i32
    %499 = tpu.memref_slice %arg2[%492, %c0_i32_254] : memref<64x128xf32, #tpu.memory_space<any>> -> memref<1x128xf32, #tpu.memory_space<any>>
    %500 = tpu.memref_squeeze %499 : memref<1x128xf32, #tpu.memory_space<any>> -> memref<128xf32, #tpu.memory_space<any>>
    %c0_i32_255 = arith.constant 0 : i32
    %501 = tpu.memref_slice %arg3[%c39_i32_252, %c0_i32_255] : memref<64x128xf32, #tpu.memory_space<vmem>> -> memref<1x128xf32, #tpu.memory_space<vmem>>
    %502 = tpu.memref_squeeze %501 : memref<1x128xf32, #tpu.memory_space<vmem>> -> memref<128xf32, #tpu.memory_space<vmem>>
    %503 = tpu.memref_slice %arg4[%c7_i32_253] : memref<16x!tpu.dma_semaphore, #tpu.memory_space<semaphore_mem>> -> memref<1x!tpu.dma_semaphore, #tpu.memory_space<semaphore_mem>>
    %504 = tpu.memref_squeeze %503 : memref<1x!tpu.dma_semaphore, #tpu.memory_space<semaphore_mem>> -> memref<!tpu.dma_semaphore, #tpu.memory_space<semaphore_mem>>
    tpu.enqueue_dma source(%500 : memref<128xf32, #tpu.memory_space<any>>) target(%502 : memref<128xf32, #tpu.memory_space<vmem>>) target_semaphore(%504 : memref<!tpu.dma_semaphore, #tpu.memory_space<semaphore_mem>>)
    %c40_i32 = arith.constant 40 : i32
    %505 = arith.addi %0, %c40_i32 : i32
    %506 = arith.index_cast %505 : i32 to index
    %507 = memref.load %arg1[%506] : memref<64xi32, #tpu.memory_space<smem>>
    %c24_i32_256 = arith.constant 24 : i32
    %c8_i32_257 = arith.constant 8 : i32
    %c0_i32_258 = arith.constant 0 : i32
    %508 = tpu.memref_slice %arg2[%267, %c0_i32_258] : memref<64x128xf32, #tpu.memory_space<any>> -> memref<1x128xf32, #tpu.memory_space<any>>
    %509 = tpu.memref_squeeze %508 : memref<1x128xf32, #tpu.memory_space<any>> -> memref<128xf32, #tpu.memory_space<any>>
    %c0_i32_259 = arith.constant 0 : i32
    %510 = tpu.memref_slice %arg3[%c24_i32_256, %c0_i32_259] : memref<64x128xf32, #tpu.memory_space<vmem>> -> memref<1x128xf32, #tpu.memory_space<vmem>>
    %511 = tpu.memref_squeeze %510 : memref<1x128xf32, #tpu.memory_space<vmem>> -> memref<128xf32, #tpu.memory_space<vmem>>
    %512 = tpu.memref_slice %arg4[%c8_i32_257] : memref<16x!tpu.dma_semaphore, #tpu.memory_space<semaphore_mem>> -> memref<1x!tpu.dma_semaphore, #tpu.memory_space<semaphore_mem>>
    %513 = tpu.memref_squeeze %512 : memref<1x!tpu.dma_semaphore, #tpu.memory_space<semaphore_mem>> -> memref<!tpu.dma_semaphore, #tpu.memory_space<semaphore_mem>>
    tpu.wait_dma2 semaphore(%513 : memref<!tpu.dma_semaphore, #tpu.memory_space<semaphore_mem>>) src(%509 : memref<128xf32, #tpu.memory_space<any>>) dst(%511 : memref<128xf32, #tpu.memory_space<vmem>>)
    %c40_i32_260 = arith.constant 40 : i32
    %c8_i32_261 = arith.constant 8 : i32
    %c0_i32_262 = arith.constant 0 : i32
    %514 = tpu.memref_slice %arg2[%507, %c0_i32_262] : memref<64x128xf32, #tpu.memory_space<any>> -> memref<1x128xf32, #tpu.memory_space<any>>
    %515 = tpu.memref_squeeze %514 : memref<1x128xf32, #tpu.memory_space<any>> -> memref<128xf32, #tpu.memory_space<any>>
    %c0_i32_263 = arith.constant 0 : i32
    %516 = tpu.memref_slice %arg3[%c40_i32_260, %c0_i32_263] : memref<64x128xf32, #tpu.memory_space<vmem>> -> memref<1x128xf32, #tpu.memory_space<vmem>>
    %517 = tpu.memref_squeeze %516 : memref<1x128xf32, #tpu.memory_space<vmem>> -> memref<128xf32, #tpu.memory_space<vmem>>
    %518 = tpu.memref_slice %arg4[%c8_i32_261] : memref<16x!tpu.dma_semaphore, #tpu.memory_space<semaphore_mem>> -> memref<1x!tpu.dma_semaphore, #tpu.memory_space<semaphore_mem>>
    %519 = tpu.memref_squeeze %518 : memref<1x!tpu.dma_semaphore, #tpu.memory_space<semaphore_mem>> -> memref<!tpu.dma_semaphore, #tpu.memory_space<semaphore_mem>>
    tpu.enqueue_dma source(%515 : memref<128xf32, #tpu.memory_space<any>>) target(%517 : memref<128xf32, #tpu.memory_space<vmem>>) target_semaphore(%519 : memref<!tpu.dma_semaphore, #tpu.memory_space<semaphore_mem>>)
    %c41_i32 = arith.constant 41 : i32
    %520 = arith.addi %0, %c41_i32 : i32
    %521 = arith.index_cast %520 : i32 to index
    %522 = memref.load %arg1[%521] : memref<64xi32, #tpu.memory_space<smem>>
    %c25_i32_264 = arith.constant 25 : i32
    %c9_i32_265 = arith.constant 9 : i32
    %c0_i32_266 = arith.constant 0 : i32
    %523 = tpu.memref_slice %arg2[%282, %c0_i32_266] : memref<64x128xf32, #tpu.memory_space<any>> -> memref<1x128xf32, #tpu.memory_space<any>>
    %524 = tpu.memref_squeeze %523 : memref<1x128xf32, #tpu.memory_space<any>> -> memref<128xf32, #tpu.memory_space<any>>
    %c0_i32_267 = arith.constant 0 : i32
    %525 = tpu.memref_slice %arg3[%c25_i32_264, %c0_i32_267] : memref<64x128xf32, #tpu.memory_space<vmem>> -> memref<1x128xf32, #tpu.memory_space<vmem>>
    %526 = tpu.memref_squeeze %525 : memref<1x128xf32, #tpu.memory_space<vmem>> -> memref<128xf32, #tpu.memory_space<vmem>>
    %527 = tpu.memref_slice %arg4[%c9_i32_265] : memref<16x!tpu.dma_semaphore, #tpu.memory_space<semaphore_mem>> -> memref<1x!tpu.dma_semaphore, #tpu.memory_space<semaphore_mem>>
    %528 = tpu.memref_squeeze %527 : memref<1x!tpu.dma_semaphore, #tpu.memory_space<semaphore_mem>> -> memref<!tpu.dma_semaphore, #tpu.memory_space<semaphore_mem>>
    tpu.wait_dma2 semaphore(%528 : memref<!tpu.dma_semaphore, #tpu.memory_space<semaphore_mem>>) src(%524 : memref<128xf32, #tpu.memory_space<any>>) dst(%526 : memref<128xf32, #tpu.memory_space<vmem>>)
    %c41_i32_268 = arith.constant 41 : i32
    %c9_i32_269 = arith.constant 9 : i32
    %c0_i32_270 = arith.constant 0 : i32
    %529 = tpu.memref_slice %arg2[%522, %c0_i32_270] : memref<64x128xf32, #tpu.memory_space<any>> -> memref<1x128xf32, #tpu.memory_space<any>>
    %530 = tpu.memref_squeeze %529 : memref<1x128xf32, #tpu.memory_space<any>> -> memref<128xf32, #tpu.memory_space<any>>
    %c0_i32_271 = arith.constant 0 : i32
    %531 = tpu.memref_slice %arg3[%c41_i32_268, %c0_i32_271] : memref<64x128xf32, #tpu.memory_space<vmem>> -> memref<1x128xf32, #tpu.memory_space<vmem>>
    %532 = tpu.memref_squeeze %531 : memref<1x128xf32, #tpu.memory_space<vmem>> -> memref<128xf32, #tpu.memory_space<vmem>>
    %533 = tpu.memref_slice %arg4[%c9_i32_269] : memref<16x!tpu.dma_semaphore, #tpu.memory_space<semaphore_mem>> -> memref<1x!tpu.dma_semaphore, #tpu.memory_space<semaphore_mem>>
    %534 = tpu.memref_squeeze %533 : memref<1x!tpu.dma_semaphore, #tpu.memory_space<semaphore_mem>> -> memref<!tpu.dma_semaphore, #tpu.memory_space<semaphore_mem>>
    tpu.enqueue_dma source(%530 : memref<128xf32, #tpu.memory_space<any>>) target(%532 : memref<128xf32, #tpu.memory_space<vmem>>) target_semaphore(%534 : memref<!tpu.dma_semaphore, #tpu.memory_space<semaphore_mem>>)
    %c42_i32 = arith.constant 42 : i32
    %535 = arith.addi %0, %c42_i32 : i32
    %536 = arith.index_cast %535 : i32 to index
    %537 = memref.load %arg1[%536] : memref<64xi32, #tpu.memory_space<smem>>
    %c26_i32_272 = arith.constant 26 : i32
    %c10_i32_273 = arith.constant 10 : i32
    %c0_i32_274 = arith.constant 0 : i32
    %538 = tpu.memref_slice %arg2[%297, %c0_i32_274] : memref<64x128xf32, #tpu.memory_space<any>> -> memref<1x128xf32, #tpu.memory_space<any>>
    %539 = tpu.memref_squeeze %538 : memref<1x128xf32, #tpu.memory_space<any>> -> memref<128xf32, #tpu.memory_space<any>>
    %c0_i32_275 = arith.constant 0 : i32
    %540 = tpu.memref_slice %arg3[%c26_i32_272, %c0_i32_275] : memref<64x128xf32, #tpu.memory_space<vmem>> -> memref<1x128xf32, #tpu.memory_space<vmem>>
    %541 = tpu.memref_squeeze %540 : memref<1x128xf32, #tpu.memory_space<vmem>> -> memref<128xf32, #tpu.memory_space<vmem>>
    %542 = tpu.memref_slice %arg4[%c10_i32_273] : memref<16x!tpu.dma_semaphore, #tpu.memory_space<semaphore_mem>> -> memref<1x!tpu.dma_semaphore, #tpu.memory_space<semaphore_mem>>
    %543 = tpu.memref_squeeze %542 : memref<1x!tpu.dma_semaphore, #tpu.memory_space<semaphore_mem>> -> memref<!tpu.dma_semaphore, #tpu.memory_space<semaphore_mem>>
    tpu.wait_dma2 semaphore(%543 : memref<!tpu.dma_semaphore, #tpu.memory_space<semaphore_mem>>) src(%539 : memref<128xf32, #tpu.memory_space<any>>) dst(%541 : memref<128xf32, #tpu.memory_space<vmem>>)
    %c42_i32_276 = arith.constant 42 : i32
    %c10_i32_277 = arith.constant 10 : i32
    %c0_i32_278 = arith.constant 0 : i32
    %544 = tpu.memref_slice %arg2[%537, %c0_i32_278] : memref<64x128xf32, #tpu.memory_space<any>> -> memref<1x128xf32, #tpu.memory_space<any>>
    %545 = tpu.memref_squeeze %544 : memref<1x128xf32, #tpu.memory_space<any>> -> memref<128xf32, #tpu.memory_space<any>>
    %c0_i32_279 = arith.constant 0 : i32
    %546 = tpu.memref_slice %arg3[%c42_i32_276, %c0_i32_279] : memref<64x128xf32, #tpu.memory_space<vmem>> -> memref<1x128xf32, #tpu.memory_space<vmem>>
    %547 = tpu.memref_squeeze %546 : memref<1x128xf32, #tpu.memory_space<vmem>> -> memref<128xf32, #tpu.memory_space<vmem>>
    %548 = tpu.memref_slice %arg4[%c10_i32_277] : memref<16x!tpu.dma_semaphore, #tpu.memory_space<semaphore_mem>> -> memref<1x!tpu.dma_semaphore, #tpu.memory_space<semaphore_mem>>
    %549 = tpu.memref_squeeze %548 : memref<1x!tpu.dma_semaphore, #tpu.memory_space<semaphore_mem>> -> memref<!tpu.dma_semaphore, #tpu.memory_space<semaphore_mem>>
    tpu.enqueue_dma source(%545 : memref<128xf32, #tpu.memory_space<any>>) target(%547 : memref<128xf32, #tpu.memory_space<vmem>>) target_semaphore(%549 : memref<!tpu.dma_semaphore, #tpu.memory_space<semaphore_mem>>)
    %c43_i32 = arith.constant 43 : i32
    %550 = arith.addi %0, %c43_i32 : i32
    %551 = arith.index_cast %550 : i32 to index
    %552 = memref.load %arg1[%551] : memref<64xi32, #tpu.memory_space<smem>>
    %c27_i32_280 = arith.constant 27 : i32
    %c11_i32_281 = arith.constant 11 : i32
    %c0_i32_282 = arith.constant 0 : i32
    %553 = tpu.memref_slice %arg2[%312, %c0_i32_282] : memref<64x128xf32, #tpu.memory_space<any>> -> memref<1x128xf32, #tpu.memory_space<any>>
    %554 = tpu.memref_squeeze %553 : memref<1x128xf32, #tpu.memory_space<any>> -> memref<128xf32, #tpu.memory_space<any>>
    %c0_i32_283 = arith.constant 0 : i32
    %555 = tpu.memref_slice %arg3[%c27_i32_280, %c0_i32_283] : memref<64x128xf32, #tpu.memory_space<vmem>> -> memref<1x128xf32, #tpu.memory_space<vmem>>
    %556 = tpu.memref_squeeze %555 : memref<1x128xf32, #tpu.memory_space<vmem>> -> memref<128xf32, #tpu.memory_space<vmem>>
    %557 = tpu.memref_slice %arg4[%c11_i32_281] : memref<16x!tpu.dma_semaphore, #tpu.memory_space<semaphore_mem>> -> memref<1x!tpu.dma_semaphore, #tpu.memory_space<semaphore_mem>>
    %558 = tpu.memref_squeeze %557 : memref<1x!tpu.dma_semaphore, #tpu.memory_space<semaphore_mem>> -> memref<!tpu.dma_semaphore, #tpu.memory_space<semaphore_mem>>
    tpu.wait_dma2 semaphore(%558 : memref<!tpu.dma_semaphore, #tpu.memory_space<semaphore_mem>>) src(%554 : memref<128xf32, #tpu.memory_space<any>>) dst(%556 : memref<128xf32, #tpu.memory_space<vmem>>)
    %c43_i32_284 = arith.constant 43 : i32
    %c11_i32_285 = arith.constant 11 : i32
    %c0_i32_286 = arith.constant 0 : i32
    %559 = tpu.memref_slice %arg2[%552, %c0_i32_286] : memref<64x128xf32, #tpu.memory_space<any>> -> memref<1x128xf32, #tpu.memory_space<any>>
    %560 = tpu.memref_squeeze %559 : memref<1x128xf32, #tpu.memory_space<any>> -> memref<128xf32, #tpu.memory_space<any>>
    %c0_i32_287 = arith.constant 0 : i32
    %561 = tpu.memref_slice %arg3[%c43_i32_284, %c0_i32_287] : memref<64x128xf32, #tpu.memory_space<vmem>> -> memref<1x128xf32, #tpu.memory_space<vmem>>
    %562 = tpu.memref_squeeze %561 : memref<1x128xf32, #tpu.memory_space<vmem>> -> memref<128xf32, #tpu.memory_space<vmem>>
    %563 = tpu.memref_slice %arg4[%c11_i32_285] : memref<16x!tpu.dma_semaphore, #tpu.memory_space<semaphore_mem>> -> memref<1x!tpu.dma_semaphore, #tpu.memory_space<semaphore_mem>>
    %564 = tpu.memref_squeeze %563 : memref<1x!tpu.dma_semaphore, #tpu.memory_space<semaphore_mem>> -> memref<!tpu.dma_semaphore, #tpu.memory_space<semaphore_mem>>
    tpu.enqueue_dma source(%560 : memref<128xf32, #tpu.memory_space<any>>) target(%562 : memref<128xf32, #tpu.memory_space<vmem>>) target_semaphore(%564 : memref<!tpu.dma_semaphore, #tpu.memory_space<semaphore_mem>>)
    %c44_i32 = arith.constant 44 : i32
    %565 = arith.addi %0, %c44_i32 : i32
    %566 = arith.index_cast %565 : i32 to index
    %567 = memref.load %arg1[%566] : memref<64xi32, #tpu.memory_space<smem>>
    %c28_i32_288 = arith.constant 28 : i32
    %c12_i32_289 = arith.constant 12 : i32
    %c0_i32_290 = arith.constant 0 : i32
    %568 = tpu.memref_slice %arg2[%327, %c0_i32_290] : memref<64x128xf32, #tpu.memory_space<any>> -> memref<1x128xf32, #tpu.memory_space<any>>
    %569 = tpu.memref_squeeze %568 : memref<1x128xf32, #tpu.memory_space<any>> -> memref<128xf32, #tpu.memory_space<any>>
    %c0_i32_291 = arith.constant 0 : i32
    %570 = tpu.memref_slice %arg3[%c28_i32_288, %c0_i32_291] : memref<64x128xf32, #tpu.memory_space<vmem>> -> memref<1x128xf32, #tpu.memory_space<vmem>>
    %571 = tpu.memref_squeeze %570 : memref<1x128xf32, #tpu.memory_space<vmem>> -> memref<128xf32, #tpu.memory_space<vmem>>
    %572 = tpu.memref_slice %arg4[%c12_i32_289] : memref<16x!tpu.dma_semaphore, #tpu.memory_space<semaphore_mem>> -> memref<1x!tpu.dma_semaphore, #tpu.memory_space<semaphore_mem>>
    %573 = tpu.memref_squeeze %572 : memref<1x!tpu.dma_semaphore, #tpu.memory_space<semaphore_mem>> -> memref<!tpu.dma_semaphore, #tpu.memory_space<semaphore_mem>>
    tpu.wait_dma2 semaphore(%573 : memref<!tpu.dma_semaphore, #tpu.memory_space<semaphore_mem>>) src(%569 : memref<128xf32, #tpu.memory_space<any>>) dst(%571 : memref<128xf32, #tpu.memory_space<vmem>>)
    %c44_i32_292 = arith.constant 44 : i32
    %c12_i32_293 = arith.constant 12 : i32
    %c0_i32_294 = arith.constant 0 : i32
    %574 = tpu.memref_slice %arg2[%567, %c0_i32_294] : memref<64x128xf32, #tpu.memory_space<any>> -> memref<1x128xf32, #tpu.memory_space<any>>
    %575 = tpu.memref_squeeze %574 : memref<1x128xf32, #tpu.memory_space<any>> -> memref<128xf32, #tpu.memory_space<any>>
    %c0_i32_295 = arith.constant 0 : i32
    %576 = tpu.memref_slice %arg3[%c44_i32_292, %c0_i32_295] : memref<64x128xf32, #tpu.memory_space<vmem>> -> memref<1x128xf32, #tpu.memory_space<vmem>>
    %577 = tpu.memref_squeeze %576 : memref<1x128xf32, #tpu.memory_space<vmem>> -> memref<128xf32, #tpu.memory_space<vmem>>
    %578 = tpu.memref_slice %arg4[%c12_i32_293] : memref<16x!tpu.dma_semaphore, #tpu.memory_space<semaphore_mem>> -> memref<1x!tpu.dma_semaphore, #tpu.memory_space<semaphore_mem>>
    %579 = tpu.memref_squeeze %578 : memref<1x!tpu.dma_semaphore, #tpu.memory_space<semaphore_mem>> -> memref<!tpu.dma_semaphore, #tpu.memory_space<semaphore_mem>>
    tpu.enqueue_dma source(%575 : memref<128xf32, #tpu.memory_space<any>>) target(%577 : memref<128xf32, #tpu.memory_space<vmem>>) target_semaphore(%579 : memref<!tpu.dma_semaphore, #tpu.memory_space<semaphore_mem>>)
    %c45_i32 = arith.constant 45 : i32
    %580 = arith.addi %0, %c45_i32 : i32
    %581 = arith.index_cast %580 : i32 to index
    %582 = memref.load %arg1[%581] : memref<64xi32, #tpu.memory_space<smem>>
    %c29_i32_296 = arith.constant 29 : i32
    %c13_i32_297 = arith.constant 13 : i32
    %c0_i32_298 = arith.constant 0 : i32
    %583 = tpu.memref_slice %arg2[%342, %c0_i32_298] : memref<64x128xf32, #tpu.memory_space<any>> -> memref<1x128xf32, #tpu.memory_space<any>>
    %584 = tpu.memref_squeeze %583 : memref<1x128xf32, #tpu.memory_space<any>> -> memref<128xf32, #tpu.memory_space<any>>
    %c0_i32_299 = arith.constant 0 : i32
    %585 = tpu.memref_slice %arg3[%c29_i32_296, %c0_i32_299] : memref<64x128xf32, #tpu.memory_space<vmem>> -> memref<1x128xf32, #tpu.memory_space<vmem>>
    %586 = tpu.memref_squeeze %585 : memref<1x128xf32, #tpu.memory_space<vmem>> -> memref<128xf32, #tpu.memory_space<vmem>>
    %587 = tpu.memref_slice %arg4[%c13_i32_297] : memref<16x!tpu.dma_semaphore, #tpu.memory_space<semaphore_mem>> -> memref<1x!tpu.dma_semaphore, #tpu.memory_space<semaphore_mem>>
    %588 = tpu.memref_squeeze %587 : memref<1x!tpu.dma_semaphore, #tpu.memory_space<semaphore_mem>> -> memref<!tpu.dma_semaphore, #tpu.memory_space<semaphore_mem>>
    tpu.wait_dma2 semaphore(%588 : memref<!tpu.dma_semaphore, #tpu.memory_space<semaphore_mem>>) src(%584 : memref<128xf32, #tpu.memory_space<any>>) dst(%586 : memref<128xf32, #tpu.memory_space<vmem>>)
    %c45_i32_300 = arith.constant 45 : i32
    %c13_i32_301 = arith.constant 13 : i32
    %c0_i32_302 = arith.constant 0 : i32
    %589 = tpu.memref_slice %arg2[%582, %c0_i32_302] : memref<64x128xf32, #tpu.memory_space<any>> -> memref<1x128xf32, #tpu.memory_space<any>>
    %590 = tpu.memref_squeeze %589 : memref<1x128xf32, #tpu.memory_space<any>> -> memref<128xf32, #tpu.memory_space<any>>
    %c0_i32_303 = arith.constant 0 : i32
    %591 = tpu.memref_slice %arg3[%c45_i32_300, %c0_i32_303] : memref<64x128xf32, #tpu.memory_space<vmem>> -> memref<1x128xf32, #tpu.memory_space<vmem>>
    %592 = tpu.memref_squeeze %591 : memref<1x128xf32, #tpu.memory_space<vmem>> -> memref<128xf32, #tpu.memory_space<vmem>>
    %593 = tpu.memref_slice %arg4[%c13_i32_301] : memref<16x!tpu.dma_semaphore, #tpu.memory_space<semaphore_mem>> -> memref<1x!tpu.dma_semaphore, #tpu.memory_space<semaphore_mem>>
    %594 = tpu.memref_squeeze %593 : memref<1x!tpu.dma_semaphore, #tpu.memory_space<semaphore_mem>> -> memref<!tpu.dma_semaphore, #tpu.memory_space<semaphore_mem>>
    tpu.enqueue_dma source(%590 : memref<128xf32, #tpu.memory_space<any>>) target(%592 : memref<128xf32, #tpu.memory_space<vmem>>) target_semaphore(%594 : memref<!tpu.dma_semaphore, #tpu.memory_space<semaphore_mem>>)
    %c46_i32 = arith.constant 46 : i32
    %595 = arith.addi %0, %c46_i32 : i32
    %596 = arith.index_cast %595 : i32 to index
    %597 = memref.load %arg1[%596] : memref<64xi32, #tpu.memory_space<smem>>
    %c30_i32_304 = arith.constant 30 : i32
    %c14_i32_305 = arith.constant 14 : i32
    %c0_i32_306 = arith.constant 0 : i32
    %598 = tpu.memref_slice %arg2[%357, %c0_i32_306] : memref<64x128xf32, #tpu.memory_space<any>> -> memref<1x128xf32, #tpu.memory_space<any>>
    %599 = tpu.memref_squeeze %598 : memref<1x128xf32, #tpu.memory_space<any>> -> memref<128xf32, #tpu.memory_space<any>>
    %c0_i32_307 = arith.constant 0 : i32
    %600 = tpu.memref_slice %arg3[%c30_i32_304, %c0_i32_307] : memref<64x128xf32, #tpu.memory_space<vmem>> -> memref<1x128xf32, #tpu.memory_space<vmem>>
    %601 = tpu.memref_squeeze %600 : memref<1x128xf32, #tpu.memory_space<vmem>> -> memref<128xf32, #tpu.memory_space<vmem>>
    %602 = tpu.memref_slice %arg4[%c14_i32_305] : memref<16x!tpu.dma_semaphore, #tpu.memory_space<semaphore_mem>> -> memref<1x!tpu.dma_semaphore, #tpu.memory_space<semaphore_mem>>
    %603 = tpu.memref_squeeze %602 : memref<1x!tpu.dma_semaphore, #tpu.memory_space<semaphore_mem>> -> memref<!tpu.dma_semaphore, #tpu.memory_space<semaphore_mem>>
    tpu.wait_dma2 semaphore(%603 : memref<!tpu.dma_semaphore, #tpu.memory_space<semaphore_mem>>) src(%599 : memref<128xf32, #tpu.memory_space<any>>) dst(%601 : memref<128xf32, #tpu.memory_space<vmem>>)
    %c46_i32_308 = arith.constant 46 : i32
    %c14_i32_309 = arith.constant 14 : i32
    %c0_i32_310 = arith.constant 0 : i32
    %604 = tpu.memref_slice %arg2[%597, %c0_i32_310] : memref<64x128xf32, #tpu.memory_space<any>> -> memref<1x128xf32, #tpu.memory_space<any>>
    %605 = tpu.memref_squeeze %604 : memref<1x128xf32, #tpu.memory_space<any>> -> memref<128xf32, #tpu.memory_space<any>>
    %c0_i32_311 = arith.constant 0 : i32
    %606 = tpu.memref_slice %arg3[%c46_i32_308, %c0_i32_311] : memref<64x128xf32, #tpu.memory_space<vmem>> -> memref<1x128xf32, #tpu.memory_space<vmem>>
    %607 = tpu.memref_squeeze %606 : memref<1x128xf32, #tpu.memory_space<vmem>> -> memref<128xf32, #tpu.memory_space<vmem>>
    %608 = tpu.memref_slice %arg4[%c14_i32_309] : memref<16x!tpu.dma_semaphore, #tpu.memory_space<semaphore_mem>> -> memref<1x!tpu.dma_semaphore, #tpu.memory_space<semaphore_mem>>
    %609 = tpu.memref_squeeze %608 : memref<1x!tpu.dma_semaphore, #tpu.memory_space<semaphore_mem>> -> memref<!tpu.dma_semaphore, #tpu.memory_space<semaphore_mem>>
    tpu.enqueue_dma source(%605 : memref<128xf32, #tpu.memory_space<any>>) target(%607 : memref<128xf32, #tpu.memory_space<vmem>>) target_semaphore(%609 : memref<!tpu.dma_semaphore, #tpu.memory_space<semaphore_mem>>)
    %c47_i32 = arith.constant 47 : i32
    %610 = arith.addi %0, %c47_i32 : i32
    %611 = arith.index_cast %610 : i32 to index
    %612 = memref.load %arg1[%611] : memref<64xi32, #tpu.memory_space<smem>>
    %c31_i32_312 = arith.constant 31 : i32
    %c15_i32_313 = arith.constant 15 : i32
    %c0_i32_314 = arith.constant 0 : i32
    %613 = tpu.memref_slice %arg2[%372, %c0_i32_314] : memref<64x128xf32, #tpu.memory_space<any>> -> memref<1x128xf32, #tpu.memory_space<any>>
    %614 = tpu.memref_squeeze %613 : memref<1x128xf32, #tpu.memory_space<any>> -> memref<128xf32, #tpu.memory_space<any>>
    %c0_i32_315 = arith.constant 0 : i32
    %615 = tpu.memref_slice %arg3[%c31_i32_312, %c0_i32_315] : memref<64x128xf32, #tpu.memory_space<vmem>> -> memref<1x128xf32, #tpu.memory_space<vmem>>
    %616 = tpu.memref_squeeze %615 : memref<1x128xf32, #tpu.memory_space<vmem>> -> memref<128xf32, #tpu.memory_space<vmem>>
    %617 = tpu.memref_slice %arg4[%c15_i32_313] : memref<16x!tpu.dma_semaphore, #tpu.memory_space<semaphore_mem>> -> memref<1x!tpu.dma_semaphore, #tpu.memory_space<semaphore_mem>>
    %618 = tpu.memref_squeeze %617 : memref<1x!tpu.dma_semaphore, #tpu.memory_space<semaphore_mem>> -> memref<!tpu.dma_semaphore, #tpu.memory_space<semaphore_mem>>
    tpu.wait_dma2 semaphore(%618 : memref<!tpu.dma_semaphore, #tpu.memory_space<semaphore_mem>>) src(%614 : memref<128xf32, #tpu.memory_space<any>>) dst(%616 : memref<128xf32, #tpu.memory_space<vmem>>)
    %c47_i32_316 = arith.constant 47 : i32
    %c15_i32_317 = arith.constant 15 : i32
    %c0_i32_318 = arith.constant 0 : i32
    %619 = tpu.memref_slice %arg2[%612, %c0_i32_318] : memref<64x128xf32, #tpu.memory_space<any>> -> memref<1x128xf32, #tpu.memory_space<any>>
    %620 = tpu.memref_squeeze %619 : memref<1x128xf32, #tpu.memory_space<any>> -> memref<128xf32, #tpu.memory_space<any>>
    %c0_i32_319 = arith.constant 0 : i32
    %621 = tpu.memref_slice %arg3[%c47_i32_316, %c0_i32_319] : memref<64x128xf32, #tpu.memory_space<vmem>> -> memref<1x128xf32, #tpu.memory_space<vmem>>
    %622 = tpu.memref_squeeze %621 : memref<1x128xf32, #tpu.memory_space<vmem>> -> memref<128xf32, #tpu.memory_space<vmem>>
    %623 = tpu.memref_slice %arg4[%c15_i32_317] : memref<16x!tpu.dma_semaphore, #tpu.memory_space<semaphore_mem>> -> memref<1x!tpu.dma_semaphore, #tpu.memory_space<semaphore_mem>>
    %624 = tpu.memref_squeeze %623 : memref<1x!tpu.dma_semaphore, #tpu.memory_space<semaphore_mem>> -> memref<!tpu.dma_semaphore, #tpu.memory_space<semaphore_mem>>
    tpu.enqueue_dma source(%620 : memref<128xf32, #tpu.memory_space<any>>) target(%622 : memref<128xf32, #tpu.memory_space<vmem>>) target_semaphore(%624 : memref<!tpu.dma_semaphore, #tpu.memory_space<semaphore_mem>>)
    %c48_i32 = arith.constant 48 : i32
    %625 = arith.addi %0, %c48_i32 : i32
    %626 = arith.index_cast %625 : i32 to index
    %627 = memref.load %arg1[%626] : memref<64xi32, #tpu.memory_space<smem>>
    %c32_i32_320 = arith.constant 32 : i32
    %c0_i32_321 = arith.constant 0 : i32
    %c0_i32_322 = arith.constant 0 : i32
    %628 = tpu.memref_slice %arg2[%387, %c0_i32_322] : memref<64x128xf32, #tpu.memory_space<any>> -> memref<1x128xf32, #tpu.memory_space<any>>
    %629 = tpu.memref_squeeze %628 : memref<1x128xf32, #tpu.memory_space<any>> -> memref<128xf32, #tpu.memory_space<any>>
    %c0_i32_323 = arith.constant 0 : i32
    %630 = tpu.memref_slice %arg3[%c32_i32_320, %c0_i32_323] : memref<64x128xf32, #tpu.memory_space<vmem>> -> memref<1x128xf32, #tpu.memory_space<vmem>>
    %631 = tpu.memref_squeeze %630 : memref<1x128xf32, #tpu.memory_space<vmem>> -> memref<128xf32, #tpu.memory_space<vmem>>
    %632 = tpu.memref_slice %arg4[%c0_i32_321] : memref<16x!tpu.dma_semaphore, #tpu.memory_space<semaphore_mem>> -> memref<1x!tpu.dma_semaphore, #tpu.memory_space<semaphore_mem>>
    %633 = tpu.memref_squeeze %632 : memref<1x!tpu.dma_semaphore, #tpu.memory_space<semaphore_mem>> -> memref<!tpu.dma_semaphore, #tpu.memory_space<semaphore_mem>>
    tpu.wait_dma2 semaphore(%633 : memref<!tpu.dma_semaphore, #tpu.memory_space<semaphore_mem>>) src(%629 : memref<128xf32, #tpu.memory_space<any>>) dst(%631 : memref<128xf32, #tpu.memory_space<vmem>>)
    %c48_i32_324 = arith.constant 48 : i32
    %c0_i32_325 = arith.constant 0 : i32
    %c0_i32_326 = arith.constant 0 : i32
    %634 = tpu.memref_slice %arg2[%627, %c0_i32_326] : memref<64x128xf32, #tpu.memory_space<any>> -> memref<1x128xf32, #tpu.memory_space<any>>
    %635 = tpu.memref_squeeze %634 : memref<1x128xf32, #tpu.memory_space<any>> -> memref<128xf32, #tpu.memory_space<any>>
    %c0_i32_327 = arith.constant 0 : i32
    %636 = tpu.memref_slice %arg3[%c48_i32_324, %c0_i32_327] : memref<64x128xf32, #tpu.memory_space<vmem>> -> memref<1x128xf32, #tpu.memory_space<vmem>>
    %637 = tpu.memref_squeeze %636 : memref<1x128xf32, #tpu.memory_space<vmem>> -> memref<128xf32, #tpu.memory_space<vmem>>
    %638 = tpu.memref_slice %arg4[%c0_i32_325] : memref<16x!tpu.dma_semaphore, #tpu.memory_space<semaphore_mem>> -> memref<1x!tpu.dma_semaphore, #tpu.memory_space<semaphore_mem>>
    %639 = tpu.memref_squeeze %638 : memref<1x!tpu.dma_semaphore, #tpu.memory_space<semaphore_mem>> -> memref<!tpu.dma_semaphore, #tpu.memory_space<semaphore_mem>>
    tpu.enqueue_dma source(%635 : memref<128xf32, #tpu.memory_space<any>>) target(%637 : memref<128xf32, #tpu.memory_space<vmem>>) target_semaphore(%639 : memref<!tpu.dma_semaphore, #tpu.memory_space<semaphore_mem>>)
    %c49_i32 = arith.constant 49 : i32
    %640 = arith.addi %0, %c49_i32 : i32
    %641 = arith.index_cast %640 : i32 to index
    %642 = memref.load %arg1[%641] : memref<64xi32, #tpu.memory_space<smem>>
    %c33_i32_328 = arith.constant 33 : i32
    %c1_i32_329 = arith.constant 1 : i32
    %c0_i32_330 = arith.constant 0 : i32
    %643 = tpu.memref_slice %arg2[%402, %c0_i32_330] : memref<64x128xf32, #tpu.memory_space<any>> -> memref<1x128xf32, #tpu.memory_space<any>>
    %644 = tpu.memref_squeeze %643 : memref<1x128xf32, #tpu.memory_space<any>> -> memref<128xf32, #tpu.memory_space<any>>
    %c0_i32_331 = arith.constant 0 : i32
    %645 = tpu.memref_slice %arg3[%c33_i32_328, %c0_i32_331] : memref<64x128xf32, #tpu.memory_space<vmem>> -> memref<1x128xf32, #tpu.memory_space<vmem>>
    %646 = tpu.memref_squeeze %645 : memref<1x128xf32, #tpu.memory_space<vmem>> -> memref<128xf32, #tpu.memory_space<vmem>>
    %647 = tpu.memref_slice %arg4[%c1_i32_329] : memref<16x!tpu.dma_semaphore, #tpu.memory_space<semaphore_mem>> -> memref<1x!tpu.dma_semaphore, #tpu.memory_space<semaphore_mem>>
    %648 = tpu.memref_squeeze %647 : memref<1x!tpu.dma_semaphore, #tpu.memory_space<semaphore_mem>> -> memref<!tpu.dma_semaphore, #tpu.memory_space<semaphore_mem>>
    tpu.wait_dma2 semaphore(%648 : memref<!tpu.dma_semaphore, #tpu.memory_space<semaphore_mem>>) src(%644 : memref<128xf32, #tpu.memory_space<any>>) dst(%646 : memref<128xf32, #tpu.memory_space<vmem>>)
    %c49_i32_332 = arith.constant 49 : i32
    %c1_i32_333 = arith.constant 1 : i32
    %c0_i32_334 = arith.constant 0 : i32
    %649 = tpu.memref_slice %arg2[%642, %c0_i32_334] : memref<64x128xf32, #tpu.memory_space<any>> -> memref<1x128xf32, #tpu.memory_space<any>>
    %650 = tpu.memref_squeeze %649 : memref<1x128xf32, #tpu.memory_space<any>> -> memref<128xf32, #tpu.memory_space<any>>
    %c0_i32_335 = arith.constant 0 : i32
    %651 = tpu.memref_slice %arg3[%c49_i32_332, %c0_i32_335] : memref<64x128xf32, #tpu.memory_space<vmem>> -> memref<1x128xf32, #tpu.memory_space<vmem>>
    %652 = tpu.memref_squeeze %651 : memref<1x128xf32, #tpu.memory_space<vmem>> -> memref<128xf32, #tpu.memory_space<vmem>>
    %653 = tpu.memref_slice %arg4[%c1_i32_333] : memref<16x!tpu.dma_semaphore, #tpu.memory_space<semaphore_mem>> -> memref<1x!tpu.dma_semaphore, #tpu.memory_space<semaphore_mem>>
    %654 = tpu.memref_squeeze %653 : memref<1x!tpu.dma_semaphore, #tpu.memory_space<semaphore_mem>> -> memref<!tpu.dma_semaphore, #tpu.memory_space<semaphore_mem>>
    tpu.enqueue_dma source(%650 : memref<128xf32, #tpu.memory_space<any>>) target(%652 : memref<128xf32, #tpu.memory_space<vmem>>) target_semaphore(%654 : memref<!tpu.dma_semaphore, #tpu.memory_space<semaphore_mem>>)
    %c50_i32 = arith.constant 50 : i32
    %655 = arith.addi %0, %c50_i32 : i32
    %656 = arith.index_cast %655 : i32 to index
    %657 = memref.load %arg1[%656] : memref<64xi32, #tpu.memory_space<smem>>
    %c34_i32_336 = arith.constant 34 : i32
    %c2_i32_337 = arith.constant 2 : i32
    %c0_i32_338 = arith.constant 0 : i32
    %658 = tpu.memref_slice %arg2[%417, %c0_i32_338] : memref<64x128xf32, #tpu.memory_space<any>> -> memref<1x128xf32, #tpu.memory_space<any>>
    %659 = tpu.memref_squeeze %658 : memref<1x128xf32, #tpu.memory_space<any>> -> memref<128xf32, #tpu.memory_space<any>>
    %c0_i32_339 = arith.constant 0 : i32
    %660 = tpu.memref_slice %arg3[%c34_i32_336, %c0_i32_339] : memref<64x128xf32, #tpu.memory_space<vmem>> -> memref<1x128xf32, #tpu.memory_space<vmem>>
    %661 = tpu.memref_squeeze %660 : memref<1x128xf32, #tpu.memory_space<vmem>> -> memref<128xf32, #tpu.memory_space<vmem>>
    %662 = tpu.memref_slice %arg4[%c2_i32_337] : memref<16x!tpu.dma_semaphore, #tpu.memory_space<semaphore_mem>> -> memref<1x!tpu.dma_semaphore, #tpu.memory_space<semaphore_mem>>
    %663 = tpu.memref_squeeze %662 : memref<1x!tpu.dma_semaphore, #tpu.memory_space<semaphore_mem>> -> memref<!tpu.dma_semaphore, #tpu.memory_space<semaphore_mem>>
    tpu.wait_dma2 semaphore(%663 : memref<!tpu.dma_semaphore, #tpu.memory_space<semaphore_mem>>) src(%659 : memref<128xf32, #tpu.memory_space<any>>) dst(%661 : memref<128xf32, #tpu.memory_space<vmem>>)
    %c50_i32_340 = arith.constant 50 : i32
    %c2_i32_341 = arith.constant 2 : i32
    %c0_i32_342 = arith.constant 0 : i32
    %664 = tpu.memref_slice %arg2[%657, %c0_i32_342] : memref<64x128xf32, #tpu.memory_space<any>> -> memref<1x128xf32, #tpu.memory_space<any>>
    %665 = tpu.memref_squeeze %664 : memref<1x128xf32, #tpu.memory_space<any>> -> memref<128xf32, #tpu.memory_space<any>>
    %c0_i32_343 = arith.constant 0 : i32
    %666 = tpu.memref_slice %arg3[%c50_i32_340, %c0_i32_343] : memref<64x128xf32, #tpu.memory_space<vmem>> -> memref<1x128xf32, #tpu.memory_space<vmem>>
    %667 = tpu.memref_squeeze %666 : memref<1x128xf32, #tpu.memory_space<vmem>> -> memref<128xf32, #tpu.memory_space<vmem>>
    %668 = tpu.memref_slice %arg4[%c2_i32_341] : memref<16x!tpu.dma_semaphore, #tpu.memory_space<semaphore_mem>> -> memref<1x!tpu.dma_semaphore, #tpu.memory_space<semaphore_mem>>
    %669 = tpu.memref_squeeze %668 : memref<1x!tpu.dma_semaphore, #tpu.memory_space<semaphore_mem>> -> memref<!tpu.dma_semaphore, #tpu.memory_space<semaphore_mem>>
    tpu.enqueue_dma source(%665 : memref<128xf32, #tpu.memory_space<any>>) target(%667 : memref<128xf32, #tpu.memory_space<vmem>>) target_semaphore(%669 : memref<!tpu.dma_semaphore, #tpu.memory_space<semaphore_mem>>)
    %c51_i32 = arith.constant 51 : i32
    %670 = arith.addi %0, %c51_i32 : i32
    %671 = arith.index_cast %670 : i32 to index
    %672 = memref.load %arg1[%671] : memref<64xi32, #tpu.memory_space<smem>>
    %c35_i32_344 = arith.constant 35 : i32
    %c3_i32_345 = arith.constant 3 : i32
    %c0_i32_346 = arith.constant 0 : i32
    %673 = tpu.memref_slice %arg2[%432, %c0_i32_346] : memref<64x128xf32, #tpu.memory_space<any>> -> memref<1x128xf32, #tpu.memory_space<any>>
    %674 = tpu.memref_squeeze %673 : memref<1x128xf32, #tpu.memory_space<any>> -> memref<128xf32, #tpu.memory_space<any>>
    %c0_i32_347 = arith.constant 0 : i32
    %675 = tpu.memref_slice %arg3[%c35_i32_344, %c0_i32_347] : memref<64x128xf32, #tpu.memory_space<vmem>> -> memref<1x128xf32, #tpu.memory_space<vmem>>
    %676 = tpu.memref_squeeze %675 : memref<1x128xf32, #tpu.memory_space<vmem>> -> memref<128xf32, #tpu.memory_space<vmem>>
    %677 = tpu.memref_slice %arg4[%c3_i32_345] : memref<16x!tpu.dma_semaphore, #tpu.memory_space<semaphore_mem>> -> memref<1x!tpu.dma_semaphore, #tpu.memory_space<semaphore_mem>>
    %678 = tpu.memref_squeeze %677 : memref<1x!tpu.dma_semaphore, #tpu.memory_space<semaphore_mem>> -> memref<!tpu.dma_semaphore, #tpu.memory_space<semaphore_mem>>
    tpu.wait_dma2 semaphore(%678 : memref<!tpu.dma_semaphore, #tpu.memory_space<semaphore_mem>>) src(%674 : memref<128xf32, #tpu.memory_space<any>>) dst(%676 : memref<128xf32, #tpu.memory_space<vmem>>)
    %c51_i32_348 = arith.constant 51 : i32
    %c3_i32_349 = arith.constant 3 : i32
    %c0_i32_350 = arith.constant 0 : i32
    %679 = tpu.memref_slice %arg2[%672, %c0_i32_350] : memref<64x128xf32, #tpu.memory_space<any>> -> memref<1x128xf32, #tpu.memory_space<any>>
    %680 = tpu.memref_squeeze %679 : memref<1x128xf32, #tpu.memory_space<any>> -> memref<128xf32, #tpu.memory_space<any>>
    %c0_i32_351 = arith.constant 0 : i32
    %681 = tpu.memref_slice %arg3[%c51_i32_348, %c0_i32_351] : memref<64x128xf32, #tpu.memory_space<vmem>> -> memref<1x128xf32, #tpu.memory_space<vmem>>
    %682 = tpu.memref_squeeze %681 : memref<1x128xf32, #tpu.memory_space<vmem>> -> memref<128xf32, #tpu.memory_space<vmem>>
    %683 = tpu.memref_slice %arg4[%c3_i32_349] : memref<16x!tpu.dma_semaphore, #tpu.memory_space<semaphore_mem>> -> memref<1x!tpu.dma_semaphore, #tpu.memory_space<semaphore_mem>>
    %684 = tpu.memref_squeeze %683 : memref<1x!tpu.dma_semaphore, #tpu.memory_space<semaphore_mem>> -> memref<!tpu.dma_semaphore, #tpu.memory_space<semaphore_mem>>
    tpu.enqueue_dma source(%680 : memref<128xf32, #tpu.memory_space<any>>) target(%682 : memref<128xf32, #tpu.memory_space<vmem>>) target_semaphore(%684 : memref<!tpu.dma_semaphore, #tpu.memory_space<semaphore_mem>>)
    %c52_i32 = arith.constant 52 : i32
    %685 = arith.addi %0, %c52_i32 : i32
    %686 = arith.index_cast %685 : i32 to index
    %687 = memref.load %arg1[%686] : memref<64xi32, #tpu.memory_space<smem>>
    %c36_i32_352 = arith.constant 36 : i32
    %c4_i32_353 = arith.constant 4 : i32
    %c0_i32_354 = arith.constant 0 : i32
    %688 = tpu.memref_slice %arg2[%447, %c0_i32_354] : memref<64x128xf32, #tpu.memory_space<any>> -> memref<1x128xf32, #tpu.memory_space<any>>
    %689 = tpu.memref_squeeze %688 : memref<1x128xf32, #tpu.memory_space<any>> -> memref<128xf32, #tpu.memory_space<any>>
    %c0_i32_355 = arith.constant 0 : i32
    %690 = tpu.memref_slice %arg3[%c36_i32_352, %c0_i32_355] : memref<64x128xf32, #tpu.memory_space<vmem>> -> memref<1x128xf32, #tpu.memory_space<vmem>>
    %691 = tpu.memref_squeeze %690 : memref<1x128xf32, #tpu.memory_space<vmem>> -> memref<128xf32, #tpu.memory_space<vmem>>
    %692 = tpu.memref_slice %arg4[%c4_i32_353] : memref<16x!tpu.dma_semaphore, #tpu.memory_space<semaphore_mem>> -> memref<1x!tpu.dma_semaphore, #tpu.memory_space<semaphore_mem>>
    %693 = tpu.memref_squeeze %692 : memref<1x!tpu.dma_semaphore, #tpu.memory_space<semaphore_mem>> -> memref<!tpu.dma_semaphore, #tpu.memory_space<semaphore_mem>>
    tpu.wait_dma2 semaphore(%693 : memref<!tpu.dma_semaphore, #tpu.memory_space<semaphore_mem>>) src(%689 : memref<128xf32, #tpu.memory_space<any>>) dst(%691 : memref<128xf32, #tpu.memory_space<vmem>>)
    %c52_i32_356 = arith.constant 52 : i32
    %c4_i32_357 = arith.constant 4 : i32
    %c0_i32_358 = arith.constant 0 : i32
    %694 = tpu.memref_slice %arg2[%687, %c0_i32_358] : memref<64x128xf32, #tpu.memory_space<any>> -> memref<1x128xf32, #tpu.memory_space<any>>
    %695 = tpu.memref_squeeze %694 : memref<1x128xf32, #tpu.memory_space<any>> -> memref<128xf32, #tpu.memory_space<any>>
    %c0_i32_359 = arith.constant 0 : i32
    %696 = tpu.memref_slice %arg3[%c52_i32_356, %c0_i32_359] : memref<64x128xf32, #tpu.memory_space<vmem>> -> memref<1x128xf32, #tpu.memory_space<vmem>>
    %697 = tpu.memref_squeeze %696 : memref<1x128xf32, #tpu.memory_space<vmem>> -> memref<128xf32, #tpu.memory_space<vmem>>
    %698 = tpu.memref_slice %arg4[%c4_i32_357] : memref<16x!tpu.dma_semaphore, #tpu.memory_space<semaphore_mem>> -> memref<1x!tpu.dma_semaphore, #tpu.memory_space<semaphore_mem>>
    %699 = tpu.memref_squeeze %698 : memref<1x!tpu.dma_semaphore, #tpu.memory_space<semaphore_mem>> -> memref<!tpu.dma_semaphore, #tpu.memory_space<semaphore_mem>>
    tpu.enqueue_dma source(%695 : memref<128xf32, #tpu.memory_space<any>>) target(%697 : memref<128xf32, #tpu.memory_space<vmem>>) target_semaphore(%699 : memref<!tpu.dma_semaphore, #tpu.memory_space<semaphore_mem>>)
    %c53_i32 = arith.constant 53 : i32
    %700 = arith.addi %0, %c53_i32 : i32
    %701 = arith.index_cast %700 : i32 to index
    %702 = memref.load %arg1[%701] : memref<64xi32, #tpu.memory_space<smem>>
    %c37_i32_360 = arith.constant 37 : i32
    %c5_i32_361 = arith.constant 5 : i32
    %c0_i32_362 = arith.constant 0 : i32
    %703 = tpu.memref_slice %arg2[%462, %c0_i32_362] : memref<64x128xf32, #tpu.memory_space<any>> -> memref<1x128xf32, #tpu.memory_space<any>>
    %704 = tpu.memref_squeeze %703 : memref<1x128xf32, #tpu.memory_space<any>> -> memref<128xf32, #tpu.memory_space<any>>
    %c0_i32_363 = arith.constant 0 : i32
    %705 = tpu.memref_slice %arg3[%c37_i32_360, %c0_i32_363] : memref<64x128xf32, #tpu.memory_space<vmem>> -> memref<1x128xf32, #tpu.memory_space<vmem>>
    %706 = tpu.memref_squeeze %705 : memref<1x128xf32, #tpu.memory_space<vmem>> -> memref<128xf32, #tpu.memory_space<vmem>>
    %707 = tpu.memref_slice %arg4[%c5_i32_361] : memref<16x!tpu.dma_semaphore, #tpu.memory_space<semaphore_mem>> -> memref<1x!tpu.dma_semaphore, #tpu.memory_space<semaphore_mem>>
    %708 = tpu.memref_squeeze %707 : memref<1x!tpu.dma_semaphore, #tpu.memory_space<semaphore_mem>> -> memref<!tpu.dma_semaphore, #tpu.memory_space<semaphore_mem>>
    tpu.wait_dma2 semaphore(%708 : memref<!tpu.dma_semaphore, #tpu.memory_space<semaphore_mem>>) src(%704 : memref<128xf32, #tpu.memory_space<any>>) dst(%706 : memref<128xf32, #tpu.memory_space<vmem>>)
    %c53_i32_364 = arith.constant 53 : i32
    %c5_i32_365 = arith.constant 5 : i32
    %c0_i32_366 = arith.constant 0 : i32
    %709 = tpu.memref_slice %arg2[%702, %c0_i32_366] : memref<64x128xf32, #tpu.memory_space<any>> -> memref<1x128xf32, #tpu.memory_space<any>>
    %710 = tpu.memref_squeeze %709 : memref<1x128xf32, #tpu.memory_space<any>> -> memref<128xf32, #tpu.memory_space<any>>
    %c0_i32_367 = arith.constant 0 : i32
    %711 = tpu.memref_slice %arg3[%c53_i32_364, %c0_i32_367] : memref<64x128xf32, #tpu.memory_space<vmem>> -> memref<1x128xf32, #tpu.memory_space<vmem>>
    %712 = tpu.memref_squeeze %711 : memref<1x128xf32, #tpu.memory_space<vmem>> -> memref<128xf32, #tpu.memory_space<vmem>>
    %713 = tpu.memref_slice %arg4[%c5_i32_365] : memref<16x!tpu.dma_semaphore, #tpu.memory_space<semaphore_mem>> -> memref<1x!tpu.dma_semaphore, #tpu.memory_space<semaphore_mem>>
    %714 = tpu.memref_squeeze %713 : memref<1x!tpu.dma_semaphore, #tpu.memory_space<semaphore_mem>> -> memref<!tpu.dma_semaphore, #tpu.memory_space<semaphore_mem>>
    tpu.enqueue_dma source(%710 : memref<128xf32, #tpu.memory_space<any>>) target(%712 : memref<128xf32, #tpu.memory_space<vmem>>) target_semaphore(%714 : memref<!tpu.dma_semaphore, #tpu.memory_space<semaphore_mem>>)
    %c54_i32 = arith.constant 54 : i32
    %715 = arith.addi %0, %c54_i32 : i32
    %716 = arith.index_cast %715 : i32 to index
    %717 = memref.load %arg1[%716] : memref<64xi32, #tpu.memory_space<smem>>
    %c38_i32_368 = arith.constant 38 : i32
    %c6_i32_369 = arith.constant 6 : i32
    %c0_i32_370 = arith.constant 0 : i32
    %718 = tpu.memref_slice %arg2[%477, %c0_i32_370] : memref<64x128xf32, #tpu.memory_space<any>> -> memref<1x128xf32, #tpu.memory_space<any>>
    %719 = tpu.memref_squeeze %718 : memref<1x128xf32, #tpu.memory_space<any>> -> memref<128xf32, #tpu.memory_space<any>>
    %c0_i32_371 = arith.constant 0 : i32
    %720 = tpu.memref_slice %arg3[%c38_i32_368, %c0_i32_371] : memref<64x128xf32, #tpu.memory_space<vmem>> -> memref<1x128xf32, #tpu.memory_space<vmem>>
    %721 = tpu.memref_squeeze %720 : memref<1x128xf32, #tpu.memory_space<vmem>> -> memref<128xf32, #tpu.memory_space<vmem>>
    %722 = tpu.memref_slice %arg4[%c6_i32_369] : memref<16x!tpu.dma_semaphore, #tpu.memory_space<semaphore_mem>> -> memref<1x!tpu.dma_semaphore, #tpu.memory_space<semaphore_mem>>
    %723 = tpu.memref_squeeze %722 : memref<1x!tpu.dma_semaphore, #tpu.memory_space<semaphore_mem>> -> memref<!tpu.dma_semaphore, #tpu.memory_space<semaphore_mem>>
    tpu.wait_dma2 semaphore(%723 : memref<!tpu.dma_semaphore, #tpu.memory_space<semaphore_mem>>) src(%719 : memref<128xf32, #tpu.memory_space<any>>) dst(%721 : memref<128xf32, #tpu.memory_space<vmem>>)
    %c54_i32_372 = arith.constant 54 : i32
    %c6_i32_373 = arith.constant 6 : i32
    %c0_i32_374 = arith.constant 0 : i32
    %724 = tpu.memref_slice %arg2[%717, %c0_i32_374] : memref<64x128xf32, #tpu.memory_space<any>> -> memref<1x128xf32, #tpu.memory_space<any>>
    %725 = tpu.memref_squeeze %724 : memref<1x128xf32, #tpu.memory_space<any>> -> memref<128xf32, #tpu.memory_space<any>>
    %c0_i32_375 = arith.constant 0 : i32
    %726 = tpu.memref_slice %arg3[%c54_i32_372, %c0_i32_375] : memref<64x128xf32, #tpu.memory_space<vmem>> -> memref<1x128xf32, #tpu.memory_space<vmem>>
    %727 = tpu.memref_squeeze %726 : memref<1x128xf32, #tpu.memory_space<vmem>> -> memref<128xf32, #tpu.memory_space<vmem>>
    %728 = tpu.memref_slice %arg4[%c6_i32_373] : memref<16x!tpu.dma_semaphore, #tpu.memory_space<semaphore_mem>> -> memref<1x!tpu.dma_semaphore, #tpu.memory_space<semaphore_mem>>
    %729 = tpu.memref_squeeze %728 : memref<1x!tpu.dma_semaphore, #tpu.memory_space<semaphore_mem>> -> memref<!tpu.dma_semaphore, #tpu.memory_space<semaphore_mem>>
    tpu.enqueue_dma source(%725 : memref<128xf32, #tpu.memory_space<any>>) target(%727 : memref<128xf32, #tpu.memory_space<vmem>>) target_semaphore(%729 : memref<!tpu.dma_semaphore, #tpu.memory_space<semaphore_mem>>)
    %c55_i32 = arith.constant 55 : i32
    %730 = arith.addi %0, %c55_i32 : i32
    %731 = arith.index_cast %730 : i32 to index
    %732 = memref.load %arg1[%731] : memref<64xi32, #tpu.memory_space<smem>>
    %c39_i32_376 = arith.constant 39 : i32
    %c7_i32_377 = arith.constant 7 : i32
    %c0_i32_378 = arith.constant 0 : i32
    %733 = tpu.memref_slice %arg2[%492, %c0_i32_378] : memref<64x128xf32, #tpu.memory_space<any>> -> memref<1x128xf32, #tpu.memory_space<any>>
    %734 = tpu.memref_squeeze %733 : memref<1x128xf32, #tpu.memory_space<any>> -> memref<128xf32, #tpu.memory_space<any>>
    %c0_i32_379 = arith.constant 0 : i32
    %735 = tpu.memref_slice %arg3[%c39_i32_376, %c0_i32_379] : memref<64x128xf32, #tpu.memory_space<vmem>> -> memref<1x128xf32, #tpu.memory_space<vmem>>
    %736 = tpu.memref_squeeze %735 : memref<1x128xf32, #tpu.memory_space<vmem>> -> memref<128xf32, #tpu.memory_space<vmem>>
    %737 = tpu.memref_slice %arg4[%c7_i32_377] : memref<16x!tpu.dma_semaphore, #tpu.memory_space<semaphore_mem>> -> memref<1x!tpu.dma_semaphore, #tpu.memory_space<semaphore_mem>>
    %738 = tpu.memref_squeeze %737 : memref<1x!tpu.dma_semaphore, #tpu.memory_space<semaphore_mem>> -> memref<!tpu.dma_semaphore, #tpu.memory_space<semaphore_mem>>
    tpu.wait_dma2 semaphore(%738 : memref<!tpu.dma_semaphore, #tpu.memory_space<semaphore_mem>>) src(%734 : memref<128xf32, #tpu.memory_space<any>>) dst(%736 : memref<128xf32, #tpu.memory_space<vmem>>)
    %c55_i32_380 = arith.constant 55 : i32
    %c7_i32_381 = arith.constant 7 : i32
    %c0_i32_382 = arith.constant 0 : i32
    %739 = tpu.memref_slice %arg2[%732, %c0_i32_382] : memref<64x128xf32, #tpu.memory_space<any>> -> memref<1x128xf32, #tpu.memory_space<any>>
    %740 = tpu.memref_squeeze %739 : memref<1x128xf32, #tpu.memory_space<any>> -> memref<128xf32, #tpu.memory_space<any>>
    %c0_i32_383 = arith.constant 0 : i32
    %741 = tpu.memref_slice %arg3[%c55_i32_380, %c0_i32_383] : memref<64x128xf32, #tpu.memory_space<vmem>> -> memref<1x128xf32, #tpu.memory_space<vmem>>
    %742 = tpu.memref_squeeze %741 : memref<1x128xf32, #tpu.memory_space<vmem>> -> memref<128xf32, #tpu.memory_space<vmem>>
    %743 = tpu.memref_slice %arg4[%c7_i32_381] : memref<16x!tpu.dma_semaphore, #tpu.memory_space<semaphore_mem>> -> memref<1x!tpu.dma_semaphore, #tpu.memory_space<semaphore_mem>>
    %744 = tpu.memref_squeeze %743 : memref<1x!tpu.dma_semaphore, #tpu.memory_space<semaphore_mem>> -> memref<!tpu.dma_semaphore, #tpu.memory_space<semaphore_mem>>
    tpu.enqueue_dma source(%740 : memref<128xf32, #tpu.memory_space<any>>) target(%742 : memref<128xf32, #tpu.memory_space<vmem>>) target_semaphore(%744 : memref<!tpu.dma_semaphore, #tpu.memory_space<semaphore_mem>>)
    %c56_i32 = arith.constant 56 : i32
    %745 = arith.addi %0, %c56_i32 : i32
    %746 = arith.index_cast %745 : i32 to index
    %747 = memref.load %arg1[%746] : memref<64xi32, #tpu.memory_space<smem>>
    %c40_i32_384 = arith.constant 40 : i32
    %c8_i32_385 = arith.constant 8 : i32
    %c0_i32_386 = arith.constant 0 : i32
    %748 = tpu.memref_slice %arg2[%507, %c0_i32_386] : memref<64x128xf32, #tpu.memory_space<any>> -> memref<1x128xf32, #tpu.memory_space<any>>
    %749 = tpu.memref_squeeze %748 : memref<1x128xf32, #tpu.memory_space<any>> -> memref<128xf32, #tpu.memory_space<any>>
    %c0_i32_387 = arith.constant 0 : i32
    %750 = tpu.memref_slice %arg3[%c40_i32_384, %c0_i32_387] : memref<64x128xf32, #tpu.memory_space<vmem>> -> memref<1x128xf32, #tpu.memory_space<vmem>>
    %751 = tpu.memref_squeeze %750 : memref<1x128xf32, #tpu.memory_space<vmem>> -> memref<128xf32, #tpu.memory_space<vmem>>
    %752 = tpu.memref_slice %arg4[%c8_i32_385] : memref<16x!tpu.dma_semaphore, #tpu.memory_space<semaphore_mem>> -> memref<1x!tpu.dma_semaphore, #tpu.memory_space<semaphore_mem>>
    %753 = tpu.memref_squeeze %752 : memref<1x!tpu.dma_semaphore, #tpu.memory_space<semaphore_mem>> -> memref<!tpu.dma_semaphore, #tpu.memory_space<semaphore_mem>>
    tpu.wait_dma2 semaphore(%753 : memref<!tpu.dma_semaphore, #tpu.memory_space<semaphore_mem>>) src(%749 : memref<128xf32, #tpu.memory_space<any>>) dst(%751 : memref<128xf32, #tpu.memory_space<vmem>>)
    %c56_i32_388 = arith.constant 56 : i32
    %c8_i32_389 = arith.constant 8 : i32
    %c0_i32_390 = arith.constant 0 : i32
    %754 = tpu.memref_slice %arg2[%747, %c0_i32_390] : memref<64x128xf32, #tpu.memory_space<any>> -> memref<1x128xf32, #tpu.memory_space<any>>
    %755 = tpu.memref_squeeze %754 : memref<1x128xf32, #tpu.memory_space<any>> -> memref<128xf32, #tpu.memory_space<any>>
    %c0_i32_391 = arith.constant 0 : i32
    %756 = tpu.memref_slice %arg3[%c56_i32_388, %c0_i32_391] : memref<64x128xf32, #tpu.memory_space<vmem>> -> memref<1x128xf32, #tpu.memory_space<vmem>>
    %757 = tpu.memref_squeeze %756 : memref<1x128xf32, #tpu.memory_space<vmem>> -> memref<128xf32, #tpu.memory_space<vmem>>
    %758 = tpu.memref_slice %arg4[%c8_i32_389] : memref<16x!tpu.dma_semaphore, #tpu.memory_space<semaphore_mem>> -> memref<1x!tpu.dma_semaphore, #tpu.memory_space<semaphore_mem>>
    %759 = tpu.memref_squeeze %758 : memref<1x!tpu.dma_semaphore, #tpu.memory_space<semaphore_mem>> -> memref<!tpu.dma_semaphore, #tpu.memory_space<semaphore_mem>>
    tpu.enqueue_dma source(%755 : memref<128xf32, #tpu.memory_space<any>>) target(%757 : memref<128xf32, #tpu.memory_space<vmem>>) target_semaphore(%759 : memref<!tpu.dma_semaphore, #tpu.memory_space<semaphore_mem>>)
    %c57_i32 = arith.constant 57 : i32
    %760 = arith.addi %0, %c57_i32 : i32
    %761 = arith.index_cast %760 : i32 to index
    %762 = memref.load %arg1[%761] : memref<64xi32, #tpu.memory_space<smem>>
    %c41_i32_392 = arith.constant 41 : i32
    %c9_i32_393 = arith.constant 9 : i32
    %c0_i32_394 = arith.constant 0 : i32
    %763 = tpu.memref_slice %arg2[%522, %c0_i32_394] : memref<64x128xf32, #tpu.memory_space<any>> -> memref<1x128xf32, #tpu.memory_space<any>>
    %764 = tpu.memref_squeeze %763 : memref<1x128xf32, #tpu.memory_space<any>> -> memref<128xf32, #tpu.memory_space<any>>
    %c0_i32_395 = arith.constant 0 : i32
    %765 = tpu.memref_slice %arg3[%c41_i32_392, %c0_i32_395] : memref<64x128xf32, #tpu.memory_space<vmem>> -> memref<1x128xf32, #tpu.memory_space<vmem>>
    %766 = tpu.memref_squeeze %765 : memref<1x128xf32, #tpu.memory_space<vmem>> -> memref<128xf32, #tpu.memory_space<vmem>>
    %767 = tpu.memref_slice %arg4[%c9_i32_393] : memref<16x!tpu.dma_semaphore, #tpu.memory_space<semaphore_mem>> -> memref<1x!tpu.dma_semaphore, #tpu.memory_space<semaphore_mem>>
    %768 = tpu.memref_squeeze %767 : memref<1x!tpu.dma_semaphore, #tpu.memory_space<semaphore_mem>> -> memref<!tpu.dma_semaphore, #tpu.memory_space<semaphore_mem>>
    tpu.wait_dma2 semaphore(%768 : memref<!tpu.dma_semaphore, #tpu.memory_space<semaphore_mem>>) src(%764 : memref<128xf32, #tpu.memory_space<any>>) dst(%766 : memref<128xf32, #tpu.memory_space<vmem>>)
    %c57_i32_396 = arith.constant 57 : i32
    %c9_i32_397 = arith.constant 9 : i32
    %c0_i32_398 = arith.constant 0 : i32
    %769 = tpu.memref_slice %arg2[%762, %c0_i32_398] : memref<64x128xf32, #tpu.memory_space<any>> -> memref<1x128xf32, #tpu.memory_space<any>>
    %770 = tpu.memref_squeeze %769 : memref<1x128xf32, #tpu.memory_space<any>> -> memref<128xf32, #tpu.memory_space<any>>
    %c0_i32_399 = arith.constant 0 : i32
    %771 = tpu.memref_slice %arg3[%c57_i32_396, %c0_i32_399] : memref<64x128xf32, #tpu.memory_space<vmem>> -> memref<1x128xf32, #tpu.memory_space<vmem>>
    %772 = tpu.memref_squeeze %771 : memref<1x128xf32, #tpu.memory_space<vmem>> -> memref<128xf32, #tpu.memory_space<vmem>>
    %773 = tpu.memref_slice %arg4[%c9_i32_397] : memref<16x!tpu.dma_semaphore, #tpu.memory_space<semaphore_mem>> -> memref<1x!tpu.dma_semaphore, #tpu.memory_space<semaphore_mem>>
    %774 = tpu.memref_squeeze %773 : memref<1x!tpu.dma_semaphore, #tpu.memory_space<semaphore_mem>> -> memref<!tpu.dma_semaphore, #tpu.memory_space<semaphore_mem>>
    tpu.enqueue_dma source(%770 : memref<128xf32, #tpu.memory_space<any>>) target(%772 : memref<128xf32, #tpu.memory_space<vmem>>) target_semaphore(%774 : memref<!tpu.dma_semaphore, #tpu.memory_space<semaphore_mem>>)
    %c58_i32 = arith.constant 58 : i32
    %775 = arith.addi %0, %c58_i32 : i32
    %776 = arith.index_cast %775 : i32 to index
    %777 = memref.load %arg1[%776] : memref<64xi32, #tpu.memory_space<smem>>
    %c42_i32_400 = arith.constant 42 : i32
    %c10_i32_401 = arith.constant 10 : i32
    %c0_i32_402 = arith.constant 0 : i32
    %778 = tpu.memref_slice %arg2[%537, %c0_i32_402] : memref<64x128xf32, #tpu.memory_space<any>> -> memref<1x128xf32, #tpu.memory_space<any>>
    %779 = tpu.memref_squeeze %778 : memref<1x128xf32, #tpu.memory_space<any>> -> memref<128xf32, #tpu.memory_space<any>>
    %c0_i32_403 = arith.constant 0 : i32
    %780 = tpu.memref_slice %arg3[%c42_i32_400, %c0_i32_403] : memref<64x128xf32, #tpu.memory_space<vmem>> -> memref<1x128xf32, #tpu.memory_space<vmem>>
    %781 = tpu.memref_squeeze %780 : memref<1x128xf32, #tpu.memory_space<vmem>> -> memref<128xf32, #tpu.memory_space<vmem>>
    %782 = tpu.memref_slice %arg4[%c10_i32_401] : memref<16x!tpu.dma_semaphore, #tpu.memory_space<semaphore_mem>> -> memref<1x!tpu.dma_semaphore, #tpu.memory_space<semaphore_mem>>
    %783 = tpu.memref_squeeze %782 : memref<1x!tpu.dma_semaphore, #tpu.memory_space<semaphore_mem>> -> memref<!tpu.dma_semaphore, #tpu.memory_space<semaphore_mem>>
    tpu.wait_dma2 semaphore(%783 : memref<!tpu.dma_semaphore, #tpu.memory_space<semaphore_mem>>) src(%779 : memref<128xf32, #tpu.memory_space<any>>) dst(%781 : memref<128xf32, #tpu.memory_space<vmem>>)
    %c58_i32_404 = arith.constant 58 : i32
    %c10_i32_405 = arith.constant 10 : i32
    %c0_i32_406 = arith.constant 0 : i32
    %784 = tpu.memref_slice %arg2[%777, %c0_i32_406] : memref<64x128xf32, #tpu.memory_space<any>> -> memref<1x128xf32, #tpu.memory_space<any>>
    %785 = tpu.memref_squeeze %784 : memref<1x128xf32, #tpu.memory_space<any>> -> memref<128xf32, #tpu.memory_space<any>>
    %c0_i32_407 = arith.constant 0 : i32
    %786 = tpu.memref_slice %arg3[%c58_i32_404, %c0_i32_407] : memref<64x128xf32, #tpu.memory_space<vmem>> -> memref<1x128xf32, #tpu.memory_space<vmem>>
    %787 = tpu.memref_squeeze %786 : memref<1x128xf32, #tpu.memory_space<vmem>> -> memref<128xf32, #tpu.memory_space<vmem>>
    %788 = tpu.memref_slice %arg4[%c10_i32_405] : memref<16x!tpu.dma_semaphore, #tpu.memory_space<semaphore_mem>> -> memref<1x!tpu.dma_semaphore, #tpu.memory_space<semaphore_mem>>
    %789 = tpu.memref_squeeze %788 : memref<1x!tpu.dma_semaphore, #tpu.memory_space<semaphore_mem>> -> memref<!tpu.dma_semaphore, #tpu.memory_space<semaphore_mem>>
    tpu.enqueue_dma source(%785 : memref<128xf32, #tpu.memory_space<any>>) target(%787 : memref<128xf32, #tpu.memory_space<vmem>>) target_semaphore(%789 : memref<!tpu.dma_semaphore, #tpu.memory_space<semaphore_mem>>)
    %c59_i32 = arith.constant 59 : i32
    %790 = arith.addi %0, %c59_i32 : i32
    %791 = arith.index_cast %790 : i32 to index
    %792 = memref.load %arg1[%791] : memref<64xi32, #tpu.memory_space<smem>>
    %c43_i32_408 = arith.constant 43 : i32
    %c11_i32_409 = arith.constant 11 : i32
    %c0_i32_410 = arith.constant 0 : i32
    %793 = tpu.memref_slice %arg2[%552, %c0_i32_410] : memref<64x128xf32, #tpu.memory_space<any>> -> memref<1x128xf32, #tpu.memory_space<any>>
    %794 = tpu.memref_squeeze %793 : memref<1x128xf32, #tpu.memory_space<any>> -> memref<128xf32, #tpu.memory_space<any>>
    %c0_i32_411 = arith.constant 0 : i32
    %795 = tpu.memref_slice %arg3[%c43_i32_408, %c0_i32_411] : memref<64x128xf32, #tpu.memory_space<vmem>> -> memref<1x128xf32, #tpu.memory_space<vmem>>
    %796 = tpu.memref_squeeze %795 : memref<1x128xf32, #tpu.memory_space<vmem>> -> memref<128xf32, #tpu.memory_space<vmem>>
    %797 = tpu.memref_slice %arg4[%c11_i32_409] : memref<16x!tpu.dma_semaphore, #tpu.memory_space<semaphore_mem>> -> memref<1x!tpu.dma_semaphore, #tpu.memory_space<semaphore_mem>>
    %798 = tpu.memref_squeeze %797 : memref<1x!tpu.dma_semaphore, #tpu.memory_space<semaphore_mem>> -> memref<!tpu.dma_semaphore, #tpu.memory_space<semaphore_mem>>
    tpu.wait_dma2 semaphore(%798 : memref<!tpu.dma_semaphore, #tpu.memory_space<semaphore_mem>>) src(%794 : memref<128xf32, #tpu.memory_space<any>>) dst(%796 : memref<128xf32, #tpu.memory_space<vmem>>)
    %c59_i32_412 = arith.constant 59 : i32
    %c11_i32_413 = arith.constant 11 : i32
    %c0_i32_414 = arith.constant 0 : i32
    %799 = tpu.memref_slice %arg2[%792, %c0_i32_414] : memref<64x128xf32, #tpu.memory_space<any>> -> memref<1x128xf32, #tpu.memory_space<any>>
    %800 = tpu.memref_squeeze %799 : memref<1x128xf32, #tpu.memory_space<any>> -> memref<128xf32, #tpu.memory_space<any>>
    %c0_i32_415 = arith.constant 0 : i32
    %801 = tpu.memref_slice %arg3[%c59_i32_412, %c0_i32_415] : memref<64x128xf32, #tpu.memory_space<vmem>> -> memref<1x128xf32, #tpu.memory_space<vmem>>
    %802 = tpu.memref_squeeze %801 : memref<1x128xf32, #tpu.memory_space<vmem>> -> memref<128xf32, #tpu.memory_space<vmem>>
    %803 = tpu.memref_slice %arg4[%c11_i32_413] : memref<16x!tpu.dma_semaphore, #tpu.memory_space<semaphore_mem>> -> memref<1x!tpu.dma_semaphore, #tpu.memory_space<semaphore_mem>>
    %804 = tpu.memref_squeeze %803 : memref<1x!tpu.dma_semaphore, #tpu.memory_space<semaphore_mem>> -> memref<!tpu.dma_semaphore, #tpu.memory_space<semaphore_mem>>
    tpu.enqueue_dma source(%800 : memref<128xf32, #tpu.memory_space<any>>) target(%802 : memref<128xf32, #tpu.memory_space<vmem>>) target_semaphore(%804 : memref<!tpu.dma_semaphore, #tpu.memory_space<semaphore_mem>>)
    %c60_i32 = arith.constant 60 : i32
    %805 = arith.addi %0, %c60_i32 : i32
    %806 = arith.index_cast %805 : i32 to index
    %807 = memref.load %arg1[%806] : memref<64xi32, #tpu.memory_space<smem>>
    %c44_i32_416 = arith.constant 44 : i32
    %c12_i32_417 = arith.constant 12 : i32
    %c0_i32_418 = arith.constant 0 : i32
    %808 = tpu.memref_slice %arg2[%567, %c0_i32_418] : memref<64x128xf32, #tpu.memory_space<any>> -> memref<1x128xf32, #tpu.memory_space<any>>
    %809 = tpu.memref_squeeze %808 : memref<1x128xf32, #tpu.memory_space<any>> -> memref<128xf32, #tpu.memory_space<any>>
    %c0_i32_419 = arith.constant 0 : i32
    %810 = tpu.memref_slice %arg3[%c44_i32_416, %c0_i32_419] : memref<64x128xf32, #tpu.memory_space<vmem>> -> memref<1x128xf32, #tpu.memory_space<vmem>>
    %811 = tpu.memref_squeeze %810 : memref<1x128xf32, #tpu.memory_space<vmem>> -> memref<128xf32, #tpu.memory_space<vmem>>
    %812 = tpu.memref_slice %arg4[%c12_i32_417] : memref<16x!tpu.dma_semaphore, #tpu.memory_space<semaphore_mem>> -> memref<1x!tpu.dma_semaphore, #tpu.memory_space<semaphore_mem>>
    %813 = tpu.memref_squeeze %812 : memref<1x!tpu.dma_semaphore, #tpu.memory_space<semaphore_mem>> -> memref<!tpu.dma_semaphore, #tpu.memory_space<semaphore_mem>>
    tpu.wait_dma2 semaphore(%813 : memref<!tpu.dma_semaphore, #tpu.memory_space<semaphore_mem>>) src(%809 : memref<128xf32, #tpu.memory_space<any>>) dst(%811 : memref<128xf32, #tpu.memory_space<vmem>>)
    %c60_i32_420 = arith.constant 60 : i32
    %c12_i32_421 = arith.constant 12 : i32
    %c0_i32_422 = arith.constant 0 : i32
    %814 = tpu.memref_slice %arg2[%807, %c0_i32_422] : memref<64x128xf32, #tpu.memory_space<any>> -> memref<1x128xf32, #tpu.memory_space<any>>
    %815 = tpu.memref_squeeze %814 : memref<1x128xf32, #tpu.memory_space<any>> -> memref<128xf32, #tpu.memory_space<any>>
    %c0_i32_423 = arith.constant 0 : i32
    %816 = tpu.memref_slice %arg3[%c60_i32_420, %c0_i32_423] : memref<64x128xf32, #tpu.memory_space<vmem>> -> memref<1x128xf32, #tpu.memory_space<vmem>>
    %817 = tpu.memref_squeeze %816 : memref<1x128xf32, #tpu.memory_space<vmem>> -> memref<128xf32, #tpu.memory_space<vmem>>
    %818 = tpu.memref_slice %arg4[%c12_i32_421] : memref<16x!tpu.dma_semaphore, #tpu.memory_space<semaphore_mem>> -> memref<1x!tpu.dma_semaphore, #tpu.memory_space<semaphore_mem>>
    %819 = tpu.memref_squeeze %818 : memref<1x!tpu.dma_semaphore, #tpu.memory_space<semaphore_mem>> -> memref<!tpu.dma_semaphore, #tpu.memory_space<semaphore_mem>>
    tpu.enqueue_dma source(%815 : memref<128xf32, #tpu.memory_space<any>>) target(%817 : memref<128xf32, #tpu.memory_space<vmem>>) target_semaphore(%819 : memref<!tpu.dma_semaphore, #tpu.memory_space<semaphore_mem>>)
    %c61_i32 = arith.constant 61 : i32
    %820 = arith.addi %0, %c61_i32 : i32
    %821 = arith.index_cast %820 : i32 to index
    %822 = memref.load %arg1[%821] : memref<64xi32, #tpu.memory_space<smem>>
    %c45_i32_424 = arith.constant 45 : i32
    %c13_i32_425 = arith.constant 13 : i32
    %c0_i32_426 = arith.constant 0 : i32
    %823 = tpu.memref_slice %arg2[%582, %c0_i32_426] : memref<64x128xf32, #tpu.memory_space<any>> -> memref<1x128xf32, #tpu.memory_space<any>>
    %824 = tpu.memref_squeeze %823 : memref<1x128xf32, #tpu.memory_space<any>> -> memref<128xf32, #tpu.memory_space<any>>
    %c0_i32_427 = arith.constant 0 : i32
    %825 = tpu.memref_slice %arg3[%c45_i32_424, %c0_i32_427] : memref<64x128xf32, #tpu.memory_space<vmem>> -> memref<1x128xf32, #tpu.memory_space<vmem>>
    %826 = tpu.memref_squeeze %825 : memref<1x128xf32, #tpu.memory_space<vmem>> -> memref<128xf32, #tpu.memory_space<vmem>>
    %827 = tpu.memref_slice %arg4[%c13_i32_425] : memref<16x!tpu.dma_semaphore, #tpu.memory_space<semaphore_mem>> -> memref<1x!tpu.dma_semaphore, #tpu.memory_space<semaphore_mem>>
    %828 = tpu.memref_squeeze %827 : memref<1x!tpu.dma_semaphore, #tpu.memory_space<semaphore_mem>> -> memref<!tpu.dma_semaphore, #tpu.memory_space<semaphore_mem>>
    tpu.wait_dma2 semaphore(%828 : memref<!tpu.dma_semaphore, #tpu.memory_space<semaphore_mem>>) src(%824 : memref<128xf32, #tpu.memory_space<any>>) dst(%826 : memref<128xf32, #tpu.memory_space<vmem>>)
    %c61_i32_428 = arith.constant 61 : i32
    %c13_i32_429 = arith.constant 13 : i32
    %c0_i32_430 = arith.constant 0 : i32
    %829 = tpu.memref_slice %arg2[%822, %c0_i32_430] : memref<64x128xf32, #tpu.memory_space<any>> -> memref<1x128xf32, #tpu.memory_space<any>>
    %830 = tpu.memref_squeeze %829 : memref<1x128xf32, #tpu.memory_space<any>> -> memref<128xf32, #tpu.memory_space<any>>
    %c0_i32_431 = arith.constant 0 : i32
    %831 = tpu.memref_slice %arg3[%c61_i32_428, %c0_i32_431] : memref<64x128xf32, #tpu.memory_space<vmem>> -> memref<1x128xf32, #tpu.memory_space<vmem>>
    %832 = tpu.memref_squeeze %831 : memref<1x128xf32, #tpu.memory_space<vmem>> -> memref<128xf32, #tpu.memory_space<vmem>>
    %833 = tpu.memref_slice %arg4[%c13_i32_429] : memref<16x!tpu.dma_semaphore, #tpu.memory_space<semaphore_mem>> -> memref<1x!tpu.dma_semaphore, #tpu.memory_space<semaphore_mem>>
    %834 = tpu.memref_squeeze %833 : memref<1x!tpu.dma_semaphore, #tpu.memory_space<semaphore_mem>> -> memref<!tpu.dma_semaphore, #tpu.memory_space<semaphore_mem>>
    tpu.enqueue_dma source(%830 : memref<128xf32, #tpu.memory_space<any>>) target(%832 : memref<128xf32, #tpu.memory_space<vmem>>) target_semaphore(%834 : memref<!tpu.dma_semaphore, #tpu.memory_space<semaphore_mem>>)
    %c62_i32 = arith.constant 62 : i32
    %835 = arith.addi %0, %c62_i32 : i32
    %836 = arith.index_cast %835 : i32 to index
    %837 = memref.load %arg1[%836] : memref<64xi32, #tpu.memory_space<smem>>
    %c46_i32_432 = arith.constant 46 : i32
    %c14_i32_433 = arith.constant 14 : i32
    %c0_i32_434 = arith.constant 0 : i32
    %838 = tpu.memref_slice %arg2[%597, %c0_i32_434] : memref<64x128xf32, #tpu.memory_space<any>> -> memref<1x128xf32, #tpu.memory_space<any>>
    %839 = tpu.memref_squeeze %838 : memref<1x128xf32, #tpu.memory_space<any>> -> memref<128xf32, #tpu.memory_space<any>>
    %c0_i32_435 = arith.constant 0 : i32
    %840 = tpu.memref_slice %arg3[%c46_i32_432, %c0_i32_435] : memref<64x128xf32, #tpu.memory_space<vmem>> -> memref<1x128xf32, #tpu.memory_space<vmem>>
    %841 = tpu.memref_squeeze %840 : memref<1x128xf32, #tpu.memory_space<vmem>> -> memref<128xf32, #tpu.memory_space<vmem>>
    %842 = tpu.memref_slice %arg4[%c14_i32_433] : memref<16x!tpu.dma_semaphore, #tpu.memory_space<semaphore_mem>> -> memref<1x!tpu.dma_semaphore, #tpu.memory_space<semaphore_mem>>
    %843 = tpu.memref_squeeze %842 : memref<1x!tpu.dma_semaphore, #tpu.memory_space<semaphore_mem>> -> memref<!tpu.dma_semaphore, #tpu.memory_space<semaphore_mem>>
    tpu.wait_dma2 semaphore(%843 : memref<!tpu.dma_semaphore, #tpu.memory_space<semaphore_mem>>) src(%839 : memref<128xf32, #tpu.memory_space<any>>) dst(%841 : memref<128xf32, #tpu.memory_space<vmem>>)
    %c62_i32_436 = arith.constant 62 : i32
    %c14_i32_437 = arith.constant 14 : i32
    %c0_i32_438 = arith.constant 0 : i32
    %844 = tpu.memref_slice %arg2[%837, %c0_i32_438] : memref<64x128xf32, #tpu.memory_space<any>> -> memref<1x128xf32, #tpu.memory_space<any>>
    %845 = tpu.memref_squeeze %844 : memref<1x128xf32, #tpu.memory_space<any>> -> memref<128xf32, #tpu.memory_space<any>>
    %c0_i32_439 = arith.constant 0 : i32
    %846 = tpu.memref_slice %arg3[%c62_i32_436, %c0_i32_439] : memref<64x128xf32, #tpu.memory_space<vmem>> -> memref<1x128xf32, #tpu.memory_space<vmem>>
    %847 = tpu.memref_squeeze %846 : memref<1x128xf32, #tpu.memory_space<vmem>> -> memref<128xf32, #tpu.memory_space<vmem>>
    %848 = tpu.memref_slice %arg4[%c14_i32_437] : memref<16x!tpu.dma_semaphore, #tpu.memory_space<semaphore_mem>> -> memref<1x!tpu.dma_semaphore, #tpu.memory_space<semaphore_mem>>
    %849 = tpu.memref_squeeze %848 : memref<1x!tpu.dma_semaphore, #tpu.memory_space<semaphore_mem>> -> memref<!tpu.dma_semaphore, #tpu.memory_space<semaphore_mem>>
    tpu.enqueue_dma source(%845 : memref<128xf32, #tpu.memory_space<any>>) target(%847 : memref<128xf32, #tpu.memory_space<vmem>>) target_semaphore(%849 : memref<!tpu.dma_semaphore, #tpu.memory_space<semaphore_mem>>)
    %c63_i32 = arith.constant 63 : i32
    %850 = arith.addi %0, %c63_i32 : i32
    %851 = arith.index_cast %850 : i32 to index
    %852 = memref.load %arg1[%851] : memref<64xi32, #tpu.memory_space<smem>>
    %c47_i32_440 = arith.constant 47 : i32
    %c15_i32_441 = arith.constant 15 : i32
    %c0_i32_442 = arith.constant 0 : i32
    %853 = tpu.memref_slice %arg2[%612, %c0_i32_442] : memref<64x128xf32, #tpu.memory_space<any>> -> memref<1x128xf32, #tpu.memory_space<any>>
    %854 = tpu.memref_squeeze %853 : memref<1x128xf32, #tpu.memory_space<any>> -> memref<128xf32, #tpu.memory_space<any>>
    %c0_i32_443 = arith.constant 0 : i32
    %855 = tpu.memref_slice %arg3[%c47_i32_440, %c0_i32_443] : memref<64x128xf32, #tpu.memory_space<vmem>> -> memref<1x128xf32, #tpu.memory_space<vmem>>
    %856 = tpu.memref_squeeze %855 : memref<1x128xf32, #tpu.memory_space<vmem>> -> memref<128xf32, #tpu.memory_space<vmem>>
    %857 = tpu.memref_slice %arg4[%c15_i32_441] : memref<16x!tpu.dma_semaphore, #tpu.memory_space<semaphore_mem>> -> memref<1x!tpu.dma_semaphore, #tpu.memory_space<semaphore_mem>>
    %858 = tpu.memref_squeeze %857 : memref<1x!tpu.dma_semaphore, #tpu.memory_space<semaphore_mem>> -> memref<!tpu.dma_semaphore, #tpu.memory_space<semaphore_mem>>
    tpu.wait_dma2 semaphore(%858 : memref<!tpu.dma_semaphore, #tpu.memory_space<semaphore_mem>>) src(%854 : memref<128xf32, #tpu.memory_space<any>>) dst(%856 : memref<128xf32, #tpu.memory_space<vmem>>)
    %c63_i32_444 = arith.constant 63 : i32
    %c15_i32_445 = arith.constant 15 : i32
    %c0_i32_446 = arith.constant 0 : i32
    %859 = tpu.memref_slice %arg2[%852, %c0_i32_446] : memref<64x128xf32, #tpu.memory_space<any>> -> memref<1x128xf32, #tpu.memory_space<any>>
    %860 = tpu.memref_squeeze %859 : memref<1x128xf32, #tpu.memory_space<any>> -> memref<128xf32, #tpu.memory_space<any>>
    %c0_i32_447 = arith.constant 0 : i32
    %861 = tpu.memref_slice %arg3[%c63_i32_444, %c0_i32_447] : memref<64x128xf32, #tpu.memory_space<vmem>> -> memref<1x128xf32, #tpu.memory_space<vmem>>
    %862 = tpu.memref_squeeze %861 : memref<1x128xf32, #tpu.memory_space<vmem>> -> memref<128xf32, #tpu.memory_space<vmem>>
    %863 = tpu.memref_slice %arg4[%c15_i32_445] : memref<16x!tpu.dma_semaphore, #tpu.memory_space<semaphore_mem>> -> memref<1x!tpu.dma_semaphore, #tpu.memory_space<semaphore_mem>>
    %864 = tpu.memref_squeeze %863 : memref<1x!tpu.dma_semaphore, #tpu.memory_space<semaphore_mem>> -> memref<!tpu.dma_semaphore, #tpu.memory_space<semaphore_mem>>
    tpu.enqueue_dma source(%860 : memref<128xf32, #tpu.memory_space<any>>) target(%862 : memref<128xf32, #tpu.memory_space<vmem>>) target_semaphore(%864 : memref<!tpu.dma_semaphore, #tpu.memory_space<semaphore_mem>>)
    %c48_i32_448 = arith.constant 48 : i32
    %c0_i32_449 = arith.constant 0 : i32
    %c0_i32_450 = arith.constant 0 : i32
    %865 = tpu.memref_slice %arg2[%627, %c0_i32_450] : memref<64x128xf32, #tpu.memory_space<any>> -> memref<1x128xf32, #tpu.memory_space<any>>
    %866 = tpu.memref_squeeze %865 : memref<1x128xf32, #tpu.memory_space<any>> -> memref<128xf32, #tpu.memory_space<any>>
    %c0_i32_451 = arith.constant 0 : i32
    %867 = tpu.memref_slice %arg3[%c48_i32_448, %c0_i32_451] : memref<64x128xf32, #tpu.memory_space<vmem>> -> memref<1x128xf32, #tpu.memory_space<vmem>>
    %868 = tpu.memref_squeeze %867 : memref<1x128xf32, #tpu.memory_space<vmem>> -> memref<128xf32, #tpu.memory_space<vmem>>
    %869 = tpu.memref_slice %arg4[%c0_i32_449] : memref<16x!tpu.dma_semaphore, #tpu.memory_space<semaphore_mem>> -> memref<1x!tpu.dma_semaphore, #tpu.memory_space<semaphore_mem>>
    %870 = tpu.memref_squeeze %869 : memref<1x!tpu.dma_semaphore, #tpu.memory_space<semaphore_mem>> -> memref<!tpu.dma_semaphore, #tpu.memory_space<semaphore_mem>>
    tpu.wait_dma2 semaphore(%870 : memref<!tpu.dma_semaphore, #tpu.memory_space<semaphore_mem>>) src(%866 : memref<128xf32, #tpu.memory_space<any>>) dst(%868 : memref<128xf32, #tpu.memory_space<vmem>>)
    %c49_i32_452 = arith.constant 49 : i32
    %c1_i32_453 = arith.constant 1 : i32
    %c0_i32_454 = arith.constant 0 : i32
    %871 = tpu.memref_slice %arg2[%642, %c0_i32_454] : memref<64x128xf32, #tpu.memory_space<any>> -> memref<1x128xf32, #tpu.memory_space<any>>
    %872 = tpu.memref_squeeze %871 : memref<1x128xf32, #tpu.memory_space<any>> -> memref<128xf32, #tpu.memory_space<any>>
    %c0_i32_455 = arith.constant 0 : i32
    %873 = tpu.memref_slice %arg3[%c49_i32_452, %c0_i32_455] : memref<64x128xf32, #tpu.memory_space<vmem>> -> memref<1x128xf32, #tpu.memory_space<vmem>>
    %874 = tpu.memref_squeeze %873 : memref<1x128xf32, #tpu.memory_space<vmem>> -> memref<128xf32, #tpu.memory_space<vmem>>
    %875 = tpu.memref_slice %arg4[%c1_i32_453] : memref<16x!tpu.dma_semaphore, #tpu.memory_space<semaphore_mem>> -> memref<1x!tpu.dma_semaphore, #tpu.memory_space<semaphore_mem>>
    %876 = tpu.memref_squeeze %875 : memref<1x!tpu.dma_semaphore, #tpu.memory_space<semaphore_mem>> -> memref<!tpu.dma_semaphore, #tpu.memory_space<semaphore_mem>>
    tpu.wait_dma2 semaphore(%876 : memref<!tpu.dma_semaphore, #tpu.memory_space<semaphore_mem>>) src(%872 : memref<128xf32, #tpu.memory_space<any>>) dst(%874 : memref<128xf32, #tpu.memory_space<vmem>>)
    %c50_i32_456 = arith.constant 50 : i32
    %c2_i32_457 = arith.constant 2 : i32
    %c0_i32_458 = arith.constant 0 : i32
    %877 = tpu.memref_slice %arg2[%657, %c0_i32_458] : memref<64x128xf32, #tpu.memory_space<any>> -> memref<1x128xf32, #tpu.memory_space<any>>
    %878 = tpu.memref_squeeze %877 : memref<1x128xf32, #tpu.memory_space<any>> -> memref<128xf32, #tpu.memory_space<any>>
    %c0_i32_459 = arith.constant 0 : i32
    %879 = tpu.memref_slice %arg3[%c50_i32_456, %c0_i32_459] : memref<64x128xf32, #tpu.memory_space<vmem>> -> memref<1x128xf32, #tpu.memory_space<vmem>>
    %880 = tpu.memref_squeeze %879 : memref<1x128xf32, #tpu.memory_space<vmem>> -> memref<128xf32, #tpu.memory_space<vmem>>
    %881 = tpu.memref_slice %arg4[%c2_i32_457] : memref<16x!tpu.dma_semaphore, #tpu.memory_space<semaphore_mem>> -> memref<1x!tpu.dma_semaphore, #tpu.memory_space<semaphore_mem>>
    %882 = tpu.memref_squeeze %881 : memref<1x!tpu.dma_semaphore, #tpu.memory_space<semaphore_mem>> -> memref<!tpu.dma_semaphore, #tpu.memory_space<semaphore_mem>>
    tpu.wait_dma2 semaphore(%882 : memref<!tpu.dma_semaphore, #tpu.memory_space<semaphore_mem>>) src(%878 : memref<128xf32, #tpu.memory_space<any>>) dst(%880 : memref<128xf32, #tpu.memory_space<vmem>>)
    %c51_i32_460 = arith.constant 51 : i32
    %c3_i32_461 = arith.constant 3 : i32
    %c0_i32_462 = arith.constant 0 : i32
    %883 = tpu.memref_slice %arg2[%672, %c0_i32_462] : memref<64x128xf32, #tpu.memory_space<any>> -> memref<1x128xf32, #tpu.memory_space<any>>
    %884 = tpu.memref_squeeze %883 : memref<1x128xf32, #tpu.memory_space<any>> -> memref<128xf32, #tpu.memory_space<any>>
    %c0_i32_463 = arith.constant 0 : i32
    %885 = tpu.memref_slice %arg3[%c51_i32_460, %c0_i32_463] : memref<64x128xf32, #tpu.memory_space<vmem>> -> memref<1x128xf32, #tpu.memory_space<vmem>>
    %886 = tpu.memref_squeeze %885 : memref<1x128xf32, #tpu.memory_space<vmem>> -> memref<128xf32, #tpu.memory_space<vmem>>
    %887 = tpu.memref_slice %arg4[%c3_i32_461] : memref<16x!tpu.dma_semaphore, #tpu.memory_space<semaphore_mem>> -> memref<1x!tpu.dma_semaphore, #tpu.memory_space<semaphore_mem>>
    %888 = tpu.memref_squeeze %887 : memref<1x!tpu.dma_semaphore, #tpu.memory_space<semaphore_mem>> -> memref<!tpu.dma_semaphore, #tpu.memory_space<semaphore_mem>>
    tpu.wait_dma2 semaphore(%888 : memref<!tpu.dma_semaphore, #tpu.memory_space<semaphore_mem>>) src(%884 : memref<128xf32, #tpu.memory_space<any>>) dst(%886 : memref<128xf32, #tpu.memory_space<vmem>>)
    %c52_i32_464 = arith.constant 52 : i32
    %c4_i32_465 = arith.constant 4 : i32
    %c0_i32_466 = arith.constant 0 : i32
    %889 = tpu.memref_slice %arg2[%687, %c0_i32_466] : memref<64x128xf32, #tpu.memory_space<any>> -> memref<1x128xf32, #tpu.memory_space<any>>
    %890 = tpu.memref_squeeze %889 : memref<1x128xf32, #tpu.memory_space<any>> -> memref<128xf32, #tpu.memory_space<any>>
    %c0_i32_467 = arith.constant 0 : i32
    %891 = tpu.memref_slice %arg3[%c52_i32_464, %c0_i32_467] : memref<64x128xf32, #tpu.memory_space<vmem>> -> memref<1x128xf32, #tpu.memory_space<vmem>>
    %892 = tpu.memref_squeeze %891 : memref<1x128xf32, #tpu.memory_space<vmem>> -> memref<128xf32, #tpu.memory_space<vmem>>
    %893 = tpu.memref_slice %arg4[%c4_i32_465] : memref<16x!tpu.dma_semaphore, #tpu.memory_space<semaphore_mem>> -> memref<1x!tpu.dma_semaphore, #tpu.memory_space<semaphore_mem>>
    %894 = tpu.memref_squeeze %893 : memref<1x!tpu.dma_semaphore, #tpu.memory_space<semaphore_mem>> -> memref<!tpu.dma_semaphore, #tpu.memory_space<semaphore_mem>>
    tpu.wait_dma2 semaphore(%894 : memref<!tpu.dma_semaphore, #tpu.memory_space<semaphore_mem>>) src(%890 : memref<128xf32, #tpu.memory_space<any>>) dst(%892 : memref<128xf32, #tpu.memory_space<vmem>>)
    %c53_i32_468 = arith.constant 53 : i32
    %c5_i32_469 = arith.constant 5 : i32
    %c0_i32_470 = arith.constant 0 : i32
    %895 = tpu.memref_slice %arg2[%702, %c0_i32_470] : memref<64x128xf32, #tpu.memory_space<any>> -> memref<1x128xf32, #tpu.memory_space<any>>
    %896 = tpu.memref_squeeze %895 : memref<1x128xf32, #tpu.memory_space<any>> -> memref<128xf32, #tpu.memory_space<any>>
    %c0_i32_471 = arith.constant 0 : i32
    %897 = tpu.memref_slice %arg3[%c53_i32_468, %c0_i32_471] : memref<64x128xf32, #tpu.memory_space<vmem>> -> memref<1x128xf32, #tpu.memory_space<vmem>>
    %898 = tpu.memref_squeeze %897 : memref<1x128xf32, #tpu.memory_space<vmem>> -> memref<128xf32, #tpu.memory_space<vmem>>
    %899 = tpu.memref_slice %arg4[%c5_i32_469] : memref<16x!tpu.dma_semaphore, #tpu.memory_space<semaphore_mem>> -> memref<1x!tpu.dma_semaphore, #tpu.memory_space<semaphore_mem>>
    %900 = tpu.memref_squeeze %899 : memref<1x!tpu.dma_semaphore, #tpu.memory_space<semaphore_mem>> -> memref<!tpu.dma_semaphore, #tpu.memory_space<semaphore_mem>>
    tpu.wait_dma2 semaphore(%900 : memref<!tpu.dma_semaphore, #tpu.memory_space<semaphore_mem>>) src(%896 : memref<128xf32, #tpu.memory_space<any>>) dst(%898 : memref<128xf32, #tpu.memory_space<vmem>>)
    %c54_i32_472 = arith.constant 54 : i32
    %c6_i32_473 = arith.constant 6 : i32
    %c0_i32_474 = arith.constant 0 : i32
    %901 = tpu.memref_slice %arg2[%717, %c0_i32_474] : memref<64x128xf32, #tpu.memory_space<any>> -> memref<1x128xf32, #tpu.memory_space<any>>
    %902 = tpu.memref_squeeze %901 : memref<1x128xf32, #tpu.memory_space<any>> -> memref<128xf32, #tpu.memory_space<any>>
    %c0_i32_475 = arith.constant 0 : i32
    %903 = tpu.memref_slice %arg3[%c54_i32_472, %c0_i32_475] : memref<64x128xf32, #tpu.memory_space<vmem>> -> memref<1x128xf32, #tpu.memory_space<vmem>>
    %904 = tpu.memref_squeeze %903 : memref<1x128xf32, #tpu.memory_space<vmem>> -> memref<128xf32, #tpu.memory_space<vmem>>
    %905 = tpu.memref_slice %arg4[%c6_i32_473] : memref<16x!tpu.dma_semaphore, #tpu.memory_space<semaphore_mem>> -> memref<1x!tpu.dma_semaphore, #tpu.memory_space<semaphore_mem>>
    %906 = tpu.memref_squeeze %905 : memref<1x!tpu.dma_semaphore, #tpu.memory_space<semaphore_mem>> -> memref<!tpu.dma_semaphore, #tpu.memory_space<semaphore_mem>>
    tpu.wait_dma2 semaphore(%906 : memref<!tpu.dma_semaphore, #tpu.memory_space<semaphore_mem>>) src(%902 : memref<128xf32, #tpu.memory_space<any>>) dst(%904 : memref<128xf32, #tpu.memory_space<vmem>>)
    %c55_i32_476 = arith.constant 55 : i32
    %c7_i32_477 = arith.constant 7 : i32
    %c0_i32_478 = arith.constant 0 : i32
    %907 = tpu.memref_slice %arg2[%732, %c0_i32_478] : memref<64x128xf32, #tpu.memory_space<any>> -> memref<1x128xf32, #tpu.memory_space<any>>
    %908 = tpu.memref_squeeze %907 : memref<1x128xf32, #tpu.memory_space<any>> -> memref<128xf32, #tpu.memory_space<any>>
    %c0_i32_479 = arith.constant 0 : i32
    %909 = tpu.memref_slice %arg3[%c55_i32_476, %c0_i32_479] : memref<64x128xf32, #tpu.memory_space<vmem>> -> memref<1x128xf32, #tpu.memory_space<vmem>>
    %910 = tpu.memref_squeeze %909 : memref<1x128xf32, #tpu.memory_space<vmem>> -> memref<128xf32, #tpu.memory_space<vmem>>
    %911 = tpu.memref_slice %arg4[%c7_i32_477] : memref<16x!tpu.dma_semaphore, #tpu.memory_space<semaphore_mem>> -> memref<1x!tpu.dma_semaphore, #tpu.memory_space<semaphore_mem>>
    %912 = tpu.memref_squeeze %911 : memref<1x!tpu.dma_semaphore, #tpu.memory_space<semaphore_mem>> -> memref<!tpu.dma_semaphore, #tpu.memory_space<semaphore_mem>>
    tpu.wait_dma2 semaphore(%912 : memref<!tpu.dma_semaphore, #tpu.memory_space<semaphore_mem>>) src(%908 : memref<128xf32, #tpu.memory_space<any>>) dst(%910 : memref<128xf32, #tpu.memory_space<vmem>>)
    %c56_i32_480 = arith.constant 56 : i32
    %c8_i32_481 = arith.constant 8 : i32
    %c0_i32_482 = arith.constant 0 : i32
    %913 = tpu.memref_slice %arg2[%747, %c0_i32_482] : memref<64x128xf32, #tpu.memory_space<any>> -> memref<1x128xf32, #tpu.memory_space<any>>
    %914 = tpu.memref_squeeze %913 : memref<1x128xf32, #tpu.memory_space<any>> -> memref<128xf32, #tpu.memory_space<any>>
    %c0_i32_483 = arith.constant 0 : i32
    %915 = tpu.memref_slice %arg3[%c56_i32_480, %c0_i32_483] : memref<64x128xf32, #tpu.memory_space<vmem>> -> memref<1x128xf32, #tpu.memory_space<vmem>>
    %916 = tpu.memref_squeeze %915 : memref<1x128xf32, #tpu.memory_space<vmem>> -> memref<128xf32, #tpu.memory_space<vmem>>
    %917 = tpu.memref_slice %arg4[%c8_i32_481] : memref<16x!tpu.dma_semaphore, #tpu.memory_space<semaphore_mem>> -> memref<1x!tpu.dma_semaphore, #tpu.memory_space<semaphore_mem>>
    %918 = tpu.memref_squeeze %917 : memref<1x!tpu.dma_semaphore, #tpu.memory_space<semaphore_mem>> -> memref<!tpu.dma_semaphore, #tpu.memory_space<semaphore_mem>>
    tpu.wait_dma2 semaphore(%918 : memref<!tpu.dma_semaphore, #tpu.memory_space<semaphore_mem>>) src(%914 : memref<128xf32, #tpu.memory_space<any>>) dst(%916 : memref<128xf32, #tpu.memory_space<vmem>>)
    %c57_i32_484 = arith.constant 57 : i32
    %c9_i32_485 = arith.constant 9 : i32
    %c0_i32_486 = arith.constant 0 : i32
    %919 = tpu.memref_slice %arg2[%762, %c0_i32_486] : memref<64x128xf32, #tpu.memory_space<any>> -> memref<1x128xf32, #tpu.memory_space<any>>
    %920 = tpu.memref_squeeze %919 : memref<1x128xf32, #tpu.memory_space<any>> -> memref<128xf32, #tpu.memory_space<any>>
    %c0_i32_487 = arith.constant 0 : i32
    %921 = tpu.memref_slice %arg3[%c57_i32_484, %c0_i32_487] : memref<64x128xf32, #tpu.memory_space<vmem>> -> memref<1x128xf32, #tpu.memory_space<vmem>>
    %922 = tpu.memref_squeeze %921 : memref<1x128xf32, #tpu.memory_space<vmem>> -> memref<128xf32, #tpu.memory_space<vmem>>
    %923 = tpu.memref_slice %arg4[%c9_i32_485] : memref<16x!tpu.dma_semaphore, #tpu.memory_space<semaphore_mem>> -> memref<1x!tpu.dma_semaphore, #tpu.memory_space<semaphore_mem>>
    %924 = tpu.memref_squeeze %923 : memref<1x!tpu.dma_semaphore, #tpu.memory_space<semaphore_mem>> -> memref<!tpu.dma_semaphore, #tpu.memory_space<semaphore_mem>>
    tpu.wait_dma2 semaphore(%924 : memref<!tpu.dma_semaphore, #tpu.memory_space<semaphore_mem>>) src(%920 : memref<128xf32, #tpu.memory_space<any>>) dst(%922 : memref<128xf32, #tpu.memory_space<vmem>>)
    %c58_i32_488 = arith.constant 58 : i32
    %c10_i32_489 = arith.constant 10 : i32
    %c0_i32_490 = arith.constant 0 : i32
    %925 = tpu.memref_slice %arg2[%777, %c0_i32_490] : memref<64x128xf32, #tpu.memory_space<any>> -> memref<1x128xf32, #tpu.memory_space<any>>
    %926 = tpu.memref_squeeze %925 : memref<1x128xf32, #tpu.memory_space<any>> -> memref<128xf32, #tpu.memory_space<any>>
    %c0_i32_491 = arith.constant 0 : i32
    %927 = tpu.memref_slice %arg3[%c58_i32_488, %c0_i32_491] : memref<64x128xf32, #tpu.memory_space<vmem>> -> memref<1x128xf32, #tpu.memory_space<vmem>>
    %928 = tpu.memref_squeeze %927 : memref<1x128xf32, #tpu.memory_space<vmem>> -> memref<128xf32, #tpu.memory_space<vmem>>
    %929 = tpu.memref_slice %arg4[%c10_i32_489] : memref<16x!tpu.dma_semaphore, #tpu.memory_space<semaphore_mem>> -> memref<1x!tpu.dma_semaphore, #tpu.memory_space<semaphore_mem>>
    %930 = tpu.memref_squeeze %929 : memref<1x!tpu.dma_semaphore, #tpu.memory_space<semaphore_mem>> -> memref<!tpu.dma_semaphore, #tpu.memory_space<semaphore_mem>>
    tpu.wait_dma2 semaphore(%930 : memref<!tpu.dma_semaphore, #tpu.memory_space<semaphore_mem>>) src(%926 : memref<128xf32, #tpu.memory_space<any>>) dst(%928 : memref<128xf32, #tpu.memory_space<vmem>>)
    %c59_i32_492 = arith.constant 59 : i32
    %c11_i32_493 = arith.constant 11 : i32
    %c0_i32_494 = arith.constant 0 : i32
    %931 = tpu.memref_slice %arg2[%792, %c0_i32_494] : memref<64x128xf32, #tpu.memory_space<any>> -> memref<1x128xf32, #tpu.memory_space<any>>
    %932 = tpu.memref_squeeze %931 : memref<1x128xf32, #tpu.memory_space<any>> -> memref<128xf32, #tpu.memory_space<any>>
    %c0_i32_495 = arith.constant 0 : i32
    %933 = tpu.memref_slice %arg3[%c59_i32_492, %c0_i32_495] : memref<64x128xf32, #tpu.memory_space<vmem>> -> memref<1x128xf32, #tpu.memory_space<vmem>>
    %934 = tpu.memref_squeeze %933 : memref<1x128xf32, #tpu.memory_space<vmem>> -> memref<128xf32, #tpu.memory_space<vmem>>
    %935 = tpu.memref_slice %arg4[%c11_i32_493] : memref<16x!tpu.dma_semaphore, #tpu.memory_space<semaphore_mem>> -> memref<1x!tpu.dma_semaphore, #tpu.memory_space<semaphore_mem>>
    %936 = tpu.memref_squeeze %935 : memref<1x!tpu.dma_semaphore, #tpu.memory_space<semaphore_mem>> -> memref<!tpu.dma_semaphore, #tpu.memory_space<semaphore_mem>>
    tpu.wait_dma2 semaphore(%936 : memref<!tpu.dma_semaphore, #tpu.memory_space<semaphore_mem>>) src(%932 : memref<128xf32, #tpu.memory_space<any>>) dst(%934 : memref<128xf32, #tpu.memory_space<vmem>>)
    %c60_i32_496 = arith.constant 60 : i32
    %c12_i32_497 = arith.constant 12 : i32
    %c0_i32_498 = arith.constant 0 : i32
    %937 = tpu.memref_slice %arg2[%807, %c0_i32_498] : memref<64x128xf32, #tpu.memory_space<any>> -> memref<1x128xf32, #tpu.memory_space<any>>
    %938 = tpu.memref_squeeze %937 : memref<1x128xf32, #tpu.memory_space<any>> -> memref<128xf32, #tpu.memory_space<any>>
    %c0_i32_499 = arith.constant 0 : i32
    %939 = tpu.memref_slice %arg3[%c60_i32_496, %c0_i32_499] : memref<64x128xf32, #tpu.memory_space<vmem>> -> memref<1x128xf32, #tpu.memory_space<vmem>>
    %940 = tpu.memref_squeeze %939 : memref<1x128xf32, #tpu.memory_space<vmem>> -> memref<128xf32, #tpu.memory_space<vmem>>
    %941 = tpu.memref_slice %arg4[%c12_i32_497] : memref<16x!tpu.dma_semaphore, #tpu.memory_space<semaphore_mem>> -> memref<1x!tpu.dma_semaphore, #tpu.memory_space<semaphore_mem>>
    %942 = tpu.memref_squeeze %941 : memref<1x!tpu.dma_semaphore, #tpu.memory_space<semaphore_mem>> -> memref<!tpu.dma_semaphore, #tpu.memory_space<semaphore_mem>>
    tpu.wait_dma2 semaphore(%942 : memref<!tpu.dma_semaphore, #tpu.memory_space<semaphore_mem>>) src(%938 : memref<128xf32, #tpu.memory_space<any>>) dst(%940 : memref<128xf32, #tpu.memory_space<vmem>>)
    %c61_i32_500 = arith.constant 61 : i32
    %c13_i32_501 = arith.constant 13 : i32
    %c0_i32_502 = arith.constant 0 : i32
    %943 = tpu.memref_slice %arg2[%822, %c0_i32_502] : memref<64x128xf32, #tpu.memory_space<any>> -> memref<1x128xf32, #tpu.memory_space<any>>
    %944 = tpu.memref_squeeze %943 : memref<1x128xf32, #tpu.memory_space<any>> -> memref<128xf32, #tpu.memory_space<any>>
    %c0_i32_503 = arith.constant 0 : i32
    %945 = tpu.memref_slice %arg3[%c61_i32_500, %c0_i32_503] : memref<64x128xf32, #tpu.memory_space<vmem>> -> memref<1x128xf32, #tpu.memory_space<vmem>>
    %946 = tpu.memref_squeeze %945 : memref<1x128xf32, #tpu.memory_space<vmem>> -> memref<128xf32, #tpu.memory_space<vmem>>
    %947 = tpu.memref_slice %arg4[%c13_i32_501] : memref<16x!tpu.dma_semaphore, #tpu.memory_space<semaphore_mem>> -> memref<1x!tpu.dma_semaphore, #tpu.memory_space<semaphore_mem>>
    %948 = tpu.memref_squeeze %947 : memref<1x!tpu.dma_semaphore, #tpu.memory_space<semaphore_mem>> -> memref<!tpu.dma_semaphore, #tpu.memory_space<semaphore_mem>>
    tpu.wait_dma2 semaphore(%948 : memref<!tpu.dma_semaphore, #tpu.memory_space<semaphore_mem>>) src(%944 : memref<128xf32, #tpu.memory_space<any>>) dst(%946 : memref<128xf32, #tpu.memory_space<vmem>>)
    %c62_i32_504 = arith.constant 62 : i32
    %c14_i32_505 = arith.constant 14 : i32
    %c0_i32_506 = arith.constant 0 : i32
    %949 = tpu.memref_slice %arg2[%837, %c0_i32_506] : memref<64x128xf32, #tpu.memory_space<any>> -> memref<1x128xf32, #tpu.memory_space<any>>
    %950 = tpu.memref_squeeze %949 : memref<1x128xf32, #tpu.memory_space<any>> -> memref<128xf32, #tpu.memory_space<any>>
    %c0_i32_507 = arith.constant 0 : i32
    %951 = tpu.memref_slice %arg3[%c62_i32_504, %c0_i32_507] : memref<64x128xf32, #tpu.memory_space<vmem>> -> memref<1x128xf32, #tpu.memory_space<vmem>>
    %952 = tpu.memref_squeeze %951 : memref<1x128xf32, #tpu.memory_space<vmem>> -> memref<128xf32, #tpu.memory_space<vmem>>
    %953 = tpu.memref_slice %arg4[%c14_i32_505] : memref<16x!tpu.dma_semaphore, #tpu.memory_space<semaphore_mem>> -> memref<1x!tpu.dma_semaphore, #tpu.memory_space<semaphore_mem>>
    %954 = tpu.memref_squeeze %953 : memref<1x!tpu.dma_semaphore, #tpu.memory_space<semaphore_mem>> -> memref<!tpu.dma_semaphore, #tpu.memory_space<semaphore_mem>>
    tpu.wait_dma2 semaphore(%954 : memref<!tpu.dma_semaphore, #tpu.memory_space<semaphore_mem>>) src(%950 : memref<128xf32, #tpu.memory_space<any>>) dst(%952 : memref<128xf32, #tpu.memory_space<vmem>>)
    %c63_i32_508 = arith.constant 63 : i32
    %c15_i32_509 = arith.constant 15 : i32
    %c0_i32_510 = arith.constant 0 : i32
    %955 = tpu.memref_slice %arg2[%852, %c0_i32_510] : memref<64x128xf32, #tpu.memory_space<any>> -> memref<1x128xf32, #tpu.memory_space<any>>
    %956 = tpu.memref_squeeze %955 : memref<1x128xf32, #tpu.memory_space<any>> -> memref<128xf32, #tpu.memory_space<any>>
    %c0_i32_511 = arith.constant 0 : i32
    %957 = tpu.memref_slice %arg3[%c63_i32_508, %c0_i32_511] : memref<64x128xf32, #tpu.memory_space<vmem>> -> memref<1x128xf32, #tpu.memory_space<vmem>>
    %958 = tpu.memref_squeeze %957 : memref<1x128xf32, #tpu.memory_space<vmem>> -> memref<128xf32, #tpu.memory_space<vmem>>
    %959 = tpu.memref_slice %arg4[%c15_i32_509] : memref<16x!tpu.dma_semaphore, #tpu.memory_space<semaphore_mem>> -> memref<1x!tpu.dma_semaphore, #tpu.memory_space<semaphore_mem>>
    %960 = tpu.memref_squeeze %959 : memref<1x!tpu.dma_semaphore, #tpu.memory_space<semaphore_mem>> -> memref<!tpu.dma_semaphore, #tpu.memory_space<semaphore_mem>>
    tpu.wait_dma2 semaphore(%960 : memref<!tpu.dma_semaphore, #tpu.memory_space<semaphore_mem>>) src(%956 : memref<128xf32, #tpu.memory_space<any>>) dst(%958 : memref<128xf32, #tpu.memory_space<vmem>>)
    return
  }
  func.func @transform_1(%arg0: i32, %arg1: memref<64xi32, #tpu.memory_space<smem>>) -> (i32, i32) {
    %c0_i32 = arith.constant 0 : i32
    %c0_i32_0 = arith.constant 0 : i32
    return %arg0, %c0_i32 : i32, i32
  }
}

</mosaic_0001>

<llo_original>
// kernel: tpu_custom_call.1
$region0: #{tpu_custom_call.1}
  #allocation0 [shape = 'u32[]', space=smem, size = 0x4, offset = 0x4, fixed_abs, tag = 'smem constant byte address 0x4 - core index']
  #allocation1 [shape = 'u32[72,128]{1,0:T(1,128)}', space=vmem, size = 0x9000, scoped, tag = 'internal scratch']
  #allocation2 [shape = 's32[16]{0}', space=sflag, size = 0x40, scoped, tag = 'scratch operand']
  #allocation3 [shape = 's32[1]{0}', space=sflag, size = 0x4, scoped, tag = 'scoped memory for tpu_custom_call.1']
  #allocation4 [shape = 'u8[512]{0}', space=smem, size = 0x200, scoped, tag = 'prefetched SMEM operand 0']
  #allocation7 [shape = 's32[]', space=sflag, size = 0x4, offset = 0, fixed_abs, tag = 'sflag constant byte address 0x0 - dummy sync flag']
  #allocation8 [shape = 's32[]', space=sflag, size = 0x4, offset = 0, fixed_abs, tag = 'sflag constant byte address 0x0 - dummy sync flag']
  #allocation9 [shape = 'u32[]', space=smem, size = 0x4, offset = 0x44, fixed_abs, tag = 'smem constant byte address 0x44 - assertion arg 0']
  #allocation10 [shape = 'u32[]', space=smem, size = 0x4, offset = 0x48, fixed_abs, tag = 'smem constant byte address 0x48 - assertion arg 1']
  #allocation11 [shape = 's32[]', space=sflag, size = 0x4, offset = 0, fixed_abs, tag = 'sflag constant byte address 0x0 - dummy sync flag']
  #allocation12 [shape = 's32[]', space=sflag, size = 0x4, offset = 0, fixed_abs, tag = 'sflag constant byte address 0x0 - dummy sync flag']
  #allocation13 [shape = 's32[]', space=sflag, size = 0x4, offset = 0, fixed_abs, tag = 'sflag constant byte address 0x0 - dummy sync flag']
  #allocation14 [shape = 's32[]', space=sflag, size = 0x4, offset = 0, fixed_abs, tag = 'sflag constant byte address 0x0 - dummy sync flag']
  #allocation15 [shape = 's32[]', space=sflag, size = 0x4, offset = 0, fixed_abs, tag = 'sflag constant byte address 0x0 - dummy sync flag']
  #allocation16 [shape = 's32[]', space=sflag, size = 0x4, offset = 0, fixed_abs, tag = 'sflag constant byte address 0x0 - dummy sync flag']
  #allocation17 [shape = 's32[]', space=sflag, size = 0x4, offset = 0, fixed_abs, tag = 'sflag constant byte address 0x0 - dummy sync flag']
  #allocation18 [shape = 's32[]', space=sflag, size = 0x4, offset = 0, fixed_abs, tag = 'sflag constant byte address 0x0 - dummy sync flag']
  #allocation19 [shape = 's32[]', space=sflag, size = 0x4, offset = 0, fixed_abs, tag = 'sflag constant byte address 0x0 - dummy sync flag']
  #allocation20 [shape = 's32[]', space=sflag, size = 0x4, offset = 0, fixed_abs, tag = 'sflag constant byte address 0x0 - dummy sync flag']
  #allocation21 [shape = 's32[]', space=sflag, size = 0x4, offset = 0, fixed_abs, tag = 'sflag constant byte address 0x0 - dummy sync flag']
  #allocation22 [shape = 's32[]', space=sflag, size = 0x4, offset = 0, fixed_abs, tag = 'sflag constant byte address 0x0 - dummy sync flag']
  #allocation23 [shape = 's32[]', space=sflag, size = 0x4, offset = 0, fixed_abs, tag = 'sflag constant byte address 0x0 - dummy sync flag']
  #allocation24 [shape = 's32[]', space=sflag, size = 0x4, offset = 0, fixed_abs, tag = 'sflag constant byte address 0x0 - dummy sync flag']
  #allocation25 [shape = 's32[]', space=sflag, size = 0x4, offset = 0, fixed_abs, tag = 'sflag constant byte address 0x0 - dummy sync flag']
  #allocation26 [shape = 's32[]', space=sflag, size = 0x4, offset = 0, fixed_abs, tag = 'sflag constant byte address 0x0 - dummy sync flag']
  #allocation27 [shape = 's32[]', space=sflag, size = 0x4, offset = 0, fixed_abs, tag = 'sflag constant byte address 0x0 - dummy sync flag']
  #allocation28 [shape = 's32[]', space=sflag, size = 0x4, offset = 0, fixed_abs, tag = 'sflag constant byte address 0x0 - dummy sync flag']
  #allocation29 [shape = 's32[]', space=sflag, size = 0x4, offset = 0, fixed_abs, tag = 'sflag constant byte address 0x0 - dummy sync flag']
  #allocation30 [shape = 's32[]', space=sflag, size = 0x4, offset = 0, fixed_abs, tag = 'sflag constant byte address 0x0 - dummy sync flag']
  #allocation31 [shape = 's32[]', space=sflag, size = 0x4, offset = 0, fixed_abs, tag = 'sflag constant byte address 0x0 - dummy sync flag']
  #allocation32 [shape = 's32[]', space=sflag, size = 0x4, offset = 0, fixed_abs, tag = 'sflag constant byte address 0x0 - dummy sync flag']
  #allocation33 [shape = 's32[]', space=sflag, size = 0x4, offset = 0, fixed_abs, tag = 'sflag constant byte address 0x0 - dummy sync flag']
  #allocation34 [shape = 's32[]', space=sflag, size = 0x4, offset = 0, fixed_abs, tag = 'sflag constant byte address 0x0 - dummy sync flag']
  #allocation35 [shape = 's32[]', space=sflag, size = 0x4, offset = 0, fixed_abs, tag = 'sflag constant byte address 0x0 - dummy sync flag']
  #allocation36 [shape = 's32[]', space=sflag, size = 0x4, offset = 0, fixed_abs, tag = 'sflag constant byte address 0x0 - dummy sync flag']
  #allocation37 [shape = 's32[]', space=sflag, size = 0x4, offset = 0, fixed_abs, tag = 'sflag constant byte address 0x0 - dummy sync flag']
  #allocation38 [shape = 's32[]', space=sflag, size = 0x4, offset = 0, fixed_abs, tag = 'sflag constant byte address 0x0 - dummy sync flag']
  #allocation39 [shape = 's32[]', space=sflag, size = 0x4, offset = 0, fixed_abs, tag = 'sflag constant byte address 0x0 - dummy sync flag']
  #allocation40 [shape = 's32[]', space=sflag, size = 0x4, offset = 0, fixed_abs, tag = 'sflag constant byte address 0x0 - dummy sync flag']
  #allocation41 [shape = 's32[]', space=sflag, size = 0x4, offset = 0, fixed_abs, tag = 'sflag constant byte address 0x0 - dummy sync flag']
  #allocation42 [shape = 's32[]', space=sflag, size = 0x4, offset = 0, fixed_abs, tag = 'sflag constant byte address 0x0 - dummy sync flag']
  #allocation43 [shape = 's32[]', space=sflag, size = 0x4, offset = 0, fixed_abs, tag = 'sflag constant byte address 0x0 - dummy sync flag']
  #allocation44 [shape = 's32[]', space=sflag, size = 0x4, offset = 0, fixed_abs, tag = 'sflag constant byte address 0x0 - dummy sync flag']
  #allocation45 [shape = 's32[]', space=sflag, size = 0x4, offset = 0, fixed_abs, tag = 'sflag constant byte address 0x0 - dummy sync flag']
  #allocation46 [shape = 's32[]', space=sflag, size = 0x4, offset = 0, fixed_abs, tag = 'sflag constant byte address 0x0 - dummy sync flag']
  #allocation47 [shape = 's32[]', space=sflag, size = 0x4, offset = 0, fixed_abs, tag = 'sflag constant byte address 0x0 - dummy sync flag']
  #allocation48 [shape = 's32[]', space=sflag, size = 0x4, offset = 0, fixed_abs, tag = 'sflag constant byte address 0x0 - dummy sync flag']
  #allocation49 [shape = 's32[]', space=sflag, size = 0x4, offset = 0, fixed_abs, tag = 'sflag constant byte address 0x0 - dummy sync flag']
  #allocation50 [shape = 's32[]', space=sflag, size = 0x4, offset = 0, fixed_abs, tag = 'sflag constant byte address 0x0 - dummy sync flag']
  #allocation51 [shape = 's32[]', space=sflag, size = 0x4, offset = 0, fixed_abs, tag = 'sflag constant byte address 0x0 - dummy sync flag']
  #allocation52 [shape = 's32[]', space=sflag, size = 0x4, offset = 0, fixed_abs, tag = 'sflag constant byte address 0x0 - dummy sync flag']
  #allocation53 [shape = 's32[]', space=sflag, size = 0x4, offset = 0, fixed_abs, tag = 'sflag constant byte address 0x0 - dummy sync flag']
  #allocation54 [shape = 's32[]', space=sflag, size = 0x4, offset = 0, fixed_abs, tag = 'sflag constant byte address 0x0 - dummy sync flag']
  #allocation55 [shape = 's32[]', space=sflag, size = 0x4, offset = 0, fixed_abs, tag = 'sflag constant byte address 0x0 - dummy sync flag']
  #allocation56 [shape = 's32[]', space=sflag, size = 0x4, offset = 0, fixed_abs, tag = 'sflag constant byte address 0x0 - dummy sync flag']
  #allocation57 [shape = 's32[]', space=sflag, size = 0x4, offset = 0, fixed_abs, tag = 'sflag constant byte address 0x0 - dummy sync flag']
  #allocation58 [shape = 's32[]', space=sflag, size = 0x4, offset = 0, fixed_abs, tag = 'sflag constant byte address 0x0 - dummy sync flag']
  #allocation59 [shape = 's32[]', space=sflag, size = 0x4, offset = 0, fixed_abs, tag = 'sflag constant byte address 0x0 - dummy sync flag']
  #allocation60 [shape = 's32[]', space=sflag, size = 0x4, offset = 0, fixed_abs, tag = 'sflag constant byte address 0x0 - dummy sync flag']
  #allocation61 [shape = 's32[]', space=sflag, size = 0x4, offset = 0, fixed_abs, tag = 'sflag constant byte address 0x0 - dummy sync flag']
  #allocation62 [shape = 's32[]', space=sflag, size = 0x4, offset = 0, fixed_abs, tag = 'sflag constant byte address 0x0 - dummy sync flag']
  #allocation63 [shape = 's32[]', space=sflag, size = 0x4, offset = 0, fixed_abs, tag = 'sflag constant byte address 0x0 - dummy sync flag']
  #allocation64 [shape = 's32[]', space=sflag, size = 0x4, offset = 0, fixed_abs, tag = 'sflag constant byte address 0x0 - dummy sync flag']
  #allocation65 [shape = 's32[]', space=sflag, size = 0x4, offset = 0, fixed_abs, tag = 'sflag constant byte address 0x0 - dummy sync flag']
  #allocation66 [shape = 's32[]', space=sflag, size = 0x4, offset = 0, fixed_abs, tag = 'sflag constant byte address 0x0 - dummy sync flag']
  #allocation67 [shape = 's32[]', space=sflag, size = 0x4, offset = 0, fixed_abs, tag = 'sflag constant byte address 0x0 - dummy sync flag']
  #allocation68 [shape = 's32[]', space=sflag, size = 0x4, offset = 0, fixed_abs, tag = 'sflag constant byte address 0x0 - dummy sync flag']
  #allocation69 [shape = 's32[]', space=sflag, size = 0x4, offset = 0, fixed_abs, tag = 'sflag constant byte address 0x0 - dummy sync flag']
  #allocation70 [shape = 's32[]', space=sflag, size = 0x4, offset = 0, fixed_abs, tag = 'sflag constant byte address 0x0 - dummy sync flag']
  #allocation71 [shape = 's32[]', space=sflag, size = 0x4, offset = 0, fixed_abs, tag = 'sflag constant byte address 0x0 - dummy sync flag']
  #allocation72 [shape = 's32[]', space=sflag, size = 0x4, offset = 0, fixed_abs, tag = 'sflag constant byte address 0x0 - dummy sync flag']
  #allocation73 [shape = 's32[]', space=sflag, size = 0x4, offset = 0, fixed_abs, tag = 'sflag constant byte address 0x0 - dummy sync flag']
  #allocation74 [shape = 's32[]', space=sflag, size = 0x4, offset = 0, fixed_abs, tag = 'sflag constant byte address 0x0 - dummy sync flag']
  #allocation75 [shape = 's32[]', space=sflag, size = 0x4, offset = 0, fixed_abs, tag = 'sflag constant byte address 0x0 - dummy sync flag']
  #allocation76 [shape = 's32[]', space=sflag, size = 0x4, offset = 0, fixed_abs, tag = 'sflag constant byte address 0x0 - dummy sync flag']
  #allocation77 [shape = 's32[]', space=sflag, size = 0x4, offset = 0, fixed_abs, tag = 'sflag constant byte address 0x0 - dummy sync flag']
  #allocation78 [shape = 's32[]', space=sflag, size = 0x4, offset = 0, fixed_abs, tag = 'sflag constant byte address 0x0 - dummy sync flag']
  #allocation79 [shape = 's32[]', space=sflag, size = 0x4, offset = 0, fixed_abs, tag = 'sflag constant byte address 0x0 - dummy sync flag']
  #allocation80 [shape = 's32[]', space=sflag, size = 0x4, offset = 0, fixed_abs, tag = 'sflag constant byte address 0x0 - dummy sync flag']
  #allocation81 [shape = 's32[]', space=sflag, size = 0x4, offset = 0, fixed_abs, tag = 'sflag constant byte address 0x0 - dummy sync flag']
  #allocation82 [shape = 's32[]', space=sflag, size = 0x4, offset = 0, fixed_abs, tag = 'sflag constant byte address 0x0 - dummy sync flag']
  #allocation83 [shape = 's32[]', space=sflag, size = 0x4, offset = 0, fixed_abs, tag = 'sflag constant byte address 0x0 - dummy sync flag']
  #allocation84 [shape = 's32[]', space=sflag, size = 0x4, offset = 0, fixed_abs, tag = 'sflag constant byte address 0x0 - dummy sync flag']
  #allocation85 [shape = 's32[]', space=sflag, size = 0x4, offset = 0, fixed_abs, tag = 'sflag constant byte address 0x0 - dummy sync flag']
  #allocation86 [shape = 's32[]', space=sflag, size = 0x4, offset = 0, fixed_abs, tag = 'sflag constant byte address 0x0 - dummy sync flag']
  #allocation87 [shape = 's32[]', space=sflag, size = 0x4, offset = 0, fixed_abs, tag = 'sflag constant byte address 0x0 - dummy sync flag']
  #allocation88 [shape = 's32[]', space=sflag, size = 0x4, offset = 0, fixed_abs, tag = 'sflag constant byte address 0x0 - dummy sync flag']
  #allocation89 [shape = 's32[]', space=sflag, size = 0x4, offset = 0, fixed_abs, tag = 'sflag constant byte address 0x0 - dummy sync flag']
  #allocation90 [shape = 's32[]', space=sflag, size = 0x4, offset = 0, fixed_abs, tag = 'sflag constant byte address 0x0 - dummy sync flag']
  #allocation91 [shape = 's32[]', space=sflag, size = 0x4, offset = 0, fixed_abs, tag = 'sflag constant byte address 0x0 - dummy sync flag']
  #allocation92 [shape = 's32[]', space=sflag, size = 0x4, offset = 0, fixed_abs, tag = 'sflag constant byte address 0x0 - dummy sync flag']
  #allocation93 [shape = 's32[]', space=sflag, size = 0x4, offset = 0, fixed_abs, tag = 'sflag constant byte address 0x0 - dummy sync flag']
  #allocation94 [shape = 's32[]', space=sflag, size = 0x4, offset = 0, fixed_abs, tag = 'sflag constant byte address 0x0 - dummy sync flag']
  #allocation95 [shape = 's32[]', space=sflag, size = 0x4, offset = 0, fixed_abs, tag = 'sflag constant byte address 0x0 - dummy sync flag']
  #allocation96 [shape = 's32[]', space=sflag, size = 0x4, offset = 0, fixed_abs, tag = 'sflag constant byte address 0x0 - dummy sync flag']
  #allocation97 [shape = 's32[]', space=sflag, size = 0x4, offset = 0, fixed_abs, tag = 'sflag constant byte address 0x0 - dummy sync flag']
  #allocation98 [shape = 's32[]', space=sflag, size = 0x4, offset = 0, fixed_abs, tag = 'sflag constant byte address 0x0 - dummy sync flag']
  #allocation99 [shape = 's32[]', space=sflag, size = 0x4, offset = 0, fixed_abs, tag = 'sflag constant byte address 0x0 - dummy sync flag']
  #allocation100 [shape = 's32[]', space=sflag, size = 0x4, offset = 0, fixed_abs, tag = 'sflag constant byte address 0x0 - dummy sync flag']
  #allocation101 [shape = 's32[]', space=sflag, size = 0x4, offset = 0, fixed_abs, tag = 'sflag constant byte address 0x0 - dummy sync flag']
  #allocation102 [shape = 's32[]', space=sflag, size = 0x4, offset = 0, fixed_abs, tag = 'sflag constant byte address 0x0 - dummy sync flag']
  #allocation103 [shape = 's32[]', space=sflag, size = 0x4, offset = 0, fixed_abs, tag = 'sflag constant byte address 0x0 - dummy sync flag']
  #allocation104 [shape = 's32[]', space=sflag, size = 0x4, offset = 0, fixed_abs, tag = 'sflag constant byte address 0x0 - dummy sync flag']
  #allocation105 [shape = 's32[]', space=sflag, size = 0x4, offset = 0, fixed_abs, tag = 'sflag constant byte address 0x0 - dummy sync flag']
  #allocation106 [shape = 's32[]', space=sflag, size = 0x4, offset = 0, fixed_abs, tag = 'sflag constant byte address 0x0 - dummy sync flag']
  #allocation107 [shape = 's32[]', space=sflag, size = 0x4, offset = 0, fixed_abs, tag = 'sflag constant byte address 0x0 - dummy sync flag']
  #allocation108 [shape = 's32[]', space=sflag, size = 0x4, offset = 0, fixed_abs, tag = 'sflag constant byte address 0x0 - dummy sync flag']
  #allocation109 [shape = 's32[]', space=sflag, size = 0x4, offset = 0, fixed_abs, tag = 'sflag constant byte address 0x0 - dummy sync flag']
  #allocation110 [shape = 's32[]', space=sflag, size = 0x4, offset = 0, fixed_abs, tag = 'sflag constant byte address 0x0 - dummy sync flag']
  #allocation111 [shape = 's32[]', space=sflag, size = 0x4, offset = 0, fixed_abs, tag = 'sflag constant byte address 0x0 - dummy sync flag']
  #allocation112 [shape = 's32[]', space=sflag, size = 0x4, offset = 0, fixed_abs, tag = 'sflag constant byte address 0x0 - dummy sync flag']
  #allocation113 [shape = 's32[]', space=sflag, size = 0x4, offset = 0, fixed_abs, tag = 'sflag constant byte address 0x0 - dummy sync flag']
  #allocation114 [shape = 's32[]', space=sflag, size = 0x4, offset = 0, fixed_abs, tag = 'sflag constant byte address 0x0 - dummy sync flag']
  #allocation115 [shape = 's32[]', space=sflag, size = 0x4, offset = 0, fixed_abs, tag = 'sflag constant byte address 0x0 - dummy sync flag']
  #allocation116 [shape = 's32[]', space=sflag, size = 0x4, offset = 0, fixed_abs, tag = 'sflag constant byte address 0x0 - dummy sync flag']
  #allocation117 [shape = 's32[]', space=sflag, size = 0x4, offset = 0, fixed_abs, tag = 'sflag constant byte address 0x0 - dummy sync flag']
  #allocation118 [shape = 's32[]', space=sflag, size = 0x4, offset = 0, fixed_abs, tag = 'sflag constant byte address 0x0 - dummy sync flag']
  #allocation119 [shape = 's32[]', space=sflag, size = 0x4, offset = 0, fixed_abs, tag = 'sflag constant byte address 0x0 - dummy sync flag']
  #allocation120 [shape = 's32[]', space=sflag, size = 0x4, offset = 0, fixed_abs, tag = 'sflag constant byte address 0x0 - dummy sync flag']
  #allocation121 [shape = 's32[]', space=sflag, size = 0x4, offset = 0, fixed_abs, tag = 'sflag constant byte address 0x0 - dummy sync flag']
  #allocation122 [shape = 's32[]', space=sflag, size = 0x4, offset = 0, fixed_abs, tag = 'sflag constant byte address 0x0 - dummy sync flag']
  #allocation123 [shape = 's32[]', space=sflag, size = 0x4, offset = 0, fixed_abs, tag = 'sflag constant byte address 0x0 - dummy sync flag']
  #allocation124 [shape = 's32[]', space=sflag, size = 0x4, offset = 0, fixed_abs, tag = 'sflag constant byte address 0x0 - dummy sync flag']
  #allocation125 [shape = 's32[]', space=sflag, size = 0x4, offset = 0, fixed_abs, tag = 'sflag constant byte address 0x0 - dummy sync flag']
  #allocation126 [shape = 's32[]', space=sflag, size = 0x4, offset = 0, fixed_abs, tag = 'sflag constant byte address 0x0 - dummy sync flag']
  #allocation127 [shape = 's32[]', space=sflag, size = 0x4, offset = 0, fixed_abs, tag = 'sflag constant byte address 0x0 - dummy sync flag']
  #allocation128 [shape = 's32[]', space=sflag, size = 0x4, offset = 0, fixed_abs, tag = 'sflag constant byte address 0x0 - dummy sync flag']
  #allocation129 [shape = 's32[]', space=sflag, size = 0x4, offset = 0, fixed_abs, tag = 'sflag constant byte address 0x0 - dummy sync flag']
  #allocation130 [shape = 's32[]', space=sflag, size = 0x4, offset = 0, fixed_abs, tag = 'sflag constant byte address 0x0 - dummy sync flag']
  #allocation131 [shape = 's32[]', space=sflag, size = 0x4, offset = 0, fixed_abs, tag = 'sflag constant byte address 0x0 - dummy sync flag']
  #allocation132 [shape = 's32[]', space=sflag, size = 0x4, offset = 0, fixed_abs, tag = 'sflag constant byte address 0x0 - dummy sync flag']
  #allocation133 [shape = 's32[]', space=sflag, size = 0x4, offset = 0, fixed_abs, tag = 'sflag constant byte address 0x0 - dummy sync flag']
  #allocation134 [shape = 's32[]', space=sflag, size = 0x4, offset = 0, fixed_abs, tag = 'sflag constant byte address 0x0 - dummy sync flag']
  #allocation135 [shape = 's32[]', space=sflag, size = 0x4, offset = 0, fixed_abs, tag = 'sflag constant byte address 0x0 - dummy sync flag']
  #allocation136 [shape = 's32[]', space=sflag, size = 0x4, offset = 0, fixed_abs, tag = 'sflag constant byte address 0x0 - dummy sync flag']
  %s0 = inlined_call_operand.hbm [shape: s32[64], index: 0, kind: input, shape index: {}]
  %s1 = inlined_call_operand.hbm [shape: f32[64,128], index: 1, kind: input, shape index: {}]
  %s2 = inlined_call_operand.hbm [shape: f32[64,128], index: 2, kind: output, shape index: {}]
  %s3 = sld [smem:[#allocation0]]
  $region266: #{tpu_custom_call.1} parent=0
    _
  %s5 = ssub.s32 1, %s3
  %s6 = scalar_select 0, %s5, %s3
  %s8 = sshll.u32 %s0, 4
  %s9 = int_to_ptr.hbm [resolvable:$true] %s8
  %11 = dma.hbm_to_smem %s9, 16, [#allocation4], [#allocation3]
  %13 = dma.done [#allocation3], 16
  %14 = sfence
  $region1: #{tpu_custom_call.1} parent=0
    #allocation5 [shape = 'u8[32768]{0}', space=vmem, size = 0x8000, scoped, tag = 'output window, operand 0, single buffered']
    #allocation6 [shape = 's32[1]{0}', space=sflag, size = 0x4, scoped, tag = 'scoped memory for tpu_custom_call.1']
    %15 = vsyncpa [#allocation6], 0
    %s16 = smul.u32 0, 64
    %s17 = sld [smem:[#allocation4 + %s16]]
    %s18 = scalar_lea.hbm %s1, %s17
    // Predicated region
    $region2: #{tpu_custom_call.1} parent=1 // pred_check
      _
    $region3: #{tpu_custom_call.1} parent=1 // pred_check_branch
      %20 = sbr.rel target = $region5
    $region4: #{tpu_custom_call.1} parent=1 // pred_region
      %21 = sst [smem:[#allocation9]] [#allocation8]
      %22 = sst [smem:[#allocation10]] [#allocation7]
    $region5: #{tpu_custom_call.1} parent=1 // pred_fallthru
      _
    %24 = shalt.err (0)
    %s26 = sshll.u32 %s18, 4
    %s27 = int_to_ptr.hbm [resolvable:$true] %s26
    %s28 = sshll.u32 [#allocation5], 4
    %s29 = int_to_ptr.vmem [resolvable:$true] %s28
    %31 = dma.hbm_to_vmem [thread:$0]  %s27, 16, %s29, [#allocation2]
    %s32 = sadd.s32 %s16, 1
    %s33 = sld [smem:[#allocation4 + %s32]]
    %s34 = scalar_lea.hbm %s1, %s33
    %s35 = scalar_lea.vmem [#allocation5], 1
    %s36 = scalar_lea.sflag [#allocation2], 1
    // Predicated region
    $region6: #{tpu_custom_call.1} parent=1 // pred_check
      _
    $region7: #{tpu_custom_call.1} parent=1 // pred_check_branch
      %38 = sbr.rel target = $region9
    $region8: #{tpu_custom_call.1} parent=1 // pred_region
      %39 = sst [smem:[#allocation9]] [#allocation12]
      %40 = sst [smem:[#allocation10]] [#allocation11]
    $region9: #{tpu_custom_call.1} parent=1 // pred_fallthru
      _
    %42 = shalt.err (0)
    %s44 = sshll.u32 %s34, 4
    %s45 = int_to_ptr.hbm [resolvable:$true] %s44
    %s46 = sshll.u32 %s35, 4
    %s47 = int_to_ptr.vmem [resolvable:$true] %s46
    %49 = dma.hbm_to_vmem [thread:$0]  %s45, 16, %s47, %s36
    %s50 = sadd.s32 %s16, 2
    %s51 = sld [smem:[#allocation4 + %s50]]
    %s52 = scalar_lea.hbm %s1, %s51
    %s53 = scalar_lea.vmem [#allocation5], 2
    %s54 = scalar_lea.sflag [#allocation2], 2
    // Predicated region
    $region10: #{tpu_custom_call.1} parent=1 // pred_check
      _
    $region11: #{tpu_custom_call.1} parent=1 // pred_check_branch
      %56 = sbr.rel target = $region13
    $region12: #{tpu_custom_call.1} parent=1 // pred_region
      %57 = sst [smem:[#allocation9]] [#allocation14]
      %58 = sst [smem:[#allocation10]] [#allocation13]
    $region13: #{tpu_custom_call.1} parent=1 // pred_fallthru
      _
    %60 = shalt.err (0)
    %s62 = sshll.u32 %s52, 4
    %s63 = int_to_ptr.hbm [resolvable:$true] %s62
    %s64 = sshll.u32 %s53, 4
    %s65 = int_to_ptr.vmem [resolvable:$true] %s64
    %67 = dma.hbm_to_vmem [thread:$0]  %s63, 16, %s65, %s54
    %s68 = sadd.s32 %s16, 3
    %s69 = sld [smem:[#allocation4 + %s68]]
    %s70 = scalar_lea.hbm %s1, %s69
    %s71 = scalar_lea.vmem [#allocation5], 3
    %s72 = scalar_lea.sflag [#allocation2], 3
    // Predicated region
    $region14: #{tpu_custom_call.1} parent=1 // pred_check
      _
    $region15: #{tpu_custom_call.1} parent=1 // pred_check_branch
      %74 = sbr.rel target = $region17
    $region16: #{tpu_custom_call.1} parent=1 // pred_region
      %75 = sst [smem:[#allocation9]] [#allocation16]
      %76 = sst [smem:[#allocation10]] [#allocation15]
    $region17: #{tpu_custom_call.1} parent=1 // pred_fallthru
      _
    %78 = shalt.err (0)
    %s80 = sshll.u32 %s70, 4
    %s81 = int_to_ptr.hbm [resolvable:$true] %s80
    %s82 = sshll.u32 %s71, 4
    %s83 = int_to_ptr.vmem [resolvable:$true] %s82
    %85 = dma.hbm_to_vmem [thread:$0]  %s81, 16, %s83, %s72
    %s86 = sadd.s32 %s16, 4
    %s87 = sld [smem:[#allocation4 + %s86]]
    %s88 = scalar_lea.hbm %s1, %s87
    %s89 = scalar_lea.vmem [#allocation5], 4
    %s90 = scalar_lea.sflag [#allocation2], 4
    // Predicated region
    $region18: #{tpu_custom_call.1} parent=1 // pred_check
      _
    $region19: #{tpu_custom_call.1} parent=1 // pred_check_branch
      %92 = sbr.rel target = $region21
    $region20: #{tpu_custom_call.1} parent=1 // pred_region
      %93 = sst [smem:[#allocation9]] [#allocation18]
      %94 = sst [smem:[#allocation10]] [#allocation17]
    $region21: #{tpu_custom_call.1} parent=1 // pred_fallthru
      _
    %96 = shalt.err (0)
    %s98 = sshll.u32 %s88, 4
    %s99 = int_to_ptr.hbm [resolvable:$true] %s98
    %s100 = sshll.u32 %s89, 4
    %s101 = int_to_ptr.vmem [resolvable:$true] %s100
    %103 = dma.hbm_to_vmem [thread:$0]  %s99, 16, %s101, %s90
    %s104 = sadd.s32 %s16, 5
    %s105 = sld [smem:[#allocation4 + %s104]]
    %s106 = scalar_lea.hbm %s1, %s105
    %s107 = scalar_lea.vmem [#allocation5], 5
    %s108 = scalar_lea.sflag [#allocation2], 5
    // Predicated region
    $region22: #{tpu_custom_call.1} parent=1 // pred_check
      _
    $region23: #{tpu_custom_call.1} parent=1 // pred_check_branch
      %110 = sbr.rel target = $region25
    $region24: #{tpu_custom_call.1} parent=1 // pred_region
      %111 = sst [smem:[#allocation9]] [#allocation20]
      %112 = sst [smem:[#allocation10]] [#allocation19]
    $region25: #{tpu_custom_call.1} parent=1 // pred_fallthru
      _
    %114 = shalt.err (0)
    %s116 = sshll.u32 %s106, 4
    %s117 = int_to_ptr.hbm [resolvable:$true] %s116
    %s118 = sshll.u32 %s107, 4
    %s119 = int_to_ptr.vmem [resolvable:$true] %s118
    %121 = dma.hbm_to_vmem [thread:$0]  %s117, 16, %s119, %s108
    %s122 = sadd.s32 %s16, 6
    %s123 = sld [smem:[#allocation4 + %s122]]
    %s124 = scalar_lea.hbm %s1, %s123
    %s125 = scalar_lea.vmem [#allocation5], 6
    %s126 = scalar_lea.sflag [#allocation2], 6
    // Predicated region
    $region26: #{tpu_custom_call.1} parent=1 // pred_check
      _
    $region27: #{tpu_custom_call.1} parent=1 // pred_check_branch
      %128 = sbr.rel target = $region29
    $region28: #{tpu_custom_call.1} parent=1 // pred_region
      %129 = sst [smem:[#allocation9]] [#allocation22]
      %130 = sst [smem:[#allocation10]] [#allocation21]
    $region29: #{tpu_custom_call.1} parent=1 // pred_fallthru
      _
    %132 = shalt.err (0)
    %s134 = sshll.u32 %s124, 4
    %s135 = int_to_ptr.hbm [resolvable:$true] %s134
    %s136 = sshll.u32 %s125, 4
    %s137 = int_to_ptr.vmem [resolvable:$true] %s136
    %139 = dma.hbm_to_vmem [thread:$0]  %s135, 16, %s137, %s126
    %s140 = sadd.s32 %s16, 7
    %s141 = sld [smem:[#allocation4 + %s140]]
    %s142 = scalar_lea.hbm %s1, %s141
    %s143 = scalar_lea.vmem [#allocation5], 7
    %s144 = scalar_lea.sflag [#allocation2], 7
    // Predicated region
    $region30: #{tpu_custom_call.1} parent=1 // pred_check
      _
    $region31: #{tpu_custom_call.1} parent=1 // pred_check_branch
      %146 = sbr.rel target = $region33
    $region32: #{tpu_custom_call.1} parent=1 // pred_region
      %147 = sst [smem:[#allocation9]] [#allocation24]
      %148 = sst [smem:[#allocation10]] [#allocation23]
    $region33: #{tpu_custom_call.1} parent=1 // pred_fallthru
      _
    %150 = shalt.err (0)
    %s152 = sshll.u32 %s142, 4
    %s153 = int_to_ptr.hbm [resolvable:$true] %s152
    %s154 = sshll.u32 %s143, 4
    %s155 = int_to_ptr.vmem [resolvable:$true] %s154
    %157 = dma.hbm_to_vmem [thread:$0]  %s153, 16, %s155, %s144
    %s158 = sadd.s32 %s16, 8
    %s159 = sld [smem:[#allocation4 + %s158]]
    %s160 = scalar_lea.hbm %s1, %s159
    %s161 = scalar_lea.vmem [#allocation5], 8
    %s162 = scalar_lea.sflag [#allocation2], 8
    // Predicated region
    $region34: #{tpu_custom_call.1} parent=1 // pred_check
      _
    $region35: #{tpu_custom_call.1} parent=1 // pred_check_branch
      %164 = sbr.rel target = $region37
    $region36: #{tpu_custom_call.1} parent=1 // pred_region
      %165 = sst [smem:[#allocation9]] [#allocation26]
      %166 = sst [smem:[#allocation10]] [#allocation25]
    $region37: #{tpu_custom_call.1} parent=1 // pred_fallthru
      _
    %168 = shalt.err (0)
    %s170 = sshll.u32 %s160, 4
    %s171 = int_to_ptr.hbm [resolvable:$true] %s170
    %s172 = sshll.u32 %s161, 4
    %s173 = int_to_ptr.vmem [resolvable:$true] %s172
    %175 = dma.hbm_to_vmem [thread:$0]  %s171, 16, %s173, %s162
    %s176 = sadd.s32 %s16, 9
    %s177 = sld [smem:[#allocation4 + %s176]]
    %s178 = scalar_lea.hbm %s1, %s177
    %s179 = scalar_lea.vmem [#allocation5], 9
    %s180 = scalar_lea.sflag [#allocation2], 9
    // Predicated region
    $region38: #{tpu_custom_call.1} parent=1 // pred_check
      _
    $region39: #{tpu_custom_call.1} parent=1 // pred_check_branch
      %182 = sbr.rel target = $region41
    $region40: #{tpu_custom_call.1} parent=1 // pred_region
      %183 = sst [smem:[#allocation9]] [#allocation28]
      %184 = sst [smem:[#allocation10]] [#allocation27]
    $region41: #{tpu_custom_call.1} parent=1 // pred_fallthru
      _
    %186 = shalt.err (0)
    %s188 = sshll.u32 %s178, 4
    %s189 = int_to_ptr.hbm [resolvable:$true] %s188
    %s190 = sshll.u32 %s179, 4
    %s191 = int_to_ptr.vmem [resolvable:$true] %s190
    %193 = dma.hbm_to_vmem [thread:$0]  %s189, 16, %s191, %s180
    %s194 = sadd.s32 %s16, 10
    %s195 = sld [smem:[#allocation4 + %s194]]
    %s196 = scalar_lea.hbm %s1, %s195
    %s197 = scalar_lea.vmem [#allocation5], 10
    %s198 = scalar_lea.sflag [#allocation2], 10
    // Predicated region
    $region42: #{tpu_custom_call.1} parent=1 // pred_check
      _
    $region43: #{tpu_custom_call.1} parent=1 // pred_check_branch
      %200 = sbr.rel target = $region45
    $region44: #{tpu_custom_call.1} parent=1 // pred_region
      %201 = sst [smem:[#allocation9]] [#allocation30]
      %202 = sst [smem:[#allocation10]] [#allocation29]
    $region45: #{tpu_custom_call.1} parent=1 // pred_fallthru
      _
    %204 = shalt.err (0)
    %s206 = sshll.u32 %s196, 4
    %s207 = int_to_ptr.hbm [resolvable:$true] %s206
    %s208 = sshll.u32 %s197, 4
    %s209 = int_to_ptr.vmem [resolvable:$true] %s208
    %211 = dma.hbm_to_vmem [thread:$0]  %s207, 16, %s209, %s198
    %s212 = sadd.s32 %s16, 11
    %s213 = sld [smem:[#allocation4 + %s212]]
    %s214 = scalar_lea.hbm %s1, %s213
    %s215 = scalar_lea.vmem [#allocation5], 11
    %s216 = scalar_lea.sflag [#allocation2], 11
    // Predicated region
    $region46: #{tpu_custom_call.1} parent=1 // pred_check
      _
    $region47: #{tpu_custom_call.1} parent=1 // pred_check_branch
      %218 = sbr.rel target = $region49
    $region48: #{tpu_custom_call.1} parent=1 // pred_region
      %219 = sst [smem:[#allocation9]] [#allocation32]
      %220 = sst [smem:[#allocation10]] [#allocation31]
    $region49: #{tpu_custom_call.1} parent=1 // pred_fallthru
      _
    %222 = shalt.err (0)
    %s224 = sshll.u32 %s214, 4
    %s225 = int_to_ptr.hbm [resolvable:$true] %s224
    %s226 = sshll.u32 %s215, 4
    %s227 = int_to_ptr.vmem [resolvable:$true] %s226
    %229 = dma.hbm_to_vmem [thread:$0]  %s225, 16, %s227, %s216
    %s230 = sadd.s32 %s16, 12
    %s231 = sld [smem:[#allocation4 + %s230]]
    %s232 = scalar_lea.hbm %s1, %s231
    %s233 = scalar_lea.vmem [#allocation5], 12
    %s234 = scalar_lea.sflag [#allocation2], 12
    // Predicated region
    $region50: #{tpu_custom_call.1} parent=1 // pred_check
      _
    $region51: #{tpu_custom_call.1} parent=1 // pred_check_branch
      %236 = sbr.rel target = $region53
    $region52: #{tpu_custom_call.1} parent=1 // pred_region
      %237 = sst [smem:[#allocation9]] [#allocation34]
      %238 = sst [smem:[#allocation10]] [#allocation33]
    $region53: #{tpu_custom_call.1} parent=1 // pred_fallthru
      _
    %240 = shalt.err (0)
    %s242 = sshll.u32 %s232, 4
    %s243 = int_to_ptr.hbm [resolvable:$true] %s242
    %s244 = sshll.u32 %s233, 4
    %s245 = int_to_ptr.vmem [resolvable:$true] %s244
    %247 = dma.hbm_to_vmem [thread:$0]  %s243, 16, %s245, %s234
    %s248 = sadd.s32 %s16, 13
    %s249 = sld [smem:[#allocation4 + %s248]]
    %s250 = scalar_lea.hbm %s1, %s249
    %s251 = scalar_lea.vmem [#allocation5], 13
    %s252 = scalar_lea.sflag [#allocation2], 13
    // Predicated region
    $region54: #{tpu_custom_call.1} parent=1 // pred_check
      _
    $region55: #{tpu_custom_call.1} parent=1 // pred_check_branch
      %254 = sbr.rel target = $region57
    $region56: #{tpu_custom_call.1} parent=1 // pred_region
      %255 = sst [smem:[#allocation9]] [#allocation36]
      %256 = sst [smem:[#allocation10]] [#allocation35]
    $region57: #{tpu_custom_call.1} parent=1 // pred_fallthru
      _
    %258 = shalt.err (0)
    %s260 = sshll.u32 %s250, 4
    %s261 = int_to_ptr.hbm [resolvable:$true] %s260
    %s262 = sshll.u32 %s251, 4
    %s263 = int_to_ptr.vmem [resolvable:$true] %s262
    %265 = dma.hbm_to_vmem [thread:$0]  %s261, 16, %s263, %s252
    %s266 = sadd.s32 %s16, 14
    %s267 = sld [smem:[#allocation4 + %s266]]
    %s268 = scalar_lea.hbm %s1, %s267
    %s269 = scalar_lea.vmem [#allocation5], 14
    %s270 = scalar_lea.sflag [#allocation2], 14
    // Predicated region
    $region58: #{tpu_custom_call.1} parent=1 // pred_check
      _
    $region59: #{tpu_custom_call.1} parent=1 // pred_check_branch
      %272 = sbr.rel target = $region61
    $region60: #{tpu_custom_call.1} parent=1 // pred_region
      %273 = sst [smem:[#allocation9]] [#allocation38]
      %274 = sst [smem:[#allocation10]] [#allocation37]
    $region61: #{tpu_custom_call.1} parent=1 // pred_fallthru
      _
    %276 = shalt.err (0)
    %s278 = sshll.u32 %s268, 4
    %s279 = int_to_ptr.hbm [resolvable:$true] %s278
    %s280 = sshll.u32 %s269, 4
    %s281 = int_to_ptr.vmem [resolvable:$true] %s280
    %283 = dma.hbm_to_vmem [thread:$0]  %s279, 16, %s281, %s270
    %s284 = sadd.s32 %s16, 15
    %s285 = sld [smem:[#allocation4 + %s284]]
    %s286 = scalar_lea.hbm %s1, %s285
    %s287 = scalar_lea.vmem [#allocation5], 15
    %s288 = scalar_lea.sflag [#allocation2], 15
    // Predicated region
    $region62: #{tpu_custom_call.1} parent=1 // pred_check
      _
    $region63: #{tpu_custom_call.1} parent=1 // pred_check_branch
      %290 = sbr.rel target = $region65
    $region64: #{tpu_custom_call.1} parent=1 // pred_region
      %291 = sst [smem:[#allocation9]] [#allocation40]
      %292 = sst [smem:[#allocation10]] [#allocation39]
    $region65: #{tpu_custom_call.1} parent=1 // pred_fallthru
      _
    %294 = shalt.err (0)
    %s296 = sshll.u32 %s286, 4
    %s297 = int_to_ptr.hbm [resolvable:$true] %s296
    %s298 = sshll.u32 %s287, 4
    %s299 = int_to_ptr.vmem [resolvable:$true] %s298
    %301 = dma.hbm_to_vmem [thread:$0]  %s297, 16, %s299, %s288
    %s302 = sadd.s32 %s16, 16
    %s303 = sld [smem:[#allocation4 + %s302]]
    %305 = dma.done [#allocation2], 16
    %s306 = scalar_lea.hbm %s1, %s303
    %s307 = scalar_lea.vmem [#allocation5], 16
    // Predicated region
    $region66: #{tpu_custom_call.1} parent=1 // pred_check
      _
    $region67: #{tpu_custom_call.1} parent=1 // pred_check_branch
      %309 = sbr.rel target = $region69
    $region68: #{tpu_custom_call.1} parent=1 // pred_region
      %310 = sst [smem:[#allocation9]] [#allocation42]
      %311 = sst [smem:[#allocation10]] [#allocation41]
    $region69: #{tpu_custom_call.1} parent=1 // pred_fallthru
      _
    %313 = shalt.err (0)
    %s315 = sshll.u32 %s306, 4
    %s316 = int_to_ptr.hbm [resolvable:$true] %s315
    %s317 = sshll.u32 %s307, 4
    %s318 = int_to_ptr.vmem [resolvable:$true] %s317
    %320 = dma.hbm_to_vmem [thread:$0]  %s316, 16, %s318, [#allocation2]
    %s321 = sadd.s32 %s16, 17
    %s322 = sld [smem:[#allocation4 + %s321]]
    %324 = dma.done %s36, 16
    %s325 = scalar_lea.hbm %s1, %s322
    %s326 = scalar_lea.vmem [#allocation5], 17
    // Predicated region
    $region70: #{tpu_custom_call.1} parent=1 // pred_check
      _
    $region71: #{tpu_custom_call.1} parent=1 // pred_check_branch
      %328 = sbr.rel target = $region73
    $region72: #{tpu_custom_call.1} parent=1 // pred_region
      %329 = sst [smem:[#allocation9]] [#allocation44]
      %330 = sst [smem:[#allocation10]] [#allocation43]
    $region73: #{tpu_custom_call.1} parent=1 // pred_fallthru
      _
    %332 = shalt.err (0)
    %s334 = sshll.u32 %s325, 4
    %s335 = int_to_ptr.hbm [resolvable:$true] %s334
    %s336 = sshll.u32 %s326, 4
    %s337 = int_to_ptr.vmem [resolvable:$true] %s336
    %339 = dma.hbm_to_vmem [thread:$0]  %s335, 16, %s337, %s36
    %s340 = sadd.s32 %s16, 18
    %s341 = sld [smem:[#allocation4 + %s340]]
    %343 = dma.done %s54, 16
    %s344 = scalar_lea.hbm %s1, %s341
    %s345 = scalar_lea.vmem [#allocation5], 18
    // Predicated region
    $region74: #{tpu_custom_call.1} parent=1 // pred_check
      _
    $region75: #{tpu_custom_call.1} parent=1 // pred_check_branch
      %347 = sbr.rel target = $region77
    $region76: #{tpu_custom_call.1} parent=1 // pred_region
      %348 = sst [smem:[#allocation9]] [#allocation46]
      %349 = sst [smem:[#allocation10]] [#allocation45]
    $region77: #{tpu_custom_call.1} parent=1 // pred_fallthru
      _
    %351 = shalt.err (0)
    %s353 = sshll.u32 %s344, 4
    %s354 = int_to_ptr.hbm [resolvable:$true] %s353
    %s355 = sshll.u32 %s345, 4
    %s356 = int_to_ptr.vmem [resolvable:$true] %s355
    %358 = dma.hbm_to_vmem [thread:$0]  %s354, 16, %s356, %s54
    %s359 = sadd.s32 %s16, 19
    %s360 = sld [smem:[#allocation4 + %s359]]
    %362 = dma.done %s72, 16
    %s363 = scalar_lea.hbm %s1, %s360
    %s364 = scalar_lea.vmem [#allocation5], 19
    // Predicated region
    $region78: #{tpu_custom_call.1} parent=1 // pred_check
      _
    $region79: #{tpu_custom_call.1} parent=1 // pred_check_branch
      %366 = sbr.rel target = $region81
    $region80: #{tpu_custom_call.1} parent=1 // pred_region
      %367 = sst [smem:[#allocation9]] [#allocation48]
      %368 = sst [smem:[#allocation10]] [#allocation47]
    $region81: #{tpu_custom_call.1} parent=1 // pred_fallthru
      _
    %370 = shalt.err (0)
    %s372 = sshll.u32 %s363, 4
    %s373 = int_to_ptr.hbm [resolvable:$true] %s372
    %s374 = sshll.u32 %s364, 4
    %s375 = int_to_ptr.vmem [resolvable:$true] %s374
    %377 = dma.hbm_to_vmem [thread:$0]  %s373, 16, %s375, %s72
    %s378 = sadd.s32 %s16, 20
    %s379 = sld [smem:[#allocation4 + %s378]]
    %381 = dma.done %s90, 16
    %s382 = scalar_lea.hbm %s1, %s379
    %s383 = scalar_lea.vmem [#allocation5], 20
    // Predicated region
    $region82: #{tpu_custom_call.1} parent=1 // pred_check
      _
    $region83: #{tpu_custom_call.1} parent=1 // pred_check_branch
      %385 = sbr.rel target = $region85
    $region84: #{tpu_custom_call.1} parent=1 // pred_region
      %386 = sst [smem:[#allocation9]] [#allocation50]
      %387 = sst [smem:[#allocation10]] [#allocation49]
    $region85: #{tpu_custom_call.1} parent=1 // pred_fallthru
      _
    %389 = shalt.err (0)
    %s391 = sshll.u32 %s382, 4
    %s392 = int_to_ptr.hbm [resolvable:$true] %s391
    %s393 = sshll.u32 %s383, 4
    %s394 = int_to_ptr.vmem [resolvable:$true] %s393
    %396 = dma.hbm_to_vmem [thread:$0]  %s392, 16, %s394, %s90
    %s397 = sadd.s32 %s16, 21
    %s398 = sld [smem:[#allocation4 + %s397]]
    %400 = dma.done %s108, 16
    %s401 = scalar_lea.hbm %s1, %s398
    %s402 = scalar_lea.vmem [#allocation5], 21
    // Predicated region
    $region86: #{tpu_custom_call.1} parent=1 // pred_check
      _
    $region87: #{tpu_custom_call.1} parent=1 // pred_check_branch
      %404 = sbr.rel target = $region89
    $region88: #{tpu_custom_call.1} parent=1 // pred_region
      %405 = sst [smem:[#allocation9]] [#allocation52]
      %406 = sst [smem:[#allocation10]] [#allocation51]
    $region89: #{tpu_custom_call.1} parent=1 // pred_fallthru
      _
    %408 = shalt.err (0)
    %s410 = sshll.u32 %s401, 4
    %s411 = int_to_ptr.hbm [resolvable:$true] %s410
    %s412 = sshll.u32 %s402, 4
    %s413 = int_to_ptr.vmem [resolvable:$true] %s412
    %415 = dma.hbm_to_vmem [thread:$0]  %s411, 16, %s413, %s108
    %s416 = sadd.s32 %s16, 22
    %s417 = sld [smem:[#allocation4 + %s416]]
    %419 = dma.done %s126, 16
    %s420 = scalar_lea.hbm %s1, %s417
    %s421 = scalar_lea.vmem [#allocation5], 22
    // Predicated region
    $region90: #{tpu_custom_call.1} parent=1 // pred_check
      _
    $region91: #{tpu_custom_call.1} parent=1 // pred_check_branch
      %423 = sbr.rel target = $region93
    $region92: #{tpu_custom_call.1} parent=1 // pred_region
      %424 = sst [smem:[#allocation9]] [#allocation54]
      %425 = sst [smem:[#allocation10]] [#allocation53]
    $region93: #{tpu_custom_call.1} parent=1 // pred_fallthru
      _
    %427 = shalt.err (0)
    %s429 = sshll.u32 %s420, 4
    %s430 = int_to_ptr.hbm [resolvable:$true] %s429
    %s431 = sshll.u32 %s421, 4
    %s432 = int_to_ptr.vmem [resolvable:$true] %s431
    %434 = dma.hbm_to_vmem [thread:$0]  %s430, 16, %s432, %s126
    %s435 = sadd.s32 %s16, 23
    %s436 = sld [smem:[#allocation4 + %s435]]
    %438 = dma.done %s144, 16
    %s439 = scalar_lea.hbm %s1, %s436
    %s440 = scalar_lea.vmem [#allocation5], 23
    // Predicated region
    $region94: #{tpu_custom_call.1} parent=1 // pred_check
      _
    $region95: #{tpu_custom_call.1} parent=1 // pred_check_branch
      %442 = sbr.rel target = $region97
    $region96: #{tpu_custom_call.1} parent=1 // pred_region
      %443 = sst [smem:[#allocation9]] [#allocation56]
      %444 = sst [smem:[#allocation10]] [#allocation55]
    $region97: #{tpu_custom_call.1} parent=1 // pred_fallthru
      _
    %446 = shalt.err (0)
    %s448 = sshll.u32 %s439, 4
    %s449 = int_to_ptr.hbm [resolvable:$true] %s448
    %s450 = sshll.u32 %s440, 4
    %s451 = int_to_ptr.vmem [resolvable:$true] %s450
    %453 = dma.hbm_to_vmem [thread:$0]  %s449, 16, %s451, %s144
    %s454 = sadd.s32 %s16, 24
    %s455 = sld [smem:[#allocation4 + %s454]]
    %457 = dma.done %s162, 16
    %s458 = scalar_lea.hbm %s1, %s455
    %s459 = scalar_lea.vmem [#allocation5], 24
    // Predicated region
    $region98: #{tpu_custom_call.1} parent=1 // pred_check
      _
    $region99: #{tpu_custom_call.1} parent=1 // pred_check_branch
      %461 = sbr.rel target = $region101
    $region100: #{tpu_custom_call.1} parent=1 // pred_region
      %462 = sst [smem:[#allocation9]] [#allocation58]
      %463 = sst [smem:[#allocation10]] [#allocation57]
    $region101: #{tpu_custom_call.1} parent=1 // pred_fallthru
      _
    %465 = shalt.err (0)
    %s467 = sshll.u32 %s458, 4
    %s468 = int_to_ptr.hbm [resolvable:$true] %s467
    %s469 = sshll.u32 %s459, 4
    %s470 = int_to_ptr.vmem [resolvable:$true] %s469
    %472 = dma.hbm_to_vmem [thread:$0]  %s468, 16, %s470, %s162
    %s473 = sadd.s32 %s16, 25
    %s474 = sld [smem:[#allocation4 + %s473]]
    %476 = dma.done %s180, 16
    %s477 = scalar_lea.hbm %s1, %s474
    %s478 = scalar_lea.vmem [#allocation5], 25
    // Predicated region
    $region102: #{tpu_custom_call.1} parent=1 // pred_check
      _
    $region103: #{tpu_custom_call.1} parent=1 // pred_check_branch
      %480 = sbr.rel target = $region105
    $region104: #{tpu_custom_call.1} parent=1 // pred_region
      %481 = sst [smem:[#allocation9]] [#allocation60]
      %482 = sst [smem:[#allocation10]] [#allocation59]
    $region105: #{tpu_custom_call.1} parent=1 // pred_fallthru
      _
    %484 = shalt.err (0)
    %s486 = sshll.u32 %s477, 4
    %s487 = int_to_ptr.hbm [resolvable:$true] %s486
    %s488 = sshll.u32 %s478, 4
    %s489 = int_to_ptr.vmem [resolvable:$true] %s488
    %491 = dma.hbm_to_vmem [thread:$0]  %s487, 16, %s489, %s180
    %s492 = sadd.s32 %s16, 26
    %s493 = sld [smem:[#allocation4 + %s492]]
    %495 = dma.done %s198, 16
    %s496 = scalar_lea.hbm %s1, %s493
    %s497 = scalar_lea.vmem [#allocation5], 26
    // Predicated region
    $region106: #{tpu_custom_call.1} parent=1 // pred_check
      _
    $region107: #{tpu_custom_call.1} parent=1 // pred_check_branch
      %499 = sbr.rel target = $region109
    $region108: #{tpu_custom_call.1} parent=1 // pred_region
      %500 = sst [smem:[#allocation9]] [#allocation62]
      %501 = sst [smem:[#allocation10]] [#allocation61]
    $region109: #{tpu_custom_call.1} parent=1 // pred_fallthru
      _
    %503 = shalt.err (0)
    %s505 = sshll.u32 %s496, 4
    %s506 = int_to_ptr.hbm [resolvable:$true] %s505
    %s507 = sshll.u32 %s497, 4
    %s508 = int_to_ptr.vmem [resolvable:$true] %s507
    %510 = dma.hbm_to_vmem [thread:$0]  %s506, 16, %s508, %s198
    %s511 = sadd.s32 %s16, 27
    %s512 = sld [smem:[#allocation4 + %s511]]
    %514 = dma.done %s216, 16
    %s515 = scalar_lea.hbm %s1, %s512
    %s516 = scalar_lea.vmem [#allocation5], 27
    // Predicated region
    $region110: #{tpu_custom_call.1} parent=1 // pred_check
      _
    $region111: #{tpu_custom_call.1} parent=1 // pred_check_branch
      %518 = sbr.rel target = $region113
    $region112: #{tpu_custom_call.1} parent=1 // pred_region
      %519 = sst [smem:[#allocation9]] [#allocation64]
      %520 = sst [smem:[#allocation10]] [#allocation63]
    $region113: #{tpu_custom_call.1} parent=1 // pred_fallthru
      _
    %522 = shalt.err (0)
    %s524 = sshll.u32 %s515, 4
    %s525 = int_to_ptr.hbm [resolvable:$true] %s524
    %s526 = sshll.u32 %s516, 4
    %s527 = int_to_ptr.vmem [resolvable:$true] %s526
    %529 = dma.hbm_to_vmem [thread:$0]  %s525, 16, %s527, %s216
    %s530 = sadd.s32 %s16, 28
    %s531 = sld [smem:[#allocation4 + %s530]]
    %533 = dma.done %s234, 16
    %s534 = scalar_lea.hbm %s1, %s531
    %s535 = scalar_lea.vmem [#allocation5], 28
    // Predicated region
    $region114: #{tpu_custom_call.1} parent=1 // pred_check
      _
    $region115: #{tpu_custom_call.1} parent=1 // pred_check_branch
      %537 = sbr.rel target = $region117
    $region116: #{tpu_custom_call.1} parent=1 // pred_region
      %538 = sst [smem:[#allocation9]] [#allocation66]
      %539 = sst [smem:[#allocation10]] [#allocation65]
    $region117: #{tpu_custom_call.1} parent=1 // pred_fallthru
      _
    %541 = shalt.err (0)
    %s543 = sshll.u32 %s534, 4
    %s544 = int_to_ptr.hbm [resolvable:$true] %s543
    %s545 = sshll.u32 %s535, 4
    %s546 = int_to_ptr.vmem [resolvable:$true] %s545
    %548 = dma.hbm_to_vmem [thread:$0]  %s544, 16, %s546, %s234
    %s549 = sadd.s32 %s16, 29
    %s550 = sld [smem:[#allocation4 + %s549]]
    %552 = dma.done %s252, 16
    %s553 = scalar_lea.hbm %s1, %s550
    %s554 = scalar_lea.vmem [#allocation5], 29
    // Predicated region
    $region118: #{tpu_custom_call.1} parent=1 // pred_check
      _
    $region119: #{tpu_custom_call.1} parent=1 // pred_check_branch
      %556 = sbr.rel target = $region121
    $region120: #{tpu_custom_call.1} parent=1 // pred_region
      %557 = sst [smem:[#allocation9]] [#allocation68]
      %558 = sst [smem:[#allocation10]] [#allocation67]
    $region121: #{tpu_custom_call.1} parent=1 // pred_fallthru
      _
    %560 = shalt.err (0)
    %s562 = sshll.u32 %s553, 4
    %s563 = int_to_ptr.hbm [resolvable:$true] %s562
    %s564 = sshll.u32 %s554, 4
    %s565 = int_to_ptr.vmem [resolvable:$true] %s564
    %567 = dma.hbm_to_vmem [thread:$0]  %s563, 16, %s565, %s252
    %s568 = sadd.s32 %s16, 30
    %s569 = sld [smem:[#allocation4 + %s568]]
    %571 = dma.done %s270, 16
    %s572 = scalar_lea.hbm %s1, %s569
    %s573 = scalar_lea.vmem [#allocation5], 30
    // Predicated region
    $region122: #{tpu_custom_call.1} parent=1 // pred_check
      _
    $region123: #{tpu_custom_call.1} parent=1 // pred_check_branch
      %575 = sbr.rel target = $region125
    $region124: #{tpu_custom_call.1} parent=1 // pred_region
      %576 = sst [smem:[#allocation9]] [#allocation70]
      %577 = sst [smem:[#allocation10]] [#allocation69]
    $region125: #{tpu_custom_call.1} parent=1 // pred_fallthru
      _
    %579 = shalt.err (0)
    %s581 = sshll.u32 %s572, 4
    %s582 = int_to_ptr.hbm [resolvable:$true] %s581
    %s583 = sshll.u32 %s573, 4
    %s584 = int_to_ptr.vmem [resolvable:$true] %s583
    %586 = dma.hbm_to_vmem [thread:$0]  %s582, 16, %s584, %s270
    %s587 = sadd.s32 %s16, 31
    %s588 = sld [smem:[#allocation4 + %s587]]
    %590 = dma.done %s288, 16
    %s591 = scalar_lea.hbm %s1, %s588
    %s592 = scalar_lea.vmem [#allocation5], 31
    // Predicated region
    $region126: #{tpu_custom_call.1} parent=1 // pred_check
      _
    $region127: #{tpu_custom_call.1} parent=1 // pred_check_branch
      %594 = sbr.rel target = $region129
    $region128: #{tpu_custom_call.1} parent=1 // pred_region
      %595 = sst [smem:[#allocation9]] [#allocation72]
      %596 = sst [smem:[#allocation10]] [#allocation71]
    $region129: #{tpu_custom_call.1} parent=1 // pred_fallthru
      _
    %598 = shalt.err (0)
    %s600 = sshll.u32 %s591, 4
    %s601 = int_to_ptr.hbm [resolvable:$true] %s600
    %s602 = sshll.u32 %s592, 4
    %s603 = int_to_ptr.vmem [resolvable:$true] %s602
    %605 = dma.hbm_to_vmem [thread:$0]  %s601, 16, %s603, %s288
    %s606 = sadd.s32 %s16, 32
    %s607 = sld [smem:[#allocation4 + %s606]]
    %609 = dma.done [#allocation2], 16
    %s610 = scalar_lea.hbm %s1, %s607
    %s611 = scalar_lea.vmem [#allocation5], 32
    // Predicated region
    $region130: #{tpu_custom_call.1} parent=1 // pred_check
      _
    $region131: #{tpu_custom_call.1} parent=1 // pred_check_branch
      %613 = sbr.rel target = $region133
    $region132: #{tpu_custom_call.1} parent=1 // pred_region
      %614 = sst [smem:[#allocation9]] [#allocation74]
      %615 = sst [smem:[#allocation10]] [#allocation73]
    $region133: #{tpu_custom_call.1} parent=1 // pred_fallthru
      _
    %617 = shalt.err (0)
    %s619 = sshll.u32 %s610, 4
    %s620 = int_to_ptr.hbm [resolvable:$true] %s619
    %s621 = sshll.u32 %s611, 4
    %s622 = int_to_ptr.vmem [resolvable:$true] %s621
    %624 = dma.hbm_to_vmem [thread:$0]  %s620, 16, %s622, [#allocation2]
    %s625 = sadd.s32 %s16, 33
    %s626 = sld [smem:[#allocation4 + %s625]]
    %628 = dma.done %s36, 16
    %s629 = scalar_lea.hbm %s1, %s626
    %s630 = scalar_lea.vmem [#allocation5], 33
    // Predicated region
    $region134: #{tpu_custom_call.1} parent=1 // pred_check
      _
    $region135: #{tpu_custom_call.1} parent=1 // pred_check_branch
      %632 = sbr.rel target = $region137
    $region136: #{tpu_custom_call.1} parent=1 // pred_region
      %633 = sst [smem:[#allocation9]] [#allocation76]
      %634 = sst [smem:[#allocation10]] [#allocation75]
    $region137: #{tpu_custom_call.1} parent=1 // pred_fallthru
      _
    %636 = shalt.err (0)
    %s638 = sshll.u32 %s629, 4
    %s639 = int_to_ptr.hbm [resolvable:$true] %s638
    %s640 = sshll.u32 %s630, 4
    %s641 = int_to_ptr.vmem [resolvable:$true] %s640
    %643 = dma.hbm_to_vmem [thread:$0]  %s639, 16, %s641, %s36
    %s644 = sadd.s32 %s16, 34
    %s645 = sld [smem:[#allocation4 + %s644]]
    %647 = dma.done %s54, 16
    %s648 = scalar_lea.hbm %s1, %s645
    %s649 = scalar_lea.vmem [#allocation5], 34
    // Predicated region
    $region138: #{tpu_custom_call.1} parent=1 // pred_check
      _
    $region139: #{tpu_custom_call.1} parent=1 // pred_check_branch
      %651 = sbr.rel target = $region141
    $region140: #{tpu_custom_call.1} parent=1 // pred_region
      %652 = sst [smem:[#allocation9]] [#allocation78]
      %653 = sst [smem:[#allocation10]] [#allocation77]
    $region141: #{tpu_custom_call.1} parent=1 // pred_fallthru
      _
    %655 = shalt.err (0)
    %s657 = sshll.u32 %s648, 4
    %s658 = int_to_ptr.hbm [resolvable:$true] %s657
    %s659 = sshll.u32 %s649, 4
    %s660 = int_to_ptr.vmem [resolvable:$true] %s659
    %662 = dma.hbm_to_vmem [thread:$0]  %s658, 16, %s660, %s54
    %s663 = sadd.s32 %s16, 35
    %s664 = sld [smem:[#allocation4 + %s663]]
    %666 = dma.done %s72, 16
    %s667 = scalar_lea.hbm %s1, %s664
    %s668 = scalar_lea.vmem [#allocation5], 35
    // Predicated region
    $region142: #{tpu_custom_call.1} parent=1 // pred_check
      _
    $region143: #{tpu_custom_call.1} parent=1 // pred_check_branch
      %670 = sbr.rel target = $region145
    $region144: #{tpu_custom_call.1} parent=1 // pred_region
      %671 = sst [smem:[#allocation9]] [#allocation80]
      %672 = sst [smem:[#allocation10]] [#allocation79]
    $region145: #{tpu_custom_call.1} parent=1 // pred_fallthru
      _
    %674 = shalt.err (0)
    %s676 = sshll.u32 %s667, 4
    %s677 = int_to_ptr.hbm [resolvable:$true] %s676
    %s678 = sshll.u32 %s668, 4
    %s679 = int_to_ptr.vmem [resolvable:$true] %s678
    %681 = dma.hbm_to_vmem [thread:$0]  %s677, 16, %s679, %s72
    %s682 = sadd.s32 %s16, 36
    %s683 = sld [smem:[#allocation4 + %s682]]
    %685 = dma.done %s90, 16
    %s686 = scalar_lea.hbm %s1, %s683
    %s687 = scalar_lea.vmem [#allocation5], 36
    // Predicated region
    $region146: #{tpu_custom_call.1} parent=1 // pred_check
      _
    $region147: #{tpu_custom_call.1} parent=1 // pred_check_branch
      %689 = sbr.rel target = $region149
    $region148: #{tpu_custom_call.1} parent=1 // pred_region
      %690 = sst [smem:[#allocation9]] [#allocation82]
      %691 = sst [smem:[#allocation10]] [#allocation81]
    $region149: #{tpu_custom_call.1} parent=1 // pred_fallthru
      _
    %693 = shalt.err (0)
    %s695 = sshll.u32 %s686, 4
    %s696 = int_to_ptr.hbm [resolvable:$true] %s695
    %s697 = sshll.u32 %s687, 4
    %s698 = int_to_ptr.vmem [resolvable:$true] %s697
    %700 = dma.hbm_to_vmem [thread:$0]  %s696, 16, %s698, %s90
    %s701 = sadd.s32 %s16, 37
    %s702 = sld [smem:[#allocation4 + %s701]]
    %704 = dma.done %s108, 16
    %s705 = scalar_lea.hbm %s1, %s702
    %s706 = scalar_lea.vmem [#allocation5], 37
    // Predicated region
    $region150: #{tpu_custom_call.1} parent=1 // pred_check
      _
    $region151: #{tpu_custom_call.1} parent=1 // pred_check_branch
      %708 = sbr.rel target = $region153
    $region152: #{tpu_custom_call.1} parent=1 // pred_region
      %709 = sst [smem:[#allocation9]] [#allocation84]
      %710 = sst [smem:[#allocation10]] [#allocation83]
    $region153: #{tpu_custom_call.1} parent=1 // pred_fallthru
      _
    %712 = shalt.err (0)
    %s714 = sshll.u32 %s705, 4
    %s715 = int_to_ptr.hbm [resolvable:$true] %s714
    %s716 = sshll.u32 %s706, 4
    %s717 = int_to_ptr.vmem [resolvable:$true] %s716
    %719 = dma.hbm_to_vmem [thread:$0]  %s715, 16, %s717, %s108
    %s720 = sadd.s32 %s16, 38
    %s721 = sld [smem:[#allocation4 + %s720]]
    %723 = dma.done %s126, 16
    %s724 = scalar_lea.hbm %s1, %s721
    %s725 = scalar_lea.vmem [#allocation5], 38
    // Predicated region
    $region154: #{tpu_custom_call.1} parent=1 // pred_check
      _
    $region155: #{tpu_custom_call.1} parent=1 // pred_check_branch
      %727 = sbr.rel target = $region157
    $region156: #{tpu_custom_call.1} parent=1 // pred_region
      %728 = sst [smem:[#allocation9]] [#allocation86]
      %729 = sst [smem:[#allocation10]] [#allocation85]
    $region157: #{tpu_custom_call.1} parent=1 // pred_fallthru
      _
    %731 = shalt.err (0)
    %s733 = sshll.u32 %s724, 4
    %s734 = int_to_ptr.hbm [resolvable:$true] %s733
    %s735 = sshll.u32 %s725, 4
    %s736 = int_to_ptr.vmem [resolvable:$true] %s735
    %738 = dma.hbm_to_vmem [thread:$0]  %s734, 16, %s736, %s126
    %s739 = sadd.s32 %s16, 39
    %s740 = sld [smem:[#allocation4 + %s739]]
    %742 = dma.done %s144, 16
    %s743 = scalar_lea.hbm %s1, %s740
    %s744 = scalar_lea.vmem [#allocation5], 39
    // Predicated region
    $region158: #{tpu_custom_call.1} parent=1 // pred_check
      _
    $region159: #{tpu_custom_call.1} parent=1 // pred_check_branch
      %746 = sbr.rel target = $region161
    $region160: #{tpu_custom_call.1} parent=1 // pred_region
      %747 = sst [smem:[#allocation9]] [#allocation88]
      %748 = sst [smem:[#allocation10]] [#allocation87]
    $region161: #{tpu_custom_call.1} parent=1 // pred_fallthru
      _
    %750 = shalt.err (0)
    %s752 = sshll.u32 %s743, 4
    %s753 = int_to_ptr.hbm [resolvable:$true] %s752
    %s754 = sshll.u32 %s744, 4
    %s755 = int_to_ptr.vmem [resolvable:$true] %s754
    %757 = dma.hbm_to_vmem [thread:$0]  %s753, 16, %s755, %s144
    %s758 = sadd.s32 %s16, 40
    %s759 = sld [smem:[#allocation4 + %s758]]
    %761 = dma.done %s162, 16
    %s762 = scalar_lea.hbm %s1, %s759
    %s763 = scalar_lea.vmem [#allocation5], 40
    // Predicated region
    $region162: #{tpu_custom_call.1} parent=1 // pred_check
      _
    $region163: #{tpu_custom_call.1} parent=1 // pred_check_branch
      %765 = sbr.rel target = $region165
    $region164: #{tpu_custom_call.1} parent=1 // pred_region
      %766 = sst [smem:[#allocation9]] [#allocation90]
      %767 = sst [smem:[#allocation10]] [#allocation89]
    $region165: #{tpu_custom_call.1} parent=1 // pred_fallthru
      _
    %769 = shalt.err (0)
    %s771 = sshll.u32 %s762, 4
    %s772 = int_to_ptr.hbm [resolvable:$true] %s771
    %s773 = sshll.u32 %s763, 4
    %s774 = int_to_ptr.vmem [resolvable:$true] %s773
    %776 = dma.hbm_to_vmem [thread:$0]  %s772, 16, %s774, %s162
    %s777 = sadd.s32 %s16, 41
    %s778 = sld [smem:[#allocation4 + %s777]]
    %780 = dma.done %s180, 16
    %s781 = scalar_lea.hbm %s1, %s778
    %s782 = scalar_lea.vmem [#allocation5], 41
    // Predicated region
    $region166: #{tpu_custom_call.1} parent=1 // pred_check
      _
    $region167: #{tpu_custom_call.1} parent=1 // pred_check_branch
      %784 = sbr.rel target = $region169
    $region168: #{tpu_custom_call.1} parent=1 // pred_region
      %785 = sst [smem:[#allocation9]] [#allocation92]
      %786 = sst [smem:[#allocation10]] [#allocation91]
    $region169: #{tpu_custom_call.1} parent=1 // pred_fallthru
      _
    %788 = shalt.err (0)
    %s790 = sshll.u32 %s781, 4
    %s791 = int_to_ptr.hbm [resolvable:$true] %s790
    %s792 = sshll.u32 %s782, 4
    %s793 = int_to_ptr.vmem [resolvable:$true] %s792
    %795 = dma.hbm_to_vmem [thread:$0]  %s791, 16, %s793, %s180
    %s796 = sadd.s32 %s16, 42
    %s797 = sld [smem:[#allocation4 + %s796]]
    %799 = dma.done %s198, 16
    %s800 = scalar_lea.hbm %s1, %s797
    %s801 = scalar_lea.vmem [#allocation5], 42
    // Predicated region
    $region170: #{tpu_custom_call.1} parent=1 // pred_check
      _
    $region171: #{tpu_custom_call.1} parent=1 // pred_check_branch
      %803 = sbr.rel target = $region173
    $region172: #{tpu_custom_call.1} parent=1 // pred_region
      %804 = sst [smem:[#allocation9]] [#allocation94]
      %805 = sst [smem:[#allocation10]] [#allocation93]
    $region173: #{tpu_custom_call.1} parent=1 // pred_fallthru
      _
    %807 = shalt.err (0)
    %s809 = sshll.u32 %s800, 4
    %s810 = int_to_ptr.hbm [resolvable:$true] %s809
    %s811 = sshll.u32 %s801, 4
    %s812 = int_to_ptr.vmem [resolvable:$true] %s811
    %814 = dma.hbm_to_vmem [thread:$0]  %s810, 16, %s812, %s198
    %s815 = sadd.s32 %s16, 43
    %s816 = sld [smem:[#allocation4 + %s815]]
    %818 = dma.done %s216, 16
    %s819 = scalar_lea.hbm %s1, %s816
    %s820 = scalar_lea.vmem [#allocation5], 43
    // Predicated region
    $region174: #{tpu_custom_call.1} parent=1 // pred_check
      _
    $region175: #{tpu_custom_call.1} parent=1 // pred_check_branch
      %822 = sbr.rel target = $region177
    $region176: #{tpu_custom_call.1} parent=1 // pred_region
      %823 = sst [smem:[#allocation9]] [#allocation96]
      %824 = sst [smem:[#allocation10]] [#allocation95]
    $region177: #{tpu_custom_call.1} parent=1 // pred_fallthru
      _
    %826 = shalt.err (0)
    %s828 = sshll.u32 %s819, 4
    %s829 = int_to_ptr.hbm [resolvable:$true] %s828
    %s830 = sshll.u32 %s820, 4
    %s831 = int_to_ptr.vmem [resolvable:$true] %s830
    %833 = dma.hbm_to_vmem [thread:$0]  %s829, 16, %s831, %s216
    %s834 = sadd.s32 %s16, 44
    %s835 = sld [smem:[#allocation4 + %s834]]
    %837 = dma.done %s234, 16
    %s838 = scalar_lea.hbm %s1, %s835
    %s839 = scalar_lea.vmem [#allocation5], 44
    // Predicated region
    $region178: #{tpu_custom_call.1} parent=1 // pred_check
      _
    $region179: #{tpu_custom_call.1} parent=1 // pred_check_branch
      %841 = sbr.rel target = $region181
    $region180: #{tpu_custom_call.1} parent=1 // pred_region
      %842 = sst [smem:[#allocation9]] [#allocation98]
      %843 = sst [smem:[#allocation10]] [#allocation97]
    $region181: #{tpu_custom_call.1} parent=1 // pred_fallthru
      _
    %845 = shalt.err (0)
    %s847 = sshll.u32 %s838, 4
    %s848 = int_to_ptr.hbm [resolvable:$true] %s847
    %s849 = sshll.u32 %s839, 4
    %s850 = int_to_ptr.vmem [resolvable:$true] %s849
    %852 = dma.hbm_to_vmem [thread:$0]  %s848, 16, %s850, %s234
    %s853 = sadd.s32 %s16, 45
    %s854 = sld [smem:[#allocation4 + %s853]]
    %856 = dma.done %s252, 16
    %s857 = scalar_lea.hbm %s1, %s854
    %s858 = scalar_lea.vmem [#allocation5], 45
    // Predicated region
    $region182: #{tpu_custom_call.1} parent=1 // pred_check
      _
    $region183: #{tpu_custom_call.1} parent=1 // pred_check_branch
      %860 = sbr.rel target = $region185
    $region184: #{tpu_custom_call.1} parent=1 // pred_region
      %861 = sst [smem:[#allocation9]] [#allocation100]
      %862 = sst [smem:[#allocation10]] [#allocation99]
    $region185: #{tpu_custom_call.1} parent=1 // pred_fallthru
      _
    %864 = shalt.err (0)
    %s866 = sshll.u32 %s857, 4
    %s867 = int_to_ptr.hbm [resolvable:$true] %s866
    %s868 = sshll.u32 %s858, 4
    %s869 = int_to_ptr.vmem [resolvable:$true] %s868
    %871 = dma.hbm_to_vmem [thread:$0]  %s867, 16, %s869, %s252
    %s872 = sadd.s32 %s16, 46
    %s873 = sld [smem:[#allocation4 + %s872]]
    %875 = dma.done %s270, 16
    %s876 = scalar_lea.hbm %s1, %s873
    %s877 = scalar_lea.vmem [#allocation5], 46
    // Predicated region
    $region186: #{tpu_custom_call.1} parent=1 // pred_check
      _
    $region187: #{tpu_custom_call.1} parent=1 // pred_check_branch
      %879 = sbr.rel target = $region189
    $region188: #{tpu_custom_call.1} parent=1 // pred_region
      %880 = sst [smem:[#allocation9]] [#allocation102]
      %881 = sst [smem:[#allocation10]] [#allocation101]
    $region189: #{tpu_custom_call.1} parent=1 // pred_fallthru
      _
    %883 = shalt.err (0)
    %s885 = sshll.u32 %s876, 4
    %s886 = int_to_ptr.hbm [resolvable:$true] %s885
    %s887 = sshll.u32 %s877, 4
    %s888 = int_to_ptr.vmem [resolvable:$true] %s887
    %890 = dma.hbm_to_vmem [thread:$0]  %s886, 16, %s888, %s270
    %s891 = sadd.s32 %s16, 47
    %s892 = sld [smem:[#allocation4 + %s891]]
    %894 = dma.done %s288, 16
    %s895 = scalar_lea.hbm %s1, %s892
    %s896 = scalar_lea.vmem [#allocation5], 47
    // Predicated region
    $region190: #{tpu_custom_call.1} parent=1 // pred_check
      _
    $region191: #{tpu_custom_call.1} parent=1 // pred_check_branch
      %898 = sbr.rel target = $region193
    $region192: #{tpu_custom_call.1} parent=1 // pred_region
      %899 = sst [smem:[#allocation9]] [#allocation104]
      %900 = sst [smem:[#allocation10]] [#allocation103]
    $region193: #{tpu_custom_call.1} parent=1 // pred_fallthru
      _
    %902 = shalt.err (0)
    %s904 = sshll.u32 %s895, 4
    %s905 = int_to_ptr.hbm [resolvable:$true] %s904
    %s906 = sshll.u32 %s896, 4
    %s907 = int_to_ptr.vmem [resolvable:$true] %s906
    %909 = dma.hbm_to_vmem [thread:$0]  %s905, 16, %s907, %s288
    %s910 = sadd.s32 %s16, 48
    %s911 = sld [smem:[#allocation4 + %s910]]
    %913 = dma.done [#allocation2], 16
    %s914 = scalar_lea.hbm %s1, %s911
    %s915 = scalar_lea.vmem [#allocation5], 48
    // Predicated region
    $region194: #{tpu_custom_call.1} parent=1 // pred_check
      _
    $region195: #{tpu_custom_call.1} parent=1 // pred_check_branch
      %917 = sbr.rel target = $region197
    $region196: #{tpu_custom_call.1} parent=1 // pred_region
      %918 = sst [smem:[#allocation9]] [#allocation106]
      %919 = sst [smem:[#allocation10]] [#allocation105]
    $region197: #{tpu_custom_call.1} parent=1 // pred_fallthru
      _
    %921 = shalt.err (0)
    %s923 = sshll.u32 %s914, 4
    %s924 = int_to_ptr.hbm [resolvable:$true] %s923
    %s925 = sshll.u32 %s915, 4
    %s926 = int_to_ptr.vmem [resolvable:$true] %s925
    %928 = dma.hbm_to_vmem [thread:$0]  %s924, 16, %s926, [#allocation2]
    %s929 = sadd.s32 %s16, 49
    %s930 = sld [smem:[#allocation4 + %s929]]
    %932 = dma.done %s36, 16
    %s933 = scalar_lea.hbm %s1, %s930
    %s934 = scalar_lea.vmem [#allocation5], 49
    // Predicated region
    $region198: #{tpu_custom_call.1} parent=1 // pred_check
      _
    $region199: #{tpu_custom_call.1} parent=1 // pred_check_branch
      %936 = sbr.rel target = $region201
    $region200: #{tpu_custom_call.1} parent=1 // pred_region
      %937 = sst [smem:[#allocation9]] [#allocation108]
      %938 = sst [smem:[#allocation10]] [#allocation107]
    $region201: #{tpu_custom_call.1} parent=1 // pred_fallthru
      _
    %940 = shalt.err (0)
    %s942 = sshll.u32 %s933, 4
    %s943 = int_to_ptr.hbm [resolvable:$true] %s942
    %s944 = sshll.u32 %s934, 4
    %s945 = int_to_ptr.vmem [resolvable:$true] %s944
    %947 = dma.hbm_to_vmem [thread:$0]  %s943, 16, %s945, %s36
    %s948 = sadd.s32 %s16, 50
    %s949 = sld [smem:[#allocation4 + %s948]]
    %951 = dma.done %s54, 16
    %s952 = scalar_lea.hbm %s1, %s949
    %s953 = scalar_lea.vmem [#allocation5], 50
    // Predicated region
    $region202: #{tpu_custom_call.1} parent=1 // pred_check
      _
    $region203: #{tpu_custom_call.1} parent=1 // pred_check_branch
      %955 = sbr.rel target = $region205
    $region204: #{tpu_custom_call.1} parent=1 // pred_region
      %956 = sst [smem:[#allocation9]] [#allocation110]
      %957 = sst [smem:[#allocation10]] [#allocation109]
    $region205: #{tpu_custom_call.1} parent=1 // pred_fallthru
      _
    %959 = shalt.err (0)
    %s961 = sshll.u32 %s952, 4
    %s962 = int_to_ptr.hbm [resolvable:$true] %s961
    %s963 = sshll.u32 %s953, 4
    %s964 = int_to_ptr.vmem [resolvable:$true] %s963
    %966 = dma.hbm_to_vmem [thread:$0]  %s962, 16, %s964, %s54
    %s967 = sadd.s32 %s16, 51
    %s968 = sld [smem:[#allocation4 + %s967]]
    %970 = dma.done %s72, 16
    %s971 = scalar_lea.hbm %s1, %s968
    %s972 = scalar_lea.vmem [#allocation5], 51
    // Predicated region
    $region206: #{tpu_custom_call.1} parent=1 // pred_check
      _
    $region207: #{tpu_custom_call.1} parent=1 // pred_check_branch
      %974 = sbr.rel target = $region209
    $region208: #{tpu_custom_call.1} parent=1 // pred_region
      %975 = sst [smem:[#allocation9]] [#allocation112]
      %976 = sst [smem:[#allocation10]] [#allocation111]
    $region209: #{tpu_custom_call.1} parent=1 // pred_fallthru
      _
    %978 = shalt.err (0)
    %s980 = sshll.u32 %s971, 4
    %s981 = int_to_ptr.hbm [resolvable:$true] %s980
    %s982 = sshll.u32 %s972, 4
    %s983 = int_to_ptr.vmem [resolvable:$true] %s982
    %985 = dma.hbm_to_vmem [thread:$0]  %s981, 16, %s983, %s72
    %s986 = sadd.s32 %s16, 52
    %s987 = sld [smem:[#allocation4 + %s986]]
    %989 = dma.done %s90, 16
    %s990 = scalar_lea.hbm %s1, %s987
    %s991 = scalar_lea.vmem [#allocation5], 52
    // Predicated region
    $region210: #{tpu_custom_call.1} parent=1 // pred_check
      _
    $region211: #{tpu_custom_call.1} parent=1 // pred_check_branch
      %993 = sbr.rel target = $region213
    $region212: #{tpu_custom_call.1} parent=1 // pred_region
      %994 = sst [smem:[#allocation9]] [#allocation114]
      %995 = sst [smem:[#allocation10]] [#allocation113]
    $region213: #{tpu_custom_call.1} parent=1 // pred_fallthru
      _
    %997 = shalt.err (0)
    %s999 = sshll.u32 %s990, 4
    %s1000 = int_to_ptr.hbm [resolvable:$true] %s999
    %s1001 = sshll.u32 %s991, 4
    %s1002 = int_to_ptr.vmem [resolvable:$true] %s1001
    %1004 = dma.hbm_to_vmem [thread:$0]  %s1000, 16, %s1002, %s90
    %s1005 = sadd.s32 %s16, 53
    %s1006 = sld [smem:[#allocation4 + %s1005]]
    %1008 = dma.done %s108, 16
    %s1009 = scalar_lea.hbm %s1, %s1006
    %s1010 = scalar_lea.vmem [#allocation5], 53
    // Predicated region
    $region214: #{tpu_custom_call.1} parent=1 // pred_check
      _
    $region215: #{tpu_custom_call.1} parent=1 // pred_check_branch
      %1012 = sbr.rel target = $region217
    $region216: #{tpu_custom_call.1} parent=1 // pred_region
      %1013 = sst [smem:[#allocation9]] [#allocation116]
      %1014 = sst [smem:[#allocation10]] [#allocation115]
    $region217: #{tpu_custom_call.1} parent=1 // pred_fallthru
      _
    %1016 = shalt.err (0)
    %s1018 = sshll.u32 %s1009, 4
    %s1019 = int_to_ptr.hbm [resolvable:$true] %s1018
    %s1020 = sshll.u32 %s1010, 4
    %s1021 = int_to_ptr.vmem [resolvable:$true] %s1020
    %1023 = dma.hbm_to_vmem [thread:$0]  %s1019, 16, %s1021, %s108
    %s1024 = sadd.s32 %s16, 54
    %s1025 = sld [smem:[#allocation4 + %s1024]]
    %1027 = dma.done %s126, 16
    %s1028 = scalar_lea.hbm %s1, %s1025
    %s1029 = scalar_lea.vmem [#allocation5], 54
    // Predicated region
    $region218: #{tpu_custom_call.1} parent=1 // pred_check
      _
    $region219: #{tpu_custom_call.1} parent=1 // pred_check_branch
      %1031 = sbr.rel target = $region221
    $region220: #{tpu_custom_call.1} parent=1 // pred_region
      %1032 = sst [smem:[#allocation9]] [#allocation118]
      %1033 = sst [smem:[#allocation10]] [#allocation117]
    $region221: #{tpu_custom_call.1} parent=1 // pred_fallthru
      _
    %1035 = shalt.err (0)
    %s1037 = sshll.u32 %s1028, 4
    %s1038 = int_to_ptr.hbm [resolvable:$true] %s1037
    %s1039 = sshll.u32 %s1029, 4
    %s1040 = int_to_ptr.vmem [resolvable:$true] %s1039
    %1042 = dma.hbm_to_vmem [thread:$0]  %s1038, 16, %s1040, %s126
    %s1043 = sadd.s32 %s16, 55
    %s1044 = sld [smem:[#allocation4 + %s1043]]
    %1046 = dma.done %s144, 16
    %s1047 = scalar_lea.hbm %s1, %s1044
    %s1048 = scalar_lea.vmem [#allocation5], 55
    // Predicated region
    $region222: #{tpu_custom_call.1} parent=1 // pred_check
      _
    $region223: #{tpu_custom_call.1} parent=1 // pred_check_branch
      %1050 = sbr.rel target = $region225
    $region224: #{tpu_custom_call.1} parent=1 // pred_region
      %1051 = sst [smem:[#allocation9]] [#allocation120]
      %1052 = sst [smem:[#allocation10]] [#allocation119]
    $region225: #{tpu_custom_call.1} parent=1 // pred_fallthru
      _
    %1054 = shalt.err (0)
    %s1056 = sshll.u32 %s1047, 4
    %s1057 = int_to_ptr.hbm [resolvable:$true] %s1056
    %s1058 = sshll.u32 %s1048, 4
    %s1059 = int_to_ptr.vmem [resolvable:$true] %s1058
    %1061 = dma.hbm_to_vmem [thread:$0]  %s1057, 16, %s1059, %s144
    %s1062 = sadd.s32 %s16, 56
    %s1063 = sld [smem:[#allocation4 + %s1062]]
    %1065 = dma.done %s162, 16
    %s1066 = scalar_lea.hbm %s1, %s1063
    %s1067 = scalar_lea.vmem [#allocation5], 56
    // Predicated region
    $region226: #{tpu_custom_call.1} parent=1 // pred_check
      _
    $region227: #{tpu_custom_call.1} parent=1 // pred_check_branch
      %1069 = sbr.rel target = $region229
    $region228: #{tpu_custom_call.1} parent=1 // pred_region
      %1070 = sst [smem:[#allocation9]] [#allocation122]
      %1071 = sst [smem:[#allocation10]] [#allocation121]
    $region229: #{tpu_custom_call.1} parent=1 // pred_fallthru
      _
    %1073 = shalt.err (0)
    %s1075 = sshll.u32 %s1066, 4
    %s1076 = int_to_ptr.hbm [resolvable:$true] %s1075
    %s1077 = sshll.u32 %s1067, 4
    %s1078 = int_to_ptr.vmem [resolvable:$true] %s1077
    %1080 = dma.hbm_to_vmem [thread:$0]  %s1076, 16, %s1078, %s162
    %s1081 = sadd.s32 %s16, 57
    %s1082 = sld [smem:[#allocation4 + %s1081]]
    %1084 = dma.done %s180, 16
    %s1085 = scalar_lea.hbm %s1, %s1082
    %s1086 = scalar_lea.vmem [#allocation5], 57
    // Predicated region
    $region230: #{tpu_custom_call.1} parent=1 // pred_check
      _
    $region231: #{tpu_custom_call.1} parent=1 // pred_check_branch
      %1088 = sbr.rel target = $region233
    $region232: #{tpu_custom_call.1} parent=1 // pred_region
      %1089 = sst [smem:[#allocation9]] [#allocation124]
      %1090 = sst [smem:[#allocation10]] [#allocation123]
    $region233: #{tpu_custom_call.1} parent=1 // pred_fallthru
      _
    %1092 = shalt.err (0)
    %s1094 = sshll.u32 %s1085, 4
    %s1095 = int_to_ptr.hbm [resolvable:$true] %s1094
    %s1096 = sshll.u32 %s1086, 4
    %s1097 = int_to_ptr.vmem [resolvable:$true] %s1096
    %1099 = dma.hbm_to_vmem [thread:$0]  %s1095, 16, %s1097, %s180
    %s1100 = sadd.s32 %s16, 58
    %s1101 = sld [smem:[#allocation4 + %s1100]]
    %1103 = dma.done %s198, 16
    %s1104 = scalar_lea.hbm %s1, %s1101
    %s1105 = scalar_lea.vmem [#allocation5], 58
    // Predicated region
    $region234: #{tpu_custom_call.1} parent=1 // pred_check
      _
    $region235: #{tpu_custom_call.1} parent=1 // pred_check_branch
      %1107 = sbr.rel target = $region237
    $region236: #{tpu_custom_call.1} parent=1 // pred_region
      %1108 = sst [smem:[#allocation9]] [#allocation126]
      %1109 = sst [smem:[#allocation10]] [#allocation125]
    $region237: #{tpu_custom_call.1} parent=1 // pred_fallthru
      _
    %1111 = shalt.err (0)
    %s1113 = sshll.u32 %s1104, 4
    %s1114 = int_to_ptr.hbm [resolvable:$true] %s1113
    %s1115 = sshll.u32 %s1105, 4
    %s1116 = int_to_ptr.vmem [resolvable:$true] %s1115
    %1118 = dma.hbm_to_vmem [thread:$0]  %s1114, 16, %s1116, %s198
    %s1119 = sadd.s32 %s16, 59
    %s1120 = sld [smem:[#allocation4 + %s1119]]
    %1122 = dma.done %s216, 16
    %s1123 = scalar_lea.hbm %s1, %s1120
    %s1124 = scalar_lea.vmem [#allocation5], 59
    // Predicated region
    $region238: #{tpu_custom_call.1} parent=1 // pred_check
      _
    $region239: #{tpu_custom_call.1} parent=1 // pred_check_branch
      %1126 = sbr.rel target = $region241
    $region240: #{tpu_custom_call.1} parent=1 // pred_region
      %1127 = sst [smem:[#allocation9]] [#allocation128]
      %1128 = sst [smem:[#allocation10]] [#allocation127]
    $region241: #{tpu_custom_call.1} parent=1 // pred_fallthru
      _
    %1130 = shalt.err (0)
    %s1132 = sshll.u32 %s1123, 4
    %s1133 = int_to_ptr.hbm [resolvable:$true] %s1132
    %s1134 = sshll.u32 %s1124, 4
    %s1135 = int_to_ptr.vmem [resolvable:$true] %s1134
    %1137 = dma.hbm_to_vmem [thread:$0]  %s1133, 16, %s1135, %s216
    %s1138 = sadd.s32 %s16, 60
    %s1139 = sld [smem:[#allocation4 + %s1138]]
    %1141 = dma.done %s234, 16
    %s1142 = scalar_lea.hbm %s1, %s1139
    %s1143 = scalar_lea.vmem [#allocation5], 60
    // Predicated region
    $region242: #{tpu_custom_call.1} parent=1 // pred_check
      _
    $region243: #{tpu_custom_call.1} parent=1 // pred_check_branch
      %1145 = sbr.rel target = $region245
    $region244: #{tpu_custom_call.1} parent=1 // pred_region
      %1146 = sst [smem:[#allocation9]] [#allocation130]
      %1147 = sst [smem:[#allocation10]] [#allocation129]
    $region245: #{tpu_custom_call.1} parent=1 // pred_fallthru
      _
    %1149 = shalt.err (0)
    %s1151 = sshll.u32 %s1142, 4
    %s1152 = int_to_ptr.hbm [resolvable:$true] %s1151
    %s1153 = sshll.u32 %s1143, 4
    %s1154 = int_to_ptr.vmem [resolvable:$true] %s1153
    %1156 = dma.hbm_to_vmem [thread:$0]  %s1152, 16, %s1154, %s234
    %s1157 = sadd.s32 %s16, 61
    %s1158 = sld [smem:[#allocation4 + %s1157]]
    %1160 = dma.done %s252, 16
    %s1161 = scalar_lea.hbm %s1, %s1158
    %s1162 = scalar_lea.vmem [#allocation5], 61
    // Predicated region
    $region246: #{tpu_custom_call.1} parent=1 // pred_check
      _
    $region247: #{tpu_custom_call.1} parent=1 // pred_check_branch
      %1164 = sbr.rel target = $region249
    $region248: #{tpu_custom_call.1} parent=1 // pred_region
      %1165 = sst [smem:[#allocation9]] [#allocation132]
      %1166 = sst [smem:[#allocation10]] [#allocation131]
    $region249: #{tpu_custom_call.1} parent=1 // pred_fallthru
      _
    %1168 = shalt.err (0)
    %s1170 = sshll.u32 %s1161, 4
    %s1171 = int_to_ptr.hbm [resolvable:$true] %s1170
    %s1172 = sshll.u32 %s1162, 4
    %s1173 = int_to_ptr.vmem [resolvable:$true] %s1172
    %1175 = dma.hbm_to_vmem [thread:$0]  %s1171, 16, %s1173, %s252
    %s1176 = sadd.s32 %s16, 62
    %s1177 = sld [smem:[#allocation4 + %s1176]]
    %1179 = dma.done %s270, 16
    %s1180 = scalar_lea.hbm %s1, %s1177
    %s1181 = scalar_lea.vmem [#allocation5], 62
    // Predicated region
    $region250: #{tpu_custom_call.1} parent=1 // pred_check
      _
    $region251: #{tpu_custom_call.1} parent=1 // pred_check_branch
      %1183 = sbr.rel target = $region253
    $region252: #{tpu_custom_call.1} parent=1 // pred_region
      %1184 = sst [smem:[#allocation9]] [#allocation134]
      %1185 = sst [smem:[#allocation10]] [#allocation133]
    $region253: #{tpu_custom_call.1} parent=1 // pred_fallthru
      _
    %1187 = shalt.err (0)
    %s1189 = sshll.u32 %s1180, 4
    %s1190 = int_to_ptr.hbm [resolvable:$true] %s1189
    %s1191 = sshll.u32 %s1181, 4
    %s1192 = int_to_ptr.vmem [resolvable:$true] %s1191
    %1194 = dma.hbm_to_vmem [thread:$0]  %s1190, 16, %s1192, %s270
    %s1195 = sadd.s32 %s16, 63
    %s1196 = sld [smem:[#allocation4 + %s1195]]
    %1198 = dma.done %s288, 16
    %s1199 = scalar_lea.hbm %s1, %s1196
    %s1200 = scalar_lea.vmem [#allocation5], 63
    // Predicated region
    $region254: #{tpu_custom_call.1} parent=1 // pred_check
      _
    $region255: #{tpu_custom_call.1} parent=1 // pred_check_branch
      %1202 = sbr.rel target = $region257
    $region256: #{tpu_custom_call.1} parent=1 // pred_region
      %1203 = sst [smem:[#allocation9]] [#allocation136]
      %1204 = sst [smem:[#allocation10]] [#allocation135]
    $region257: #{tpu_custom_call.1} parent=1 // pred_fallthru
      _
    %1206 = shalt.err (0)
    %s1208 = sshll.u32 %s1199, 4
    %s1209 = int_to_ptr.hbm [resolvable:$true] %s1208
    %s1210 = sshll.u32 %s1200, 4
    %s1211 = int_to_ptr.vmem [resolvable:$true] %s1210
    %1213 = dma.hbm_to_vmem [thread:$0]  %s1209, 16, %s1211, %s288
    %1215 = dma.done [#allocation2], 16
    %1217 = dma.done %s36, 16
    %1219 = dma.done %s54, 16
    %1221 = dma.done %s72, 16
    %1223 = dma.done %s90, 16
    %1225 = dma.done %s108, 16
    %1227 = dma.done %s126, 16
    %1229 = dma.done %s144, 16
    %1231 = dma.done %s162, 16
    %1233 = dma.done %s180, 16
    %1235 = dma.done %s198, 16
    %1237 = dma.done %s216, 16
    %1239 = dma.done %s234, 16
    %1241 = dma.done %s252, 16
    %1243 = dma.done %s270, 16
    %1245 = dma.done %s288, 16
    // Predicated region
    $region258: #{tpu_custom_call.1} parent=1 // pred_check
      _
    $region259: #{tpu_custom_call.1} parent=1 // pred_check_branch
      %1247 = sbr.rel (0) target = $region261
    $region260: #{tpu_custom_call.1} parent=1 // pred_region
      %1249 = vsyncadd [#allocation6], 0
      %s1250 = sshll.u32 [#allocation5], 4
      %s1251 = int_to_ptr.vmem [resolvable:$true] %s1250
      %s1252 = sshll.u32 %s2, 4
      %s1253 = int_to_ptr.hbm [resolvable:$true] %s1252
      %1258 = dma.vmem_to_hbm [thread:$0]  %s1251, 1024, %s1253, [#allocation6], 128, 128, 8
    $region261: #{tpu_custom_call.1} parent=1 // pred_fallthru
      _
    // Predicated region
    $region262: #{tpu_custom_call.1} parent=1 // pred_check
      _
    $region263: #{tpu_custom_call.1} parent=1 // pred_check_branch
      %1260 = sbr.rel (0) target = $region265
    $region264: #{tpu_custom_call.1} parent=1 // pred_region
      %1262 = dma.done [#allocation6], 1024
    $region265: #{tpu_custom_call.1} parent=1 // pred_fallthru
      _
    %1263 = vsyncpa [#allocation6], 1
  %1264 = vsyncmov [#allocation2]
  %s1265 = vpop.sfrf %1264
  %p1266 = scmp.eq.s32.totalorder %s1265, 0
  %p1267 = pneg %p1266
  %1269 = shalt.err (%p1267)
  %s1270 = scalar_lea.sflag [#allocation2], 1
  %1271 = vsyncmov %s1270
  %s1272 = vpop.sfrf %1271
  %p1273 = scmp.eq.s32.totalorder %s1272, 0
  %p1274 = pneg %p1273
  %1276 = shalt.err (%p1274)
  %s1277 = scalar_lea.sflag [#allocation2], 2
  %1278 = vsyncmov %s1277
  %s1279 = vpop.sfrf %1278
  %p1280 = scmp.eq.s32.totalorder %s1279, 0
  %p1281 = pneg %p1280
  %1283 = shalt.err (%p1281)
  %s1284 = scalar_lea.sflag [#allocation2], 3
  %1285 = vsyncmov %s1284
  %s1286 = vpop.sfrf %1285
  %p1287 = scmp.eq.s32.totalorder %s1286, 0
  %p1288 = pneg %p1287
  %1290 = shalt.err (%p1288)
  %s1291 = scalar_lea.sflag [#allocation2], 4
  %1292 = vsyncmov %s1291
  %s1293 = vpop.sfrf %1292
  %p1294 = scmp.eq.s32.totalorder %s1293, 0
  %p1295 = pneg %p1294
  %1297 = shalt.err (%p1295)
  %s1298 = scalar_lea.sflag [#allocation2], 5
  %1299 = vsyncmov %s1298
  %s1300 = vpop.sfrf %1299
  %p1301 = scmp.eq.s32.totalorder %s1300, 0
  %p1302 = pneg %p1301
  %1304 = shalt.err (%p1302)
  %s1305 = scalar_lea.sflag [#allocation2], 6
  %1306 = vsyncmov %s1305
  %s1307 = vpop.sfrf %1306
  %p1308 = scmp.eq.s32.totalorder %s1307, 0
  %p1309 = pneg %p1308
  %1311 = shalt.err (%p1309)
  %s1312 = scalar_lea.sflag [#allocation2], 7
  %1313 = vsyncmov %s1312
  %s1314 = vpop.sfrf %1313
  %p1315 = scmp.eq.s32.totalorder %s1314, 0
  %p1316 = pneg %p1315
  %1318 = shalt.err (%p1316)
  %s1319 = scalar_lea.sflag [#allocation2], 8
  %1320 = vsyncmov %s1319
  %s1321 = vpop.sfrf %1320
  %p1322 = scmp.eq.s32.totalorder %s1321, 0
  %p1323 = pneg %p1322
  %1325 = shalt.err (%p1323)
  %s1326 = scalar_lea.sflag [#allocation2], 9
  %1327 = vsyncmov %s1326
  %s1328 = vpop.sfrf %1327
  %p1329 = scmp.eq.s32.totalorder %s1328, 0
  %p1330 = pneg %p1329
  %1332 = shalt.err (%p1330)
  %s1333 = scalar_lea.sflag [#allocation2], 10
  %1334 = vsyncmov %s1333
  %s1335 = vpop.sfrf %1334
  %p1336 = scmp.eq.s32.totalorder %s1335, 0
  %p1337 = pneg %p1336
  %1339 = shalt.err (%p1337)
  %s1340 = scalar_lea.sflag [#allocation2], 11
  %1341 = vsyncmov %s1340
  %s1342 = vpop.sfrf %1341
  %p1343 = scmp.eq.s32.totalorder %s1342, 0
  %p1344 = pneg %p1343
  %1346 = shalt.err (%p1344)
  %s1347 = scalar_lea.sflag [#allocation2], 12
  %1348 = vsyncmov %s1347
  %s1349 = vpop.sfrf %1348
  %p1350 = scmp.eq.s32.totalorder %s1349, 0
  %p1351 = pneg %p1350
  %1353 = shalt.err (%p1351)
  %s1354 = scalar_lea.sflag [#allocation2], 13
  %1355 = vsyncmov %s1354
  %s1356 = vpop.sfrf %1355
  %p1357 = scmp.eq.s32.totalorder %s1356, 0
  %p1358 = pneg %p1357
  %1360 = shalt.err (%p1358)
  %s1361 = scalar_lea.sflag [#allocation2], 14
  %1362 = vsyncmov %s1361
  %s1363 = vpop.sfrf %1362
  %p1364 = scmp.eq.s32.totalorder %s1363, 0
  %p1365 = pneg %p1364
  %1367 = shalt.err (%p1365)
  %s1368 = scalar_lea.sflag [#allocation2], 15
  %1369 = vsyncmov %s1368
  %s1370 = vpop.sfrf %1369
  %p1371 = scmp.eq.s32.totalorder %s1370, 0
  %p1372 = pneg %p1371
  %1374 = shalt.err (%p1372)

</llo_original>
